<compile_context>
chip_gen: v5e
topology: v5e:2x2
jax: 0.10.0
libtpu: 0.0.40
codegen_flags: <defaults>
</compile_context>

<pallas_src>
import math
import functools

import numpy as np
import jax
import jax.numpy as jnp
from jax.experimental import pallas as pl
from jax.experimental.pallas import tpu as pltpu


def _sine_kernel(tab_ref, emb_ref, out_ref, *, num_pos_feats):
    # tab_ref : (F, 2)        f32   column 0 = 1/dim_t, column 1 = phase (0 or pi/2)
    # emb_ref : (1, 2, T)     f32   row 0 = y_embed (flattened), row 1 = x_embed
    # out_ref : (1, 2F, T)    out dtype, flattened NCHW tile (lane-dense, T % 128 == 0)
    F = num_pos_feats
    inv_dim_t = tab_ref[:, 0:1]                    # (F, 1)
    phase = tab_ref[:, 1:2]                        # (F, 1)

    y_emb = emb_ref[0, 0:1, :]                     # (1, T)
    x_emb = emb_ref[0, 1:2, :]                     # (1, T)

    # one sin per output element; cos(v) == sin(v + pi/2)
    out_ref[0, 0:F, :] = jnp.sin(y_emb * inv_dim_t + phase).astype(out_ref.dtype)
    out_ref[0, F:2 * F, :] = jnp.sin(x_emb * inv_dim_t + phase).astype(out_ref.dtype)


def _pick_tile(hw, d_model, batch, bytes_budget=4 * 1024 * 1024):
    """Spatial (flattened H*W) tile size: a multiple of 128 lanes, output block
    under `bytes_budget`, and >=2 grid steps along the spatial axis when B==1
    so both v7x TensorCores get work."""
    hw_pad = ((hw + 127) // 128) * 128
    budget_t = max(128, (bytes_budget // (d_model * 4)) // 128 * 128)
    t = min(budget_t, hw_pad)
    if batch == 1 and hw_pad > 128:
        half = ((((hw + 1) // 2) + 127) // 128) * 128
        t = min(t, half)
    return t


def position_embedding_sine(x, mask=None, *, num_pos_feats=64, temperature=10000,
                            normalize=False, scale=None, out_dtype=jnp.float32):
    """Pallas equivalent of PositionEmbeddingSine.forward.

    x    : [B, C, H, W]   (only the shape is used, as in the PyTorch module)
    mask : [B, H, W] bool (True = padding) or None
    returns [B, 2*num_pos_feats, H, W] (NCHW, same as PyTorch), dtype out_dtype
    """
    if scale is not None and normalize is False:
        raise ValueError('normalize should be True if scale is passed')
    if scale is None:
        scale = 2 * math.pi

    B, _, H, W = x.shape
    HW = H * W
    F = num_pos_feats
    d_model = 2 * F
    eps = 1e-6

    # ---- cheap O(B*H*W) embed preparation (1/(2F) of the output bytes) ----
    if mask is None:
        # fast path: cumsum of ones is a closed-form arange; no cumsum, no
        # per-batch dependence (single shared (1, 2, HW) input).
        y = jnp.broadcast_to(jnp.arange(1, H + 1, dtype=jnp.float32)[:, None], (H, W))
        xe = jnp.broadcast_to(jnp.arange(1, W + 1, dtype=jnp.float32)[None, :], (H, W))
        if normalize:
            y = y * (float(scale) / (H + eps))
            xe = xe * (float(scale) / (W + eps))
        embeds = jnp.stack([y, xe], axis=0).reshape(1, 2, HW)
        shared_embeds = True
    else:
        not_mask = jnp.logical_not(mask).astype(jnp.float32)
        y = jnp.cumsum(not_mask, axis=1)
        xe = jnp.cumsum(not_mask, axis=2)
        if normalize:
            y = y / (y[:, -1:, :] + eps) * scale
            xe = xe / (xe[:, :, -1:] + eps) * scale
        embeds = jnp.stack([y, xe], axis=1).reshape(B, 2, HW)
        shared_embeds = False

    # ---- per-channel inverse frequency and phase, computed once at trace time ----
    c = np.arange(F, dtype=np.float64)
    dim_t = float(temperature) ** (2.0 * np.floor(c / 2.0) / float(F))
    inv_dim_t = (1.0 / dim_t).astype(np.float32)
    phase = ((c % 2) * (math.pi / 2.0)).astype(np.float32)
    tab = jnp.asarray(np.stack([inv_dim_t, phase], axis=1))          # (F, 2)

    # ---- grid / tiling ----
    T = _pick_tile(HW, d_model, B)
    n_t = pl.cdiv(HW, T)

    emb_index = (lambda b, t: (0, 0, t)) if shared_embeds else (lambda b, t: (b, 0, t))
    kernel = functools.partial(_sine_kernel, num_pos_feats=F)

    out_flat = pl.pallas_call(
        kernel,
        out_shape=jax.ShapeDtypeStruct((B, d_model, HW), out_dtype),
        grid_spec=pltpu.PrefetchScalarGridSpec(
            num_scalar_prefetch=0,
            grid=(B, n_t),
            in_specs=[
                pl.BlockSpec((F, 2), lambda b, t: (0, 0)),           # resident table
                pl.BlockSpec((1, 2, T), emb_index),                  # flat embeds tile
            ],
            out_specs=pl.BlockSpec((1, d_model, T), lambda b, t: (b, 0, t)),
        ),
        compiler_params=pltpu.CompilerParams(
            dimension_semantics=("parallel", "parallel"),
            vmem_limit_bytes=32 * 1024 * 1024),
    )(tab, embeds)

    # contiguous split of the last dim -- free reshape, keeps NCHW semantics
    return out_flat.reshape(B, d_model, H, W)


def _reference(x, mask=None, *, num_pos_feats=64, temperature=10000,
               normalize=False, scale=None):
    """Plain-JAX mirror of the PyTorch forward, for correctness checking."""
    if scale is None:
        scale = 2 * math.pi
    B, _, H, W = x.shape
    if mask is None:
        mask = jnp.zeros((B, H, W), dtype=bool)
    not_mask = (~mask).astype(jnp.float32)
    y_embed = jnp.cumsum(not_mask, axis=1)
    x_embed = jnp.cumsum(not_mask, axis=2)
    if normalize:
        eps = 1e-6
        y_embed = y_embed / (y_embed[:, -1:, :] + eps) * scale
        x_embed = x_embed / (x_embed[:, :, -1:] + eps) * scale
    dim_t = jnp.arange(num_pos_feats, dtype=jnp.float32)
    dim_t = temperature ** (2 * jnp.floor(dim_t / 2) / num_pos_feats)
    pos_x = x_embed[:, :, :, None] / dim_t
    pos_y = y_embed[:, :, :, None] / dim_t
    pos_x = jnp.stack((jnp.sin(pos_x[:, :, :, 0::2]),
                       jnp.cos(pos_x[:, :, :, 1::2])), axis=4).reshape(B, H, W, -1)
    pos_y = jnp.stack((jnp.sin(pos_y[:, :, :, 0::2]),
                       jnp.cos(pos_y[:, :, :, 1::2])), axis=4).reshape(B, H, W, -1)
    pos = jnp.concatenate((pos_y, pos_x), axis=3)
    return jnp.transpose(pos, (0, 3, 1, 2))


if __name__ == "__main__":
    key = jax.random.PRNGKey(0)
    kx, km = jax.random.split(key)

    B, C, H, W = 2, 4, 16, 16
    num_pos_feats = 64                      # -> d_model = 128

    x = jax.random.normal(kx, (B, C, H, W), dtype=jnp.float32)

    # case 1: no mask, no normalization (closed-form fast path)
    pos = position_embedding_sine(x, None, num_pos_feats=num_pos_feats)
    pos = jax.block_until_ready(pos)
    ref = _reference(x, None, num_pos_feats=num_pos_feats)
    assert pos.shape == (B, 2 * num_pos_feats, H, W)
    assert jnp.allclose(pos, ref, atol=1e-4, rtol=1e-4)

    # case 2: random padding mask (True = padding), normalize=True
    mask = jax.random.bernoulli(km, 0.3, (B, H, W))
    pos_m = position_embedding_sine(x, mask, num_pos_feats=num_pos_feats,
                                    normalize=True)
    pos_m = jax.block_until_ready(pos_m)
    ref_m = _reference(x, mask, num_pos_feats=num_pos_feats, normalize=True)
    assert jnp.allclose(pos_m, ref_m, atol=1e-4, rtol=1e-4)

    print("KERNEL_OK")
</pallas_src>

<mosaic_0001>
module attributes {stable_mosaic.version = 11 : i64} {
  func.func @_sine_kernel(%arg0: i32, %arg1: i32, %arg2: memref<64x2xf32, #tpu.memory_space<vmem>>, %arg3: memref<1x2x256xf32, #tpu.memory_space<vmem>>, %arg4: memref<1x128x256xf32, #tpu.memory_space<vmem>>) attributes {dimension_semantics = [#tpu.dimension_semantics<parallel>, #tpu.dimension_semantics<parallel>], iteration_bounds = array<i64: 2, 1>, scalar_prefetch = 0 : i64, scratch_operands = 0 : i64, tpu.core_type = #tpu.core_type<tc>, window_params = [{pipeline_mode = #tpu.pipeline_mode<synchronous>, transform_indices = @transform_0, window_bounds = array<i64: 64, 2>}, {transform_indices = @transform_1, window_bounds = array<i64: 1, 2, 256>}, {transform_indices = @transform_2, window_bounds = array<i64: 1, 128, 256>}]} {
    %c0 = arith.constant 0 : index
    %c0_0 = arith.constant 0 : index
    %0 = vector.load %arg2[%c0, %c0_0] : memref<64x2xf32, #tpu.memory_space<vmem>>, vector<64x1xf32>
    %c0_1 = arith.constant 0 : index
    %c1 = arith.constant 1 : index
    %1 = vector.load %arg2[%c0_1, %c1] : memref<64x2xf32, #tpu.memory_space<vmem>>, vector<64x1xf32>
    %c0_2 = arith.constant 0 : index
    %c0_3 = arith.constant 0 : index
    %c0_4 = arith.constant 0 : index
    %2 = vector.load %arg3[%c0_2, %c0_3, %c0_4] : memref<1x2x256xf32, #tpu.memory_space<vmem>>, vector<1x1x256xf32>
    %3 = vector.shape_cast %2 : vector<1x1x256xf32> to vector<1x256xf32>
    %c0_5 = arith.constant 0 : index
    %c1_6 = arith.constant 1 : index
    %c0_7 = arith.constant 0 : index
    %4 = vector.load %arg3[%c0_5, %c1_6, %c0_7] : memref<1x2x256xf32, #tpu.memory_space<vmem>>, vector<1x1x256xf32>
    %5 = vector.shape_cast %4 : vector<1x1x256xf32> to vector<1x256xf32>
    %6 = vector.broadcast %3 : vector<1x256xf32> to vector<64x256xf32>
    %7 = vector.broadcast %0 : vector<64x1xf32> to vector<64x256xf32>
    %8 = arith.mulf %6, %7 : vector<64x256xf32>
    %9 = vector.broadcast %1 : vector<64x1xf32> to vector<64x256xf32>
    %10 = arith.addf %8, %9 : vector<64x256xf32>
    %11 = math.sin %10 : vector<64x256xf32>
    %c0_8 = arith.constant 0 : index
    %c0_9 = arith.constant 0 : index
    %c0_10 = arith.constant 0 : index
    %12 = vector.load %arg4[%c0_8, %c0_9, %c0_10] : memref<1x128x256xf32, #tpu.memory_space<vmem>>, vector<1x64x256xf32>
    %13 = vector.shape_cast %12 : vector<1x64x256xf32> to vector<64x256xf32>
    %14 = vector.shape_cast %11 : vector<64x256xf32> to vector<1x64x256xf32>
    tpu.vector_store %arg4[%c0_8, %c0_9, %c0_10], %14 {strides = array<i32>} : memref<1x128x256xf32, #tpu.memory_space<vmem>>, vector<1x64x256xf32>,
    %15 = vector.broadcast %5 : vector<1x256xf32> to vector<64x256xf32>
    %16 = vector.broadcast %0 : vector<64x1xf32> to vector<64x256xf32>
    %17 = arith.mulf %15, %16 : vector<64x256xf32>
    %18 = vector.broadcast %1 : vector<64x1xf32> to vector<64x256xf32>
    %19 = arith.addf %17, %18 : vector<64x256xf32>
    %20 = math.sin %19 : vector<64x256xf32>
    %c0_11 = arith.constant 0 : index
    %c64 = arith.constant 64 : index
    %c0_12 = arith.constant 0 : index
    %21 = vector.load %arg4[%c0_11, %c64, %c0_12] : memref<1x128x256xf32, #tpu.memory_space<vmem>>, vector<1x64x256xf32>
    %22 = vector.shape_cast %21 : vector<1x64x256xf32> to vector<64x256xf32>
    %23 = vector.shape_cast %20 : vector<64x256xf32> to vector<1x64x256xf32>
    tpu.vector_store %arg4[%c0_11, %c64, %c0_12], %23 {strides = array<i32>} : memref<1x128x256xf32, #tpu.memory_space<vmem>>, vector<1x64x256xf32>,
    return
  }
  func.func @transform_0(%arg0: i32, %arg1: i32) -> (i32, i32) {
    %c0_i32 = arith.constant 0 : i32
    %c0_i32_0 = arith.constant 0 : i32
    %c0_i32_1 = arith.constant 0 : i32
    return %c0_i32, %c0_i32_0 : i32, i32
  }
  func.func @transform_1(%arg0: i32, %arg1: i32) -> (i32, i32, i32) {
    %c0_i32 = arith.constant 0 : i32
    %c0_i32_0 = arith.constant 0 : i32
    %c0_i32_1 = arith.constant 0 : i32
    return %c0_i32, %c0_i32_0, %arg1 : i32, i32, i32
  }
  func.func @transform_2(%arg0: i32, %arg1: i32) -> (i32, i32, i32) {
    %c0_i32 = arith.constant 0 : i32
    %c0_i32_0 = arith.constant 0 : i32
    return %arg0, %c0_i32, %arg1 : i32, i32, i32
  }
}

</mosaic_0001>

<llo_original>
// kernel: tpu_custom_call.1
$region0: #{tpu_custom_call.1}
  #allocation0 [shape = 'u32[]', space=smem, size = 0x4, offset = 0x4, fixed_abs, tag = 'smem constant byte address 0x4 - core index']
  #allocation1 [shape = 'u32[72,128]{1,0:T(1,128)}', space=vmem, size = 0x9000, scoped, tag = 'internal scratch']
  %s0 = inlined_call_operand.vmem [shape: f32[64,2], index: 0, kind: input, shape index: {}]
  %s1 = inlined_call_operand.vmem [shape: f32[1,2,256], index: 1, kind: input, shape index: {}]
  %s2 = inlined_call_operand.hbm [shape: f32[2,128,256], index: 2, kind: output, shape index: {}]
  %s3 = sld [smem:[#allocation0]]
  $region41: #{tpu_custom_call.1} parent=0
    _
  %s5 = ssub.s32 1, %s3
  %s6 = scalar_select 0, %s5, %s3
  $region1: #{tpu_custom_call.1} parent=0
    #allocation2 [shape = 'u8[262144]{0}', space=vmem, size = 0x40000, scoped, tag = 'output window, operand 0']
    #allocation3 [shape = 's32[2]{0}', space=sflag, size = 0x8, scoped, tag = 'scoped memory for tpu_custom_call.1']
    %7 = vsyncpa [#allocation3], 0
    %s8 = scalar_lea.sflag [#allocation3], 1
    %9 = vsyncpa %s8, 0
    loop: start=0, step=1, limit=4
    $region2: #{tpu_custom_call.1} parent=1 // loop_pre_header
      _
    $region3: #{tpu_custom_call.1} parent=1 // loop_header
      %s11 = sphi 0, %s15
      %p12 = scmp.ge.s32.totalorder %s11, 4
      %s18 = sphi 0, %s30
      %s19 = sphi 0, %s26
      %s20 = sphi 0, %s18
      %s21 = sphi 0, %s19
      %s22 = sphi 0, %s20
      %s23 = sphi 0, %s21
      %s31 = sphi 0, %s31
      %s33 = sphi 0, %s31
      %s34 = sphi 0, %s33
      %s48 = sphi 0, %s34
      %s54 = sphi 0, %s56
      %s57 = sphi 0, %s54
      %s58 = sphi 0, %s57
      %s74 = sphi 0, %s58
      %s82 = sphi 0, %s84
      %s85 = sphi 0, %s82
      %s86 = sphi 0, %s85
      %s102 = sphi 0, %s86
    $region4: #{tpu_custom_call.1} parent=1 // loop_header_branch
      %14 = sbr.rel (%p12) target = $region8
    $region5: #{tpu_custom_call.1} parent=1 // loop_body
      %s16 = ssub.s32 %s11, 1
      %s17 = ssub.s32 %s11, 2
      %s24 = sadd.s32 1, %s19
      %p25 = scmp.ge.s32.totalorder %s24, 1
      %s26 = scalar_select %p25, 0, %s24
      %s27 = sadd.s32 1, %s18
      %s28 = scalar_select %p25, %s27, %s18
      %p29 = scmp.ge.s32.totalorder %s28, 2
      %s30 = scalar_select %p29, 0, %s28
      %s32 = sadd.s32 %s31, 1
      %p35 = scmp.eq.s32.totalorder %s11, 1
      %p36 = scmp.ne.s32.totalorder %s31, %s33
      %p37 = scmp.eq.s32.totalorder %s11, 0
      %p38 = por %p36, %p37
      %p39 = scmp.ne.s32.totalorder %s31, %s33
      %p40 = scmp.eq.s32.totalorder %s16, 1
      %p41 = por %p39, %p40
      %p42 = scmp.ne.s32.totalorder %s33, %s34
      %p43 = scmp.eq.s32.totalorder %s16, 0
      %p44 = por %p42, %p43
      %p45 = scmp.ne.s32.totalorder %s33, %s34
      %p46 = scmp.eq.s32.totalorder %s17, 1
      %p47 = por %p45, %p46
      %p49 = scmp.ne.s32.totalorder %s34, %s48
      %p50 = scmp.eq.s32.totalorder %s17, 0
      %p51 = por %p49, %p50
      %s52 = ssub.s32 %s19, %s26
      %p53 = scmp.eq.s32.totalorder %s52, 0
      %s55 = sadd.s32 %s54, 1
      %s56 = scalar_select %p53, %s54, %s55
      %p59 = pneg %p53
      %p60 = scmp.eq.s32.totalorder %s11, 1
      %p61 = por %p59, %p60
      %p62 = scmp.ne.s32.totalorder %s54, %s57
      %p63 = scmp.eq.s32.totalorder %s11, 0
      %p64 = por %p62, %p63
      %p65 = scmp.ne.s32.totalorder %s54, %s57
      %p66 = scmp.eq.s32.totalorder %s16, 1
      %p67 = por %p65, %p66
      %p68 = scmp.ne.s32.totalorder %s57, %s58
      %p69 = scmp.eq.s32.totalorder %s16, 0
      %p70 = por %p68, %p69
      %p71 = scmp.ne.s32.totalorder %s57, %s58
      %p72 = scmp.eq.s32.totalorder %s17, 1
      %p73 = por %p71, %p72
      %p75 = scmp.ne.s32.totalorder %s58, %s74
      %p76 = scmp.eq.s32.totalorder %s17, 0
      %p77 = por %p75, %p76
      %s78 = ssub.s32 %s18, %s30
      %s79 = ssub.s32 %s19, %s26
      %s80 = sor.u32 %s78, %s79
      %p81 = scmp.eq.s32.totalorder %s80, 0
      %s83 = sadd.s32 %s82, 1
      %s84 = scalar_select %p81, %s82, %s83
      %p87 = pneg %p81
      %p88 = scmp.eq.s32.totalorder %s11, 1
      %p89 = por %p87, %p88
      %p90 = scmp.ne.s32.totalorder %s82, %s85
      %p91 = scmp.eq.s32.totalorder %s11, 0
      %p92 = por %p90, %p91
      %p93 = scmp.ne.s32.totalorder %s82, %s85
      %p94 = scmp.eq.s32.totalorder %s16, 1
      %p95 = por %p93, %p94
      %p96 = scmp.ne.s32.totalorder %s85, %s86
      %p97 = scmp.eq.s32.totalorder %s16, 0
      %p98 = por %p96, %p97
      %p99 = scmp.ne.s32.totalorder %s85, %s86
      %p100 = scmp.eq.s32.totalorder %s17, 1
      %p101 = por %p99, %p100
      %p103 = scmp.ne.s32.totalorder %s86, %s102
      %p104 = scmp.eq.s32.totalorder %s17, 0
      %p105 = por %p103, %p104
      %p106 = scmp.le.s32.totalorder 1, %s11
      %p107 = scmp.lt.s32.totalorder %s11, 3
      %p108 = pnand %p106, %p107
      %p109 = pneg %p108
      // Predicated region
      $region9: #{tpu_custom_call.1} parent=5 // pred_check
        _
      $region10: #{tpu_custom_call.1} parent=5 // pred_check_branch
        %111 = sbr.rel (%p108) target = $region12
      $region11: #{tpu_custom_call.1} parent=5 // pred_region
        %s112 = ssub.s32 %s11, 1
        // Predicated region
        $region13: #{tpu_custom_call.1} parent=11 // pred_check
          %p113 = pneg %p44
        $region14: #{tpu_custom_call.1} parent=11 // pred_check_branch
          %115 = sbr.rel (%p113) target = $region16
        $region15: #{tpu_custom_call.1} parent=11 // pred_region
          _
        $region16: #{tpu_custom_call.1} parent=11 // pred_fallthru
          _
        // Predicated region
        $region17: #{tpu_custom_call.1} parent=11 // pred_check
          %p116 = pneg %p70
        $region18: #{tpu_custom_call.1} parent=11 // pred_check_branch
          %118 = sbr.rel (%p116) target = $region20
        $region19: #{tpu_custom_call.1} parent=11 // pred_region
          %s119 = smul.u32 2, %s21
          %p120 = scmp.lt.s32.totalorder %s119, 1
          %s121 = scalar_select %p120, %s119, 1
          %s122 = smul.addr %s121, 2
          %s123 = scalar_lea.vmem %s1, %s122
          %s124 = smul.u32 2, %s21
        $region20: #{tpu_custom_call.1} parent=11 // pred_fallthru
          _
      $region12: #{tpu_custom_call.1} parent=5 // pred_fallthru
        _
      %p125 = scmp.lt.s32.totalorder %s11, 2
      // Predicated region
      $region21: #{tpu_custom_call.1} parent=5 // pred_check
        %p126 = pneg %p125
      $region22: #{tpu_custom_call.1} parent=5 // pred_check_branch
        %128 = sbr.rel (%p126) target = $region24
      $region23: #{tpu_custom_call.1} parent=5 // pred_region
        _
      $region24: #{tpu_custom_call.1} parent=5 // pred_fallthru
        _
      %p129 = scmp.le.s32.totalorder 1, %s11
      %p130 = scmp.lt.s32.totalorder %s11, 3
      %p131 = pnand %p129, %p130
      %p132 = pneg %p131
      // Predicated region
      $region25: #{tpu_custom_call.1} parent=5 // pred_check
        _
      $region26: #{tpu_custom_call.1} parent=5 // pred_check_branch
        %134 = sbr.rel (%p131) target = $region28
      $region27: #{tpu_custom_call.1} parent=5 // pred_region
        %s135 = ssub.s32 %s11, 1
        %p136 = pneg %p44
        %p137 = pneg %p41
        %s138 = smul.u32 2, %s21
        %p139 = scmp.lt.s32.totalorder %s138, 1
        %s140 = scalar_select %p139, %s138, 1
        %s141 = smul.addr %s140, 2
        %s142 = scalar_lea.vmem %s1, %s141
        %p143 = pneg %p70
        %p144 = pneg %p67
        %p145 = pneg %p98
        %p146 = pneg %p95
        %s147 = sand.u32 %s85, 1
        %s148 = scalar_lea.sflag [#allocation3], %s147
        %s149 = sand.u32 %s85, 1
        %s150 = smul.addr %s149, 256
        %s151 = scalar_lea.vmem [#allocation2], %s150
        %s152 = smul.u32 2, %s21
        %p153 = scmp.lt.s32.totalorder %s152, 1
        %s154 = scalar_select %p153, %s152, 1
        %s155 = smul.addr %s154, 2
        %s156 = scalar_lea.vmem %s1, %s155
        %s157 = smul.u32 2, %s21
        %s158 = smul.u32 2, %s21
        %v159 = vld [vmem:[%s0] sm:$0xff]
        %v160 = vld [vmem:[%s0 + $0x8] sm:$0xff]
        %v161 = vld [vmem:[%s0 + $0x10] sm:$0xff]
        %v162 = vld [vmem:[%s0 + $0x18] sm:$0xff]
        %v163 = vld [vmem:[%s0 + $0x20] sm:$0xff]
        %v164 = vld [vmem:[%s0 + $0x28] sm:$0xff]
        %v165 = vld [vmem:[%s0 + $0x30] sm:$0xff]
        %v166 = vld [vmem:[%s0 + $0x38] sm:$0xff]
        %v167 = vld [vmem:[%s156] ss:$2 sm:$0x3]
        %s168 = scalar_lea.vmem %s156, 1
        %v169 = vld [vmem:[%s168] ss:$2 sm:$0x3]
        %v171 = vperm.slane %v167, 0
        %v172 = vperm.slane %v167, 1
        %176 = vset.pattern.permute.xlu0 0
        %177 = vperm.xlu0 %176, %v159
        %v178 = vpop.permute.xlu0 %177
        %181 = vset.pattern.permute.xlu0 0
        %182 = vperm.xlu0 %181, %v160
        %v183 = vpop.permute.xlu0 %182
        %186 = vset.pattern.permute.xlu0 0
        %187 = vperm.xlu0 %186, %v161
        %v188 = vpop.permute.xlu0 %187
        %191 = vset.pattern.permute.xlu0 0
        %192 = vperm.xlu0 %191, %v162
        %v193 = vpop.permute.xlu0 %192
        %196 = vset.pattern.permute.xlu0 0
        %197 = vperm.xlu0 %196, %v163
        %v198 = vpop.permute.xlu0 %197
        %201 = vset.pattern.permute.xlu0 0
        %202 = vperm.xlu0 %201, %v164
        %v203 = vpop.permute.xlu0 %202
        %206 = vset.pattern.permute.xlu0 0
        %207 = vperm.xlu0 %206, %v165
        %v208 = vpop.permute.xlu0 %207
        %211 = vset.pattern.permute.xlu0 0
        %212 = vperm.xlu0 %211, %v166
        %v213 = vpop.permute.xlu0 %212
        %v215 = vmul.f32 %v171, %v178
        %v216 = vmul.f32 %v172, %v178
        %v217 = vmul.f32 %v171, %v183
        %v218 = vmul.f32 %v172, %v183
        %v219 = vmul.f32 %v171, %v188
        %v220 = vmul.f32 %v172, %v188
        %v221 = vmul.f32 %v171, %v193
        %v222 = vmul.f32 %v172, %v193
        %v223 = vmul.f32 %v171, %v198
        %v224 = vmul.f32 %v172, %v198
        %v225 = vmul.f32 %v171, %v203
        %v226 = vmul.f32 %v172, %v203
        %v227 = vmul.f32 %v171, %v208
        %v228 = vmul.f32 %v172, %v208
        %v229 = vmul.f32 %v171, %v213
        %v230 = vmul.f32 %v172, %v213
        %231 = vset.pattern.permute.xlu0 1
        %232 = vperm.xlu0 %231, %v159
        %v233 = vpop.permute.xlu0 %232
        %235 = vset.pattern.permute.xlu0 1
        %236 = vperm.xlu0 %235, %v160
        %v237 = vpop.permute.xlu0 %236
        %239 = vset.pattern.permute.xlu0 1
        %240 = vperm.xlu0 %239, %v161
        %v241 = vpop.permute.xlu0 %240
        %243 = vset.pattern.permute.xlu0 1
        %244 = vperm.xlu0 %243, %v162
        %v245 = vpop.permute.xlu0 %244
        %247 = vset.pattern.permute.xlu0 1
        %248 = vperm.xlu0 %247, %v163
        %v249 = vpop.permute.xlu0 %248
        %251 = vset.pattern.permute.xlu0 1
        %252 = vperm.xlu0 %251, %v164
        %v253 = vpop.permute.xlu0 %252
        %255 = vset.pattern.permute.xlu0 1
        %256 = vperm.xlu0 %255, %v165
        %v257 = vpop.permute.xlu0 %256
        %259 = vset.pattern.permute.xlu0 1
        %260 = vperm.xlu0 %259, %v166
        %v261 = vpop.permute.xlu0 %260
        %v263 = vadd.f32 %v215, %v233
        %v264 = vadd.f32 %v216, %v233
        %v265 = vadd.f32 %v217, %v237
        %v266 = vadd.f32 %v218, %v237
        %v267 = vadd.f32 %v219, %v241
        %v268 = vadd.f32 %v220, %v241
        %v269 = vadd.f32 %v221, %v245
        %v270 = vadd.f32 %v222, %v245
        %v271 = vadd.f32 %v223, %v249
        %v272 = vadd.f32 %v224, %v249
        %v273 = vadd.f32 %v225, %v253
        %v274 = vadd.f32 %v226, %v253
        %v275 = vadd.f32 %v227, %v257
        %v276 = vadd.f32 %v228, %v257
        %v277 = vadd.f32 %v229, %v261
        %v278 = vadd.f32 %v230, %v261
        %v279 = vand.u32 2147483647, %v263
        %vm280 = vcmp.le.f32.partialorder %v279, 0.7853982
        %vm281 = vcmp.lt.s32.totalorder %v263, 0
        %v282 = vand.u32 %v263, 2139095040
        %v283 = vshrl.u32 %v282, 23
        %v284 = vsub.s32 %v283, 127
        %v285 = vand.u32 2147483647, %v263
        %v286 = vand.u32 %v285, 8388607
        %v287 = vor.u32 %v286, 8388608
        %v288 = vsub.s32 0, %v287
        %v289 = vadd.s32 %v284, 1
        %vm290 = vcmp.gt.s32.totalorder %v289, 0
        %v291 = vsel %vm290, %v289, 0
        %v292 = vshrl.u32 %v291, 5
        %v293 = vand.u32 %v291, 31
        %v294 = vsub.s32 32, %v293
        %v295 = vshrl.u32 683565275, %v294
        %v296 = vshll.u32 683565275, %v293
        %v297 = vshrl.u32 2475754826, %v294
        %v298 = vor.u32 %v296, %v297
        %v299 = vshll.u32 2475754826, %v293
        %v300 = vshrl.u32 2131351028, %v294
        %v301 = vor.u32 %v299, %v300
        %v302 = vshll.u32 2131351028, %v293
        %v303 = vshrl.u32 2102212464, %v294
        %v304 = vor.u32 %v302, %v303
        %v305 = vshll.u32 2102212464, %v293
        %v306 = vshrl.u32 920167782, %v294
        %v307 = vor.u32 %v305, %v306
        %v308 = vshll.u32 920167782, %v293
        %v309 = vshrl.u32 1326507024, %v294
        %v310 = vor.u32 %v308, %v309
        %vm311 = vcmp.lt.s32.totalorder %v292, 1
        %vm312 = vcmp.lt.s32.totalorder %v292, 2
        %vm313 = vcmp.lt.s32.totalorder %v292, 3
        %vm314 = vcmp.lt.s32.totalorder %v292, 4
        %v315 = vsel %vm311, %v295, %v298
        %v316 = vsel %vm314, %v304, 2102212464
        %v317 = vsel %vm313, %v301, %v316
        %v318 = vsel %vm312, %v315, %v317
        %v319 = vsel %vm311, %v298, %v301
        %v320 = vsel %vm314, %v307, 920167782
        %v321 = vsel %vm313, %v304, %v320
        %v322 = vsel %vm312, %v319, %v321
        %v323 = vsel %vm311, %v301, %v304
        %v324 = vsel %vm314, %v310, 1326507024
        %v325 = vsel %vm313, %v307, %v324
        %v326 = vsel %vm312, %v323, %v325
        %v327 = vshll.u32 %v287, 8
        %v328 = vand.u32 %v327, 65535
        %v329 = vshrl.u32 %v327, 16
        %v330 = vand.u32 %v326, 65535
        %v331 = vshrl.u32 %v326, 16
        %v332 = vmul.u32 %v328, %v330
        %v333 = vmul.u32 %v328, %v331
        %v334 = vmul.u32 %v329, %v330
        %v335 = vmul.u32 %v329, %v331
        %v336 = vshll.u32 %v333, 16
        %v337 = vshrl.u32 %v333, 16
        %v338 = vshll.u32 %v334, 16
        %v339 = vshrl.u32 %v334, 16
        %vm340 = vc.u32 %v332, %v336
        %v341 = vsel %vm340, 1, 0
        %v342 = vadd.s32 %v332, %v336
        %v343 = vadd.s32 %v335, %v341
        %vm344 = vc.u32 %v342, %v338
        %v345 = vsel %vm344, 1, 0
        %v346 = vadd.s32 %v342, %v338
        %v347 = vadd.s32 %v343, %v345
        %v348 = vadd.s32 %v347, %v337
        %v349 = vadd.s32 %v348, %v339
        %v350 = vand.u32 %v327, 65535
        %v351 = vshrl.u32 %v327, 16
        %v352 = vand.u32 %v322, 65535
        %v353 = vshrl.u32 %v322, 16
        %v354 = vmul.u32 %v350, %v352
        %v355 = vmul.u32 %v350, %v353
        %v356 = vmul.u32 %v351, %v352
        %v357 = vmul.u32 %v351, %v353
        %v358 = vshll.u32 %v355, 16
        %v359 = vshrl.u32 %v355, 16
        %v360 = vshll.u32 %v356, 16
        %v361 = vshrl.u32 %v356, 16
        %vm362 = vc.u32 %v354, %v358
        %v363 = vsel %vm362, 1, 0
        %v364 = vadd.s32 %v354, %v358
        %v365 = vadd.s32 %v357, %v363
        %vm366 = vc.u32 %v364, %v360
        %v367 = vsel %vm366, 1, 0
        %v368 = vadd.s32 %v364, %v360
        %v369 = vadd.s32 %v365, %v367
        %v370 = vadd.s32 %v369, %v359
        %v371 = vadd.s32 %v370, %v361
        %v372 = vmul.u32 %v327, %v318
        %v373 = vadd.s32 %v349, %v368
        %vm374 = vc.u32 %v349, %v368
        %v375 = vadd.s32 %v371, 1
        %v376 = vsel %vm374, %v375, %v371
        %v377 = vadd.s32 %v372, %v376
        %v378 = vadd.s32 %v377, 536870912
        %v379 = vshrl.u32 %v378, 30
        %v380 = vshll.u32 %v379, 30
        %v381 = vsub.s32 %v377, %v380
        %vm382 = vcmp.lt.s32.totalorder %v381, 0
        %v383 = vsub.s32 0, %v381
        %v384 = vsel %vm382, %v383, %v381
        %v385 = vclz %v384
        %v386 = vsub.s32 %v385, 2
        %vm387 = vcmp.gt.s32.totalorder 0, %v386
        %v388 = vsel %vm387, 0, %v386
        %v389 = vsub.s32 32, %v388
        %v390 = vshll.u32 %v381, %v388
        %v391 = vshrl.u32 %v373, %v389
        %v392 = vor.u32 %v390, %v391
        %v393 = vsub.s32 4294967266, %v388
        %v394 = vadd.s32 %v393, 127
        %v395 = vshll.u32 %v394, 23
        %v396 = vor.u32 4788187, %v395
        %v397 = vand.u32 2147483647, %v396
        %v399 = vcvt.s32.f32 %v392
        %v400 = vmul.f32 %v399, %v397
        %v401 = vxor.u32 %v400, 2147483648
        %v402 = vsel %vm281, %v401, %v400
        %v403 = vsub.s32 4, %v379
        %v404 = vsel %vm281, %v403, %v379
        %v405 = vsel %vm280, %v263, %v402
        %v406 = vsel %vm280, 0, %v404
        %v407 = vmul.f32 %v405, %v405
        %v408 = vmul.f32 %v407, -0.001358992
        %v409 = vadd.f32 %v408, 0.041655596
        %v410 = vmul.f32 %v407, %v409
        %v411 = vadd.f32 %v410, -0.4999988
        %v412 = vmul.f32 %v407, %v411
        %v413 = vadd.f32 1.0, %v412
        %v414 = vmul.f32 %v405, %v405
        %v415 = vmul.f32 %v414, -0.00019511016
        %v416 = vadd.f32 %v415, 0.008332121
        %v417 = vmul.f32 %v414, %v416
        %v418 = vadd.f32 %v417, -0.16666654
        %v419 = vmul.f32 %v414, %v418
        %v420 = vadd.f32 %v419, 1.0
        %v421 = vmul.f32 %v420, %v405
        %vm422 = vweird.f32 %v263
        %v423 = vadd.s32 %v406, 3
        %v424 = vand.u32 %v423, 3
        %vm425 = vcmp.lt.s32.totalorder %v424, 2
        %vm426 = vcmp.eq.s32.totalorder %v424, 0
        %v427 = vxor.u32 %v421, 2147483648
        %v428 = vsel %vm426, %v413, %v427
        %vm429 = vcmp.eq.s32.totalorder %v424, 2
        %v430 = vxor.u32 %v413, 2147483648
        %v431 = vsel %vm429, %v430, %v421
        %v432 = vsel %vm425, %v428, %v431
        %v433 = vsel %vm422, nan, %v432
        %v434 = vand.u32 2147483647, %v264
        %vm435 = vcmp.le.f32.partialorder %v434, 0.7853982
        %vm436 = vcmp.lt.s32.totalorder %v264, 0
        %v437 = vand.u32 %v264, 2139095040
        %v438 = vshrl.u32 %v437, 23
        %v439 = vsub.s32 %v438, 127
        %v440 = vand.u32 2147483647, %v264
        %v441 = vand.u32 %v440, 8388607
        %v442 = vor.u32 %v441, 8388608
        %v443 = vsub.s32 0, %v442
        %v444 = vadd.s32 %v439, 1
        %vm445 = vcmp.gt.s32.totalorder %v444, 0
        %v446 = vsel %vm445, %v444, 0
        %v447 = vshrl.u32 %v446, 5
        %v448 = vand.u32 %v446, 31
        %v449 = vsub.s32 32, %v448
        %v450 = vshrl.u32 683565275, %v449
        %v451 = vshll.u32 683565275, %v448
        %v452 = vshrl.u32 2475754826, %v449
        %v453 = vor.u32 %v451, %v452
        %v454 = vshll.u32 2475754826, %v448
        %v455 = vshrl.u32 2131351028, %v449
        %v456 = vor.u32 %v454, %v455
        %v457 = vshll.u32 2131351028, %v448
        %v458 = vshrl.u32 2102212464, %v449
        %v459 = vor.u32 %v457, %v458
        %v460 = vshll.u32 2102212464, %v448
        %v461 = vshrl.u32 920167782, %v449
        %v462 = vor.u32 %v460, %v461
        %v463 = vshll.u32 920167782, %v448
        %v464 = vshrl.u32 1326507024, %v449
        %v465 = vor.u32 %v463, %v464
        %vm466 = vcmp.lt.s32.totalorder %v447, 1
        %vm467 = vcmp.lt.s32.totalorder %v447, 2
        %vm468 = vcmp.lt.s32.totalorder %v447, 3
        %vm469 = vcmp.lt.s32.totalorder %v447, 4
        %v470 = vsel %vm466, %v450, %v453
        %v471 = vsel %vm469, %v459, 2102212464
        %v472 = vsel %vm468, %v456, %v471
        %v473 = vsel %vm467, %v470, %v472
        %v474 = vsel %vm466, %v453, %v456
        %v475 = vsel %vm469, %v462, 920167782
        %v476 = vsel %vm468, %v459, %v475
        %v477 = vsel %vm467, %v474, %v476
        %v478 = vsel %vm466, %v456, %v459
        %v479 = vsel %vm469, %v465, 1326507024
        %v480 = vsel %vm468, %v462, %v479
        %v481 = vsel %vm467, %v478, %v480
        %v482 = vshll.u32 %v442, 8
        %v483 = vand.u32 %v482, 65535
        %v484 = vshrl.u32 %v482, 16
        %v485 = vand.u32 %v481, 65535
        %v486 = vshrl.u32 %v481, 16
        %v487 = vmul.u32 %v483, %v485
        %v488 = vmul.u32 %v483, %v486
        %v489 = vmul.u32 %v484, %v485
        %v490 = vmul.u32 %v484, %v486
        %v491 = vshll.u32 %v488, 16
        %v492 = vshrl.u32 %v488, 16
        %v493 = vshll.u32 %v489, 16
        %v494 = vshrl.u32 %v489, 16
        %vm495 = vc.u32 %v487, %v491
        %v496 = vsel %vm495, 1, 0
        %v497 = vadd.s32 %v487, %v491
        %v498 = vadd.s32 %v490, %v496
        %vm499 = vc.u32 %v497, %v493
        %v500 = vsel %vm499, 1, 0
        %v501 = vadd.s32 %v497, %v493
        %v502 = vadd.s32 %v498, %v500
        %v503 = vadd.s32 %v502, %v492
        %v504 = vadd.s32 %v503, %v494
        %v505 = vand.u32 %v482, 65535
        %v506 = vshrl.u32 %v482, 16
        %v507 = vand.u32 %v477, 65535
        %v508 = vshrl.u32 %v477, 16
        %v509 = vmul.u32 %v505, %v507
        %v510 = vmul.u32 %v505, %v508
        %v511 = vmul.u32 %v506, %v507
        %v512 = vmul.u32 %v506, %v508
        %v513 = vshll.u32 %v510, 16
        %v514 = vshrl.u32 %v510, 16
        %v515 = vshll.u32 %v511, 16
        %v516 = vshrl.u32 %v511, 16
        %vm517 = vc.u32 %v509, %v513
        %v518 = vsel %vm517, 1, 0
        %v519 = vadd.s32 %v509, %v513
        %v520 = vadd.s32 %v512, %v518
        %vm521 = vc.u32 %v519, %v515
        %v522 = vsel %vm521, 1, 0
        %v523 = vadd.s32 %v519, %v515
        %v524 = vadd.s32 %v520, %v522
        %v525 = vadd.s32 %v524, %v514
        %v526 = vadd.s32 %v525, %v516
        %v527 = vmul.u32 %v482, %v473
        %v528 = vadd.s32 %v504, %v523
        %vm529 = vc.u32 %v504, %v523
        %v530 = vadd.s32 %v526, 1
        %v531 = vsel %vm529, %v530, %v526
        %v532 = vadd.s32 %v527, %v531
        %v533 = vadd.s32 %v532, 536870912
        %v534 = vshrl.u32 %v533, 30
        %v535 = vshll.u32 %v534, 30
        %v536 = vsub.s32 %v532, %v535
        %vm537 = vcmp.lt.s32.totalorder %v536, 0
        %v538 = vsub.s32 0, %v536
        %v539 = vsel %vm537, %v538, %v536
        %v540 = vclz %v539
        %v541 = vsub.s32 %v540, 2
        %vm542 = vcmp.gt.s32.totalorder 0, %v541
        %v543 = vsel %vm542, 0, %v541
        %v544 = vsub.s32 32, %v543
        %v545 = vshll.u32 %v536, %v543
        %v546 = vshrl.u32 %v528, %v544
        %v547 = vor.u32 %v545, %v546
        %v548 = vsub.s32 4294967266, %v543
        %v549 = vadd.s32 %v548, 127
        %v550 = vshll.u32 %v549, 23
        %v551 = vor.u32 4788187, %v550
        %v552 = vand.u32 2147483647, %v551
        %v554 = vcvt.s32.f32 %v547
        %v555 = vmul.f32 %v554, %v552
        %v556 = vxor.u32 %v555, 2147483648
        %v557 = vsel %vm436, %v556, %v555
        %v558 = vsub.s32 4, %v534
        %v559 = vsel %vm436, %v558, %v534
        %v560 = vsel %vm435, %v264, %v557
        %v561 = vsel %vm435, 0, %v559
        %v562 = vmul.f32 %v560, %v560
        %v563 = vmul.f32 %v562, -0.001358992
        %v564 = vadd.f32 %v563, 0.041655596
        %v565 = vmul.f32 %v562, %v564
        %v566 = vadd.f32 %v565, -0.4999988
        %v567 = vmul.f32 %v562, %v566
        %v568 = vadd.f32 1.0, %v567
        %v569 = vmul.f32 %v560, %v560
        %v570 = vmul.f32 %v569, -0.00019511016
        %v571 = vadd.f32 %v570, 0.008332121
        %v572 = vmul.f32 %v569, %v571
        %v573 = vadd.f32 %v572, -0.16666654
        %v574 = vmul.f32 %v569, %v573
        %v575 = vadd.f32 %v574, 1.0
        %v576 = vmul.f32 %v575, %v560
        %vm577 = vweird.f32 %v264
        %v578 = vadd.s32 %v561, 3
        %v579 = vand.u32 %v578, 3
        %vm580 = vcmp.lt.s32.totalorder %v579, 2
        %vm581 = vcmp.eq.s32.totalorder %v579, 0
        %v582 = vxor.u32 %v576, 2147483648
        %v583 = vsel %vm581, %v568, %v582
        %vm584 = vcmp.eq.s32.totalorder %v579, 2
        %v585 = vxor.u32 %v568, 2147483648
        %v586 = vsel %vm584, %v585, %v576
        %v587 = vsel %vm580, %v583, %v586
        %v588 = vsel %vm577, nan, %v587
        %v589 = vand.u32 2147483647, %v265
        %vm590 = vcmp.le.f32.partialorder %v589, 0.7853982
        %vm591 = vcmp.lt.s32.totalorder %v265, 0
        %v592 = vand.u32 %v265, 2139095040
        %v593 = vshrl.u32 %v592, 23
        %v594 = vsub.s32 %v593, 127
        %v595 = vand.u32 2147483647, %v265
        %v596 = vand.u32 %v595, 8388607
        %v597 = vor.u32 %v596, 8388608
        %v598 = vsub.s32 0, %v597
        %v599 = vadd.s32 %v594, 1
        %vm600 = vcmp.gt.s32.totalorder %v599, 0
        %v601 = vsel %vm600, %v599, 0
        %v602 = vshrl.u32 %v601, 5
        %v603 = vand.u32 %v601, 31
        %v604 = vsub.s32 32, %v603
        %v605 = vshrl.u32 683565275, %v604
        %v606 = vshll.u32 683565275, %v603
        %v607 = vshrl.u32 2475754826, %v604
        %v608 = vor.u32 %v606, %v607
        %v609 = vshll.u32 2475754826, %v603
        %v610 = vshrl.u32 2131351028, %v604
        %v611 = vor.u32 %v609, %v610
        %v612 = vshll.u32 2131351028, %v603
        %v613 = vshrl.u32 2102212464, %v604
        %v614 = vor.u32 %v612, %v613
        %v615 = vshll.u32 2102212464, %v603
        %v616 = vshrl.u32 920167782, %v604
        %v617 = vor.u32 %v615, %v616
        %v618 = vshll.u32 920167782, %v603
        %v619 = vshrl.u32 1326507024, %v604
        %v620 = vor.u32 %v618, %v619
        %vm621 = vcmp.lt.s32.totalorder %v602, 1
        %vm622 = vcmp.lt.s32.totalorder %v602, 2
        %vm623 = vcmp.lt.s32.totalorder %v602, 3
        %vm624 = vcmp.lt.s32.totalorder %v602, 4
        %v625 = vsel %vm621, %v605, %v608
        %v626 = vsel %vm624, %v614, 2102212464
        %v627 = vsel %vm623, %v611, %v626
        %v628 = vsel %vm622, %v625, %v627
        %v629 = vsel %vm621, %v608, %v611
        %v630 = vsel %vm624, %v617, 920167782
        %v631 = vsel %vm623, %v614, %v630
        %v632 = vsel %vm622, %v629, %v631
        %v633 = vsel %vm621, %v611, %v614
        %v634 = vsel %vm624, %v620, 1326507024
        %v635 = vsel %vm623, %v617, %v634
        %v636 = vsel %vm622, %v633, %v635
        %v637 = vshll.u32 %v597, 8
        %v638 = vand.u32 %v637, 65535
        %v639 = vshrl.u32 %v637, 16
        %v640 = vand.u32 %v636, 65535
        %v641 = vshrl.u32 %v636, 16
        %v642 = vmul.u32 %v638, %v640
        %v643 = vmul.u32 %v638, %v641
        %v644 = vmul.u32 %v639, %v640
        %v645 = vmul.u32 %v639, %v641
        %v646 = vshll.u32 %v643, 16
        %v647 = vshrl.u32 %v643, 16
        %v648 = vshll.u32 %v644, 16
        %v649 = vshrl.u32 %v644, 16
        %vm650 = vc.u32 %v642, %v646
        %v651 = vsel %vm650, 1, 0
        %v652 = vadd.s32 %v642, %v646
        %v653 = vadd.s32 %v645, %v651
        %vm654 = vc.u32 %v652, %v648
        %v655 = vsel %vm654, 1, 0
        %v656 = vadd.s32 %v652, %v648
        %v657 = vadd.s32 %v653, %v655
        %v658 = vadd.s32 %v657, %v647
        %v659 = vadd.s32 %v658, %v649
        %v660 = vand.u32 %v637, 65535
        %v661 = vshrl.u32 %v637, 16
        %v662 = vand.u32 %v632, 65535
        %v663 = vshrl.u32 %v632, 16
        %v664 = vmul.u32 %v660, %v662
        %v665 = vmul.u32 %v660, %v663
        %v666 = vmul.u32 %v661, %v662
        %v667 = vmul.u32 %v661, %v663
        %v668 = vshll.u32 %v665, 16
        %v669 = vshrl.u32 %v665, 16
        %v670 = vshll.u32 %v666, 16
        %v671 = vshrl.u32 %v666, 16
        %vm672 = vc.u32 %v664, %v668
        %v673 = vsel %vm672, 1, 0
        %v674 = vadd.s32 %v664, %v668
        %v675 = vadd.s32 %v667, %v673
        %vm676 = vc.u32 %v674, %v670
        %v677 = vsel %vm676, 1, 0
        %v678 = vadd.s32 %v674, %v670
        %v679 = vadd.s32 %v675, %v677
        %v680 = vadd.s32 %v679, %v669
        %v681 = vadd.s32 %v680, %v671
        %v682 = vmul.u32 %v637, %v628
        %v683 = vadd.s32 %v659, %v678
        %vm684 = vc.u32 %v659, %v678
        %v685 = vadd.s32 %v681, 1
        %v686 = vsel %vm684, %v685, %v681
        %v687 = vadd.s32 %v682, %v686
        %v688 = vadd.s32 %v687, 536870912
        %v689 = vshrl.u32 %v688, 30
        %v690 = vshll.u32 %v689, 30
        %v691 = vsub.s32 %v687, %v690
        %vm692 = vcmp.lt.s32.totalorder %v691, 0
        %v693 = vsub.s32 0, %v691
        %v694 = vsel %vm692, %v693, %v691
        %v695 = vclz %v694
        %v696 = vsub.s32 %v695, 2
        %vm697 = vcmp.gt.s32.totalorder 0, %v696
        %v698 = vsel %vm697, 0, %v696
        %v699 = vsub.s32 32, %v698
        %v700 = vshll.u32 %v691, %v698
        %v701 = vshrl.u32 %v683, %v699
        %v702 = vor.u32 %v700, %v701
        %v703 = vsub.s32 4294967266, %v698
        %v704 = vadd.s32 %v703, 127
        %v705 = vshll.u32 %v704, 23
        %v706 = vor.u32 4788187, %v705
        %v707 = vand.u32 2147483647, %v706
        %v709 = vcvt.s32.f32 %v702
        %v710 = vmul.f32 %v709, %v707
        %v711 = vxor.u32 %v710, 2147483648
        %v712 = vsel %vm591, %v711, %v710
        %v713 = vsub.s32 4, %v689
        %v714 = vsel %vm591, %v713, %v689
        %v715 = vsel %vm590, %v265, %v712
        %v716 = vsel %vm590, 0, %v714
        %v717 = vmul.f32 %v715, %v715
        %v718 = vmul.f32 %v717, -0.001358992
        %v719 = vadd.f32 %v718, 0.041655596
        %v720 = vmul.f32 %v717, %v719
        %v721 = vadd.f32 %v720, -0.4999988
        %v722 = vmul.f32 %v717, %v721
        %v723 = vadd.f32 1.0, %v722
        %v724 = vmul.f32 %v715, %v715
        %v725 = vmul.f32 %v724, -0.00019511016
        %v726 = vadd.f32 %v725, 0.008332121
        %v727 = vmul.f32 %v724, %v726
        %v728 = vadd.f32 %v727, -0.16666654
        %v729 = vmul.f32 %v724, %v728
        %v730 = vadd.f32 %v729, 1.0
        %v731 = vmul.f32 %v730, %v715
        %vm732 = vweird.f32 %v265
        %v733 = vadd.s32 %v716, 3
        %v734 = vand.u32 %v733, 3
        %vm735 = vcmp.lt.s32.totalorder %v734, 2
        %vm736 = vcmp.eq.s32.totalorder %v734, 0
        %v737 = vxor.u32 %v731, 2147483648
        %v738 = vsel %vm736, %v723, %v737
        %vm739 = vcmp.eq.s32.totalorder %v734, 2
        %v740 = vxor.u32 %v723, 2147483648
        %v741 = vsel %vm739, %v740, %v731
        %v742 = vsel %vm735, %v738, %v741
        %v743 = vsel %vm732, nan, %v742
        %v744 = vand.u32 2147483647, %v266
        %vm745 = vcmp.le.f32.partialorder %v744, 0.7853982
        %vm746 = vcmp.lt.s32.totalorder %v266, 0
        %v747 = vand.u32 %v266, 2139095040
        %v748 = vshrl.u32 %v747, 23
        %v749 = vsub.s32 %v748, 127
        %v750 = vand.u32 2147483647, %v266
        %v751 = vand.u32 %v750, 8388607
        %v752 = vor.u32 %v751, 8388608
        %v753 = vsub.s32 0, %v752
        %v754 = vadd.s32 %v749, 1
        %vm755 = vcmp.gt.s32.totalorder %v754, 0
        %v756 = vsel %vm755, %v754, 0
        %v757 = vshrl.u32 %v756, 5
        %v758 = vand.u32 %v756, 31
        %v759 = vsub.s32 32, %v758
        %v760 = vshrl.u32 683565275, %v759
        %v761 = vshll.u32 683565275, %v758
        %v762 = vshrl.u32 2475754826, %v759
        %v763 = vor.u32 %v761, %v762
        %v764 = vshll.u32 2475754826, %v758
        %v765 = vshrl.u32 2131351028, %v759
        %v766 = vor.u32 %v764, %v765
        %v767 = vshll.u32 2131351028, %v758
        %v768 = vshrl.u32 2102212464, %v759
        %v769 = vor.u32 %v767, %v768
        %v770 = vshll.u32 2102212464, %v758
        %v771 = vshrl.u32 920167782, %v759
        %v772 = vor.u32 %v770, %v771
        %v773 = vshll.u32 920167782, %v758
        %v774 = vshrl.u32 1326507024, %v759
        %v775 = vor.u32 %v773, %v774
        %vm776 = vcmp.lt.s32.totalorder %v757, 1
        %vm777 = vcmp.lt.s32.totalorder %v757, 2
        %vm778 = vcmp.lt.s32.totalorder %v757, 3
        %vm779 = vcmp.lt.s32.totalorder %v757, 4
        %v780 = vsel %vm776, %v760, %v763
        %v781 = vsel %vm779, %v769, 2102212464
        %v782 = vsel %vm778, %v766, %v781
        %v783 = vsel %vm777, %v780, %v782
        %v784 = vsel %vm776, %v763, %v766
        %v785 = vsel %vm779, %v772, 920167782
        %v786 = vsel %vm778, %v769, %v785
        %v787 = vsel %vm777, %v784, %v786
        %v788 = vsel %vm776, %v766, %v769
        %v789 = vsel %vm779, %v775, 1326507024
        %v790 = vsel %vm778, %v772, %v789
        %v791 = vsel %vm777, %v788, %v790
        %v792 = vshll.u32 %v752, 8
        %v793 = vand.u32 %v792, 65535
        %v794 = vshrl.u32 %v792, 16
        %v795 = vand.u32 %v791, 65535
        %v796 = vshrl.u32 %v791, 16
        %v797 = vmul.u32 %v793, %v795
        %v798 = vmul.u32 %v793, %v796
        %v799 = vmul.u32 %v794, %v795
        %v800 = vmul.u32 %v794, %v796
        %v801 = vshll.u32 %v798, 16
        %v802 = vshrl.u32 %v798, 16
        %v803 = vshll.u32 %v799, 16
        %v804 = vshrl.u32 %v799, 16
        %vm805 = vc.u32 %v797, %v801
        %v806 = vsel %vm805, 1, 0
        %v807 = vadd.s32 %v797, %v801
        %v808 = vadd.s32 %v800, %v806
        %vm809 = vc.u32 %v807, %v803
        %v810 = vsel %vm809, 1, 0
        %v811 = vadd.s32 %v807, %v803
        %v812 = vadd.s32 %v808, %v810
        %v813 = vadd.s32 %v812, %v802
        %v814 = vadd.s32 %v813, %v804
        %v815 = vand.u32 %v792, 65535
        %v816 = vshrl.u32 %v792, 16
        %v817 = vand.u32 %v787, 65535
        %v818 = vshrl.u32 %v787, 16
        %v819 = vmul.u32 %v815, %v817
        %v820 = vmul.u32 %v815, %v818
        %v821 = vmul.u32 %v816, %v817
        %v822 = vmul.u32 %v816, %v818
        %v823 = vshll.u32 %v820, 16
        %v824 = vshrl.u32 %v820, 16
        %v825 = vshll.u32 %v821, 16
        %v826 = vshrl.u32 %v821, 16
        %vm827 = vc.u32 %v819, %v823
        %v828 = vsel %vm827, 1, 0
        %v829 = vadd.s32 %v819, %v823
        %v830 = vadd.s32 %v822, %v828
        %vm831 = vc.u32 %v829, %v825
        %v832 = vsel %vm831, 1, 0
        %v833 = vadd.s32 %v829, %v825
        %v834 = vadd.s32 %v830, %v832
        %v835 = vadd.s32 %v834, %v824
        %v836 = vadd.s32 %v835, %v826
        %v837 = vmul.u32 %v792, %v783
        %v838 = vadd.s32 %v814, %v833
        %vm839 = vc.u32 %v814, %v833
        %v840 = vadd.s32 %v836, 1
        %v841 = vsel %vm839, %v840, %v836
        %v842 = vadd.s32 %v837, %v841
        %v843 = vadd.s32 %v842, 536870912
        %v844 = vshrl.u32 %v843, 30
        %v845 = vshll.u32 %v844, 30
        %v846 = vsub.s32 %v842, %v845
        %vm847 = vcmp.lt.s32.totalorder %v846, 0
        %v848 = vsub.s32 0, %v846
        %v849 = vsel %vm847, %v848, %v846
        %v850 = vclz %v849
        %v851 = vsub.s32 %v850, 2
        %vm852 = vcmp.gt.s32.totalorder 0, %v851
        %v853 = vsel %vm852, 0, %v851
        %v854 = vsub.s32 32, %v853
        %v855 = vshll.u32 %v846, %v853
        %v856 = vshrl.u32 %v838, %v854
        %v857 = vor.u32 %v855, %v856
        %v858 = vsub.s32 4294967266, %v853
        %v859 = vadd.s32 %v858, 127
        %v860 = vshll.u32 %v859, 23
        %v861 = vor.u32 4788187, %v860
        %v862 = vand.u32 2147483647, %v861
        %v864 = vcvt.s32.f32 %v857
        %v865 = vmul.f32 %v864, %v862
        %v866 = vxor.u32 %v865, 2147483648
        %v867 = vsel %vm746, %v866, %v865
        %v868 = vsub.s32 4, %v844
        %v869 = vsel %vm746, %v868, %v844
        %v870 = vsel %vm745, %v266, %v867
        %v871 = vsel %vm745, 0, %v869
        %v872 = vmul.f32 %v870, %v870
        %v873 = vmul.f32 %v872, -0.001358992
        %v874 = vadd.f32 %v873, 0.041655596
        %v875 = vmul.f32 %v872, %v874
        %v876 = vadd.f32 %v875, -0.4999988
        %v877 = vmul.f32 %v872, %v876
        %v878 = vadd.f32 1.0, %v877
        %v879 = vmul.f32 %v870, %v870
        %v880 = vmul.f32 %v879, -0.00019511016
        %v881 = vadd.f32 %v880, 0.008332121
        %v882 = vmul.f32 %v879, %v881
        %v883 = vadd.f32 %v882, -0.16666654
        %v884 = vmul.f32 %v879, %v883
        %v885 = vadd.f32 %v884, 1.0
        %v886 = vmul.f32 %v885, %v870
        %vm887 = vweird.f32 %v266
        %v888 = vadd.s32 %v871, 3
        %v889 = vand.u32 %v888, 3
        %vm890 = vcmp.lt.s32.totalorder %v889, 2
        %vm891 = vcmp.eq.s32.totalorder %v889, 0
        %v892 = vxor.u32 %v886, 2147483648
        %v893 = vsel %vm891, %v878, %v892
        %vm894 = vcmp.eq.s32.totalorder %v889, 2
        %v895 = vxor.u32 %v878, 2147483648
        %v896 = vsel %vm894, %v895, %v886
        %v897 = vsel %vm890, %v893, %v896
        %v898 = vsel %vm887, nan, %v897
        %v899 = vand.u32 2147483647, %v267
        %vm900 = vcmp.le.f32.partialorder %v899, 0.7853982
        %vm901 = vcmp.lt.s32.totalorder %v267, 0
        %v902 = vand.u32 %v267, 2139095040
        %v903 = vshrl.u32 %v902, 23
        %v904 = vsub.s32 %v903, 127
        %v905 = vand.u32 2147483647, %v267
        %v906 = vand.u32 %v905, 8388607
        %v907 = vor.u32 %v906, 8388608
        %v908 = vsub.s32 0, %v907
        %v909 = vadd.s32 %v904, 1
        %vm910 = vcmp.gt.s32.totalorder %v909, 0
        %v911 = vsel %vm910, %v909, 0
        %v912 = vshrl.u32 %v911, 5
        %v913 = vand.u32 %v911, 31
        %v914 = vsub.s32 32, %v913
        %v915 = vshrl.u32 683565275, %v914
        %v916 = vshll.u32 683565275, %v913
        %v917 = vshrl.u32 2475754826, %v914
        %v918 = vor.u32 %v916, %v917
        %v919 = vshll.u32 2475754826, %v913
        %v920 = vshrl.u32 2131351028, %v914
        %v921 = vor.u32 %v919, %v920
        %v922 = vshll.u32 2131351028, %v913
        %v923 = vshrl.u32 2102212464, %v914
        %v924 = vor.u32 %v922, %v923
        %v925 = vshll.u32 2102212464, %v913
        %v926 = vshrl.u32 920167782, %v914
        %v927 = vor.u32 %v925, %v926
        %v928 = vshll.u32 920167782, %v913
        %v929 = vshrl.u32 1326507024, %v914
        %v930 = vor.u32 %v928, %v929
        %vm931 = vcmp.lt.s32.totalorder %v912, 1
        %vm932 = vcmp.lt.s32.totalorder %v912, 2
        %vm933 = vcmp.lt.s32.totalorder %v912, 3
        %vm934 = vcmp.lt.s32.totalorder %v912, 4
        %v935 = vsel %vm931, %v915, %v918
        %v936 = vsel %vm934, %v924, 2102212464
        %v937 = vsel %vm933, %v921, %v936
        %v938 = vsel %vm932, %v935, %v937
        %v939 = vsel %vm931, %v918, %v921
        %v940 = vsel %vm934, %v927, 920167782
        %v941 = vsel %vm933, %v924, %v940
        %v942 = vsel %vm932, %v939, %v941
        %v943 = vsel %vm931, %v921, %v924
        %v944 = vsel %vm934, %v930, 1326507024
        %v945 = vsel %vm933, %v927, %v944
        %v946 = vsel %vm932, %v943, %v945
        %v947 = vshll.u32 %v907, 8
        %v948 = vand.u32 %v947, 65535
        %v949 = vshrl.u32 %v947, 16
        %v950 = vand.u32 %v946, 65535
        %v951 = vshrl.u32 %v946, 16
        %v952 = vmul.u32 %v948, %v950
        %v953 = vmul.u32 %v948, %v951
        %v954 = vmul.u32 %v949, %v950
        %v955 = vmul.u32 %v949, %v951
        %v956 = vshll.u32 %v953, 16
        %v957 = vshrl.u32 %v953, 16
        %v958 = vshll.u32 %v954, 16
        %v959 = vshrl.u32 %v954, 16
        %vm960 = vc.u32 %v952, %v956
        %v961 = vsel %vm960, 1, 0
        %v962 = vadd.s32 %v952, %v956
        %v963 = vadd.s32 %v955, %v961
        %vm964 = vc.u32 %v962, %v958
        %v965 = vsel %vm964, 1, 0
        %v966 = vadd.s32 %v962, %v958
        %v967 = vadd.s32 %v963, %v965
        %v968 = vadd.s32 %v967, %v957
        %v969 = vadd.s32 %v968, %v959
        %v970 = vand.u32 %v947, 65535
        %v971 = vshrl.u32 %v947, 16
        %v972 = vand.u32 %v942, 65535
        %v973 = vshrl.u32 %v942, 16
        %v974 = vmul.u32 %v970, %v972
        %v975 = vmul.u32 %v970, %v973
        %v976 = vmul.u32 %v971, %v972
        %v977 = vmul.u32 %v971, %v973
        %v978 = vshll.u32 %v975, 16
        %v979 = vshrl.u32 %v975, 16
        %v980 = vshll.u32 %v976, 16
        %v981 = vshrl.u32 %v976, 16
        %vm982 = vc.u32 %v974, %v978
        %v983 = vsel %vm982, 1, 0
        %v984 = vadd.s32 %v974, %v978
        %v985 = vadd.s32 %v977, %v983
        %vm986 = vc.u32 %v984, %v980
        %v987 = vsel %vm986, 1, 0
        %v988 = vadd.s32 %v984, %v980
        %v989 = vadd.s32 %v985, %v987
        %v990 = vadd.s32 %v989, %v979
        %v991 = vadd.s32 %v990, %v981
        %v992 = vmul.u32 %v947, %v938
        %v993 = vadd.s32 %v969, %v988
        %vm994 = vc.u32 %v969, %v988
        %v995 = vadd.s32 %v991, 1
        %v996 = vsel %vm994, %v995, %v991
        %v997 = vadd.s32 %v992, %v996
        %v998 = vadd.s32 %v997, 536870912
        %v999 = vshrl.u32 %v998, 30
        %v1000 = vshll.u32 %v999, 30
        %v1001 = vsub.s32 %v997, %v1000
        %vm1002 = vcmp.lt.s32.totalorder %v1001, 0
        %v1003 = vsub.s32 0, %v1001
        %v1004 = vsel %vm1002, %v1003, %v1001
        %v1005 = vclz %v1004
        %v1006 = vsub.s32 %v1005, 2
        %vm1007 = vcmp.gt.s32.totalorder 0, %v1006
        %v1008 = vsel %vm1007, 0, %v1006
        %v1009 = vsub.s32 32, %v1008
        %v1010 = vshll.u32 %v1001, %v1008
        %v1011 = vshrl.u32 %v993, %v1009
        %v1012 = vor.u32 %v1010, %v1011
        %v1013 = vsub.s32 4294967266, %v1008
        %v1014 = vadd.s32 %v1013, 127
        %v1015 = vshll.u32 %v1014, 23
        %v1016 = vor.u32 4788187, %v1015
        %v1017 = vand.u32 2147483647, %v1016
        %v1019 = vcvt.s32.f32 %v1012
        %v1020 = vmul.f32 %v1019, %v1017
        %v1021 = vxor.u32 %v1020, 2147483648
        %v1022 = vsel %vm901, %v1021, %v1020
        %v1023 = vsub.s32 4, %v999
        %v1024 = vsel %vm901, %v1023, %v999
        %v1025 = vsel %vm900, %v267, %v1022
        %v1026 = vsel %vm900, 0, %v1024
        %v1027 = vmul.f32 %v1025, %v1025
        %v1028 = vmul.f32 %v1027, -0.001358992
        %v1029 = vadd.f32 %v1028, 0.041655596
        %v1030 = vmul.f32 %v1027, %v1029
        %v1031 = vadd.f32 %v1030, -0.4999988
        %v1032 = vmul.f32 %v1027, %v1031
        %v1033 = vadd.f32 1.0, %v1032
        %v1034 = vmul.f32 %v1025, %v1025
        %v1035 = vmul.f32 %v1034, -0.00019511016
        %v1036 = vadd.f32 %v1035, 0.008332121
        %v1037 = vmul.f32 %v1034, %v1036
        %v1038 = vadd.f32 %v1037, -0.16666654
        %v1039 = vmul.f32 %v1034, %v1038
        %v1040 = vadd.f32 %v1039, 1.0
        %v1041 = vmul.f32 %v1040, %v1025
        %vm1042 = vweird.f32 %v267
        %v1043 = vadd.s32 %v1026, 3
        %v1044 = vand.u32 %v1043, 3
        %vm1045 = vcmp.lt.s32.totalorder %v1044, 2
        %vm1046 = vcmp.eq.s32.totalorder %v1044, 0
        %v1047 = vxor.u32 %v1041, 2147483648
        %v1048 = vsel %vm1046, %v1033, %v1047
        %vm1049 = vcmp.eq.s32.totalorder %v1044, 2
        %v1050 = vxor.u32 %v1033, 2147483648
        %v1051 = vsel %vm1049, %v1050, %v1041
        %v1052 = vsel %vm1045, %v1048, %v1051
        %v1053 = vsel %vm1042, nan, %v1052
        %v1054 = vand.u32 2147483647, %v268
        %vm1055 = vcmp.le.f32.partialorder %v1054, 0.7853982
        %vm1056 = vcmp.lt.s32.totalorder %v268, 0
        %v1057 = vand.u32 %v268, 2139095040
        %v1058 = vshrl.u32 %v1057, 23
        %v1059 = vsub.s32 %v1058, 127
        %v1060 = vand.u32 2147483647, %v268
        %v1061 = vand.u32 %v1060, 8388607
        %v1062 = vor.u32 %v1061, 8388608
        %v1063 = vsub.s32 0, %v1062
        %v1064 = vadd.s32 %v1059, 1
        %vm1065 = vcmp.gt.s32.totalorder %v1064, 0
        %v1066 = vsel %vm1065, %v1064, 0
        %v1067 = vshrl.u32 %v1066, 5
        %v1068 = vand.u32 %v1066, 31
        %v1069 = vsub.s32 32, %v1068
        %v1070 = vshrl.u32 683565275, %v1069
        %v1071 = vshll.u32 683565275, %v1068
        %v1072 = vshrl.u32 2475754826, %v1069
        %v1073 = vor.u32 %v1071, %v1072
        %v1074 = vshll.u32 2475754826, %v1068
        %v1075 = vshrl.u32 2131351028, %v1069
        %v1076 = vor.u32 %v1074, %v1075
        %v1077 = vshll.u32 2131351028, %v1068
        %v1078 = vshrl.u32 2102212464, %v1069
        %v1079 = vor.u32 %v1077, %v1078
        %v1080 = vshll.u32 2102212464, %v1068
        %v1081 = vshrl.u32 920167782, %v1069
        %v1082 = vor.u32 %v1080, %v1081
        %v1083 = vshll.u32 920167782, %v1068
        %v1084 = vshrl.u32 1326507024, %v1069
        %v1085 = vor.u32 %v1083, %v1084
        %vm1086 = vcmp.lt.s32.totalorder %v1067, 1
        %vm1087 = vcmp.lt.s32.totalorder %v1067, 2
        %vm1088 = vcmp.lt.s32.totalorder %v1067, 3
        %vm1089 = vcmp.lt.s32.totalorder %v1067, 4
        %v1090 = vsel %vm1086, %v1070, %v1073
        %v1091 = vsel %vm1089, %v1079, 2102212464
        %v1092 = vsel %vm1088, %v1076, %v1091
        %v1093 = vsel %vm1087, %v1090, %v1092
        %v1094 = vsel %vm1086, %v1073, %v1076
        %v1095 = vsel %vm1089, %v1082, 920167782
        %v1096 = vsel %vm1088, %v1079, %v1095
        %v1097 = vsel %vm1087, %v1094, %v1096
        %v1098 = vsel %vm1086, %v1076, %v1079
        %v1099 = vsel %vm1089, %v1085, 1326507024
        %v1100 = vsel %vm1088, %v1082, %v1099
        %v1101 = vsel %vm1087, %v1098, %v1100
        %v1102 = vshll.u32 %v1062, 8
        %v1103 = vand.u32 %v1102, 65535
        %v1104 = vshrl.u32 %v1102, 16
        %v1105 = vand.u32 %v1101, 65535
        %v1106 = vshrl.u32 %v1101, 16
        %v1107 = vmul.u32 %v1103, %v1105
        %v1108 = vmul.u32 %v1103, %v1106
        %v1109 = vmul.u32 %v1104, %v1105
        %v1110 = vmul.u32 %v1104, %v1106
        %v1111 = vshll.u32 %v1108, 16
        %v1112 = vshrl.u32 %v1108, 16
        %v1113 = vshll.u32 %v1109, 16
        %v1114 = vshrl.u32 %v1109, 16
        %vm1115 = vc.u32 %v1107, %v1111
        %v1116 = vsel %vm1115, 1, 0
        %v1117 = vadd.s32 %v1107, %v1111
        %v1118 = vadd.s32 %v1110, %v1116
        %vm1119 = vc.u32 %v1117, %v1113
        %v1120 = vsel %vm1119, 1, 0
        %v1121 = vadd.s32 %v1117, %v1113
        %v1122 = vadd.s32 %v1118, %v1120
        %v1123 = vadd.s32 %v1122, %v1112
        %v1124 = vadd.s32 %v1123, %v1114
        %v1125 = vand.u32 %v1102, 65535
        %v1126 = vshrl.u32 %v1102, 16
        %v1127 = vand.u32 %v1097, 65535
        %v1128 = vshrl.u32 %v1097, 16
        %v1129 = vmul.u32 %v1125, %v1127
        %v1130 = vmul.u32 %v1125, %v1128
        %v1131 = vmul.u32 %v1126, %v1127
        %v1132 = vmul.u32 %v1126, %v1128
        %v1133 = vshll.u32 %v1130, 16
        %v1134 = vshrl.u32 %v1130, 16
        %v1135 = vshll.u32 %v1131, 16
        %v1136 = vshrl.u32 %v1131, 16
        %vm1137 = vc.u32 %v1129, %v1133
        %v1138 = vsel %vm1137, 1, 0
        %v1139 = vadd.s32 %v1129, %v1133
        %v1140 = vadd.s32 %v1132, %v1138
        %vm1141 = vc.u32 %v1139, %v1135
        %v1142 = vsel %vm1141, 1, 0
        %v1143 = vadd.s32 %v1139, %v1135
        %v1144 = vadd.s32 %v1140, %v1142
        %v1145 = vadd.s32 %v1144, %v1134
        %v1146 = vadd.s32 %v1145, %v1136
        %v1147 = vmul.u32 %v1102, %v1093
        %v1148 = vadd.s32 %v1124, %v1143
        %vm1149 = vc.u32 %v1124, %v1143
        %v1150 = vadd.s32 %v1146, 1
        %v1151 = vsel %vm1149, %v1150, %v1146
        %v1152 = vadd.s32 %v1147, %v1151
        %v1153 = vadd.s32 %v1152, 536870912
        %v1154 = vshrl.u32 %v1153, 30
        %v1155 = vshll.u32 %v1154, 30
        %v1156 = vsub.s32 %v1152, %v1155
        %vm1157 = vcmp.lt.s32.totalorder %v1156, 0
        %v1158 = vsub.s32 0, %v1156
        %v1159 = vsel %vm1157, %v1158, %v1156
        %v1160 = vclz %v1159
        %v1161 = vsub.s32 %v1160, 2
        %vm1162 = vcmp.gt.s32.totalorder 0, %v1161
        %v1163 = vsel %vm1162, 0, %v1161
        %v1164 = vsub.s32 32, %v1163
        %v1165 = vshll.u32 %v1156, %v1163
        %v1166 = vshrl.u32 %v1148, %v1164
        %v1167 = vor.u32 %v1165, %v1166
        %v1168 = vsub.s32 4294967266, %v1163
        %v1169 = vadd.s32 %v1168, 127
        %v1170 = vshll.u32 %v1169, 23
        %v1171 = vor.u32 4788187, %v1170
        %v1172 = vand.u32 2147483647, %v1171
        %v1174 = vcvt.s32.f32 %v1167
        %v1175 = vmul.f32 %v1174, %v1172
        %v1176 = vxor.u32 %v1175, 2147483648
        %v1177 = vsel %vm1056, %v1176, %v1175
        %v1178 = vsub.s32 4, %v1154
        %v1179 = vsel %vm1056, %v1178, %v1154
        %v1180 = vsel %vm1055, %v268, %v1177
        %v1181 = vsel %vm1055, 0, %v1179
        %v1182 = vmul.f32 %v1180, %v1180
        %v1183 = vmul.f32 %v1182, -0.001358992
        %v1184 = vadd.f32 %v1183, 0.041655596
        %v1185 = vmul.f32 %v1182, %v1184
        %v1186 = vadd.f32 %v1185, -0.4999988
        %v1187 = vmul.f32 %v1182, %v1186
        %v1188 = vadd.f32 1.0, %v1187
        %v1189 = vmul.f32 %v1180, %v1180
        %v1190 = vmul.f32 %v1189, -0.00019511016
        %v1191 = vadd.f32 %v1190, 0.008332121
        %v1192 = vmul.f32 %v1189, %v1191
        %v1193 = vadd.f32 %v1192, -0.16666654
        %v1194 = vmul.f32 %v1189, %v1193
        %v1195 = vadd.f32 %v1194, 1.0
        %v1196 = vmul.f32 %v1195, %v1180
        %vm1197 = vweird.f32 %v268
        %v1198 = vadd.s32 %v1181, 3
        %v1199 = vand.u32 %v1198, 3
        %vm1200 = vcmp.lt.s32.totalorder %v1199, 2
        %vm1201 = vcmp.eq.s32.totalorder %v1199, 0
        %v1202 = vxor.u32 %v1196, 2147483648
        %v1203 = vsel %vm1201, %v1188, %v1202
        %vm1204 = vcmp.eq.s32.totalorder %v1199, 2
        %v1205 = vxor.u32 %v1188, 2147483648
        %v1206 = vsel %vm1204, %v1205, %v1196
        %v1207 = vsel %vm1200, %v1203, %v1206
        %v1208 = vsel %vm1197, nan, %v1207
        %v1209 = vand.u32 2147483647, %v269
        %vm1210 = vcmp.le.f32.partialorder %v1209, 0.7853982
        %vm1211 = vcmp.lt.s32.totalorder %v269, 0
        %v1212 = vand.u32 %v269, 2139095040
        %v1213 = vshrl.u32 %v1212, 23
        %v1214 = vsub.s32 %v1213, 127
        %v1215 = vand.u32 2147483647, %v269
        %v1216 = vand.u32 %v1215, 8388607
        %v1217 = vor.u32 %v1216, 8388608
        %v1218 = vsub.s32 0, %v1217
        %v1219 = vadd.s32 %v1214, 1
        %vm1220 = vcmp.gt.s32.totalorder %v1219, 0
        %v1221 = vsel %vm1220, %v1219, 0
        %v1222 = vshrl.u32 %v1221, 5
        %v1223 = vand.u32 %v1221, 31
        %v1224 = vsub.s32 32, %v1223
        %v1225 = vshrl.u32 683565275, %v1224
        %v1226 = vshll.u32 683565275, %v1223
        %v1227 = vshrl.u32 2475754826, %v1224
        %v1228 = vor.u32 %v1226, %v1227
        %v1229 = vshll.u32 2475754826, %v1223
        %v1230 = vshrl.u32 2131351028, %v1224
        %v1231 = vor.u32 %v1229, %v1230
        %v1232 = vshll.u32 2131351028, %v1223
        %v1233 = vshrl.u32 2102212464, %v1224
        %v1234 = vor.u32 %v1232, %v1233
        %v1235 = vshll.u32 2102212464, %v1223
        %v1236 = vshrl.u32 920167782, %v1224
        %v1237 = vor.u32 %v1235, %v1236
        %v1238 = vshll.u32 920167782, %v1223
        %v1239 = vshrl.u32 1326507024, %v1224
        %v1240 = vor.u32 %v1238, %v1239
        %vm1241 = vcmp.lt.s32.totalorder %v1222, 1
        %vm1242 = vcmp.lt.s32.totalorder %v1222, 2
        %vm1243 = vcmp.lt.s32.totalorder %v1222, 3
        %vm1244 = vcmp.lt.s32.totalorder %v1222, 4
        %v1245 = vsel %vm1241, %v1225, %v1228
        %v1246 = vsel %vm1244, %v1234, 2102212464
        %v1247 = vsel %vm1243, %v1231, %v1246
        %v1248 = vsel %vm1242, %v1245, %v1247
        %v1249 = vsel %vm1241, %v1228, %v1231
        %v1250 = vsel %vm1244, %v1237, 920167782
        %v1251 = vsel %vm1243, %v1234, %v1250
        %v1252 = vsel %vm1242, %v1249, %v1251
        %v1253 = vsel %vm1241, %v1231, %v1234
        %v1254 = vsel %vm1244, %v1240, 1326507024
        %v1255 = vsel %vm1243, %v1237, %v1254
        %v1256 = vsel %vm1242, %v1253, %v1255
        %v1257 = vshll.u32 %v1217, 8
        %v1258 = vand.u32 %v1257, 65535
        %v1259 = vshrl.u32 %v1257, 16
        %v1260 = vand.u32 %v1256, 65535
        %v1261 = vshrl.u32 %v1256, 16
        %v1262 = vmul.u32 %v1258, %v1260
        %v1263 = vmul.u32 %v1258, %v1261
        %v1264 = vmul.u32 %v1259, %v1260
        %v1265 = vmul.u32 %v1259, %v1261
        %v1266 = vshll.u32 %v1263, 16
        %v1267 = vshrl.u32 %v1263, 16
        %v1268 = vshll.u32 %v1264, 16
        %v1269 = vshrl.u32 %v1264, 16
        %vm1270 = vc.u32 %v1262, %v1266
        %v1271 = vsel %vm1270, 1, 0
        %v1272 = vadd.s32 %v1262, %v1266
        %v1273 = vadd.s32 %v1265, %v1271
        %vm1274 = vc.u32 %v1272, %v1268
        %v1275 = vsel %vm1274, 1, 0
        %v1276 = vadd.s32 %v1272, %v1268
        %v1277 = vadd.s32 %v1273, %v1275
        %v1278 = vadd.s32 %v1277, %v1267
        %v1279 = vadd.s32 %v1278, %v1269
        %v1280 = vand.u32 %v1257, 65535
        %v1281 = vshrl.u32 %v1257, 16
        %v1282 = vand.u32 %v1252, 65535
        %v1283 = vshrl.u32 %v1252, 16
        %v1284 = vmul.u32 %v1280, %v1282
        %v1285 = vmul.u32 %v1280, %v1283
        %v1286 = vmul.u32 %v1281, %v1282
        %v1287 = vmul.u32 %v1281, %v1283
        %v1288 = vshll.u32 %v1285, 16
        %v1289 = vshrl.u32 %v1285, 16
        %v1290 = vshll.u32 %v1286, 16
        %v1291 = vshrl.u32 %v1286, 16
        %vm1292 = vc.u32 %v1284, %v1288
        %v1293 = vsel %vm1292, 1, 0
        %v1294 = vadd.s32 %v1284, %v1288
        %v1295 = vadd.s32 %v1287, %v1293
        %vm1296 = vc.u32 %v1294, %v1290
        %v1297 = vsel %vm1296, 1, 0
        %v1298 = vadd.s32 %v1294, %v1290
        %v1299 = vadd.s32 %v1295, %v1297
        %v1300 = vadd.s32 %v1299, %v1289
        %v1301 = vadd.s32 %v1300, %v1291
        %v1302 = vmul.u32 %v1257, %v1248
        %v1303 = vadd.s32 %v1279, %v1298
        %vm1304 = vc.u32 %v1279, %v1298
        %v1305 = vadd.s32 %v1301, 1
        %v1306 = vsel %vm1304, %v1305, %v1301
        %v1307 = vadd.s32 %v1302, %v1306
        %v1308 = vadd.s32 %v1307, 536870912
        %v1309 = vshrl.u32 %v1308, 30
        %v1310 = vshll.u32 %v1309, 30
        %v1311 = vsub.s32 %v1307, %v1310
        %vm1312 = vcmp.lt.s32.totalorder %v1311, 0
        %v1313 = vsub.s32 0, %v1311
        %v1314 = vsel %vm1312, %v1313, %v1311
        %v1315 = vclz %v1314
        %v1316 = vsub.s32 %v1315, 2
        %vm1317 = vcmp.gt.s32.totalorder 0, %v1316
        %v1318 = vsel %vm1317, 0, %v1316
        %v1319 = vsub.s32 32, %v1318
        %v1320 = vshll.u32 %v1311, %v1318
        %v1321 = vshrl.u32 %v1303, %v1319
        %v1322 = vor.u32 %v1320, %v1321
        %v1323 = vsub.s32 4294967266, %v1318
        %v1324 = vadd.s32 %v1323, 127
        %v1325 = vshll.u32 %v1324, 23
        %v1326 = vor.u32 4788187, %v1325
        %v1327 = vand.u32 2147483647, %v1326
        %v1329 = vcvt.s32.f32 %v1322
        %v1330 = vmul.f32 %v1329, %v1327
        %v1331 = vxor.u32 %v1330, 2147483648
        %v1332 = vsel %vm1211, %v1331, %v1330
        %v1333 = vsub.s32 4, %v1309
        %v1334 = vsel %vm1211, %v1333, %v1309
        %v1335 = vsel %vm1210, %v269, %v1332
        %v1336 = vsel %vm1210, 0, %v1334
        %v1337 = vmul.f32 %v1335, %v1335
        %v1338 = vmul.f32 %v1337, -0.001358992
        %v1339 = vadd.f32 %v1338, 0.041655596
        %v1340 = vmul.f32 %v1337, %v1339
        %v1341 = vadd.f32 %v1340, -0.4999988
        %v1342 = vmul.f32 %v1337, %v1341
        %v1343 = vadd.f32 1.0, %v1342
        %v1344 = vmul.f32 %v1335, %v1335
        %v1345 = vmul.f32 %v1344, -0.00019511016
        %v1346 = vadd.f32 %v1345, 0.008332121
        %v1347 = vmul.f32 %v1344, %v1346
        %v1348 = vadd.f32 %v1347, -0.16666654
        %v1349 = vmul.f32 %v1344, %v1348
        %v1350 = vadd.f32 %v1349, 1.0
        %v1351 = vmul.f32 %v1350, %v1335
        %vm1352 = vweird.f32 %v269
        %v1353 = vadd.s32 %v1336, 3
        %v1354 = vand.u32 %v1353, 3
        %vm1355 = vcmp.lt.s32.totalorder %v1354, 2
        %vm1356 = vcmp.eq.s32.totalorder %v1354, 0
        %v1357 = vxor.u32 %v1351, 2147483648
        %v1358 = vsel %vm1356, %v1343, %v1357
        %vm1359 = vcmp.eq.s32.totalorder %v1354, 2
        %v1360 = vxor.u32 %v1343, 2147483648
        %v1361 = vsel %vm1359, %v1360, %v1351
        %v1362 = vsel %vm1355, %v1358, %v1361
        %v1363 = vsel %vm1352, nan, %v1362
        %v1364 = vand.u32 2147483647, %v270
        %vm1365 = vcmp.le.f32.partialorder %v1364, 0.7853982
        %vm1366 = vcmp.lt.s32.totalorder %v270, 0
        %v1367 = vand.u32 %v270, 2139095040
        %v1368 = vshrl.u32 %v1367, 23
        %v1369 = vsub.s32 %v1368, 127
        %v1370 = vand.u32 2147483647, %v270
        %v1371 = vand.u32 %v1370, 8388607
        %v1372 = vor.u32 %v1371, 8388608
        %v1373 = vsub.s32 0, %v1372
        %v1374 = vadd.s32 %v1369, 1
        %vm1375 = vcmp.gt.s32.totalorder %v1374, 0
        %v1376 = vsel %vm1375, %v1374, 0
        %v1377 = vshrl.u32 %v1376, 5
        %v1378 = vand.u32 %v1376, 31
        %v1379 = vsub.s32 32, %v1378
        %v1380 = vshrl.u32 683565275, %v1379
        %v1381 = vshll.u32 683565275, %v1378
        %v1382 = vshrl.u32 2475754826, %v1379
        %v1383 = vor.u32 %v1381, %v1382
        %v1384 = vshll.u32 2475754826, %v1378
        %v1385 = vshrl.u32 2131351028, %v1379
        %v1386 = vor.u32 %v1384, %v1385
        %v1387 = vshll.u32 2131351028, %v1378
        %v1388 = vshrl.u32 2102212464, %v1379
        %v1389 = vor.u32 %v1387, %v1388
        %v1390 = vshll.u32 2102212464, %v1378
        %v1391 = vshrl.u32 920167782, %v1379
        %v1392 = vor.u32 %v1390, %v1391
        %v1393 = vshll.u32 920167782, %v1378
        %v1394 = vshrl.u32 1326507024, %v1379
        %v1395 = vor.u32 %v1393, %v1394
        %vm1396 = vcmp.lt.s32.totalorder %v1377, 1
        %vm1397 = vcmp.lt.s32.totalorder %v1377, 2
        %vm1398 = vcmp.lt.s32.totalorder %v1377, 3
        %vm1399 = vcmp.lt.s32.totalorder %v1377, 4
        %v1400 = vsel %vm1396, %v1380, %v1383
        %v1401 = vsel %vm1399, %v1389, 2102212464
        %v1402 = vsel %vm1398, %v1386, %v1401
        %v1403 = vsel %vm1397, %v1400, %v1402
        %v1404 = vsel %vm1396, %v1383, %v1386
        %v1405 = vsel %vm1399, %v1392, 920167782
        %v1406 = vsel %vm1398, %v1389, %v1405
        %v1407 = vsel %vm1397, %v1404, %v1406
        %v1408 = vsel %vm1396, %v1386, %v1389
        %v1409 = vsel %vm1399, %v1395, 1326507024
        %v1410 = vsel %vm1398, %v1392, %v1409
        %v1411 = vsel %vm1397, %v1408, %v1410
        %v1412 = vshll.u32 %v1372, 8
        %v1413 = vand.u32 %v1412, 65535
        %v1414 = vshrl.u32 %v1412, 16
        %v1415 = vand.u32 %v1411, 65535
        %v1416 = vshrl.u32 %v1411, 16
        %v1417 = vmul.u32 %v1413, %v1415
        %v1418 = vmul.u32 %v1413, %v1416
        %v1419 = vmul.u32 %v1414, %v1415
        %v1420 = vmul.u32 %v1414, %v1416
        %v1421 = vshll.u32 %v1418, 16
        %v1422 = vshrl.u32 %v1418, 16
        %v1423 = vshll.u32 %v1419, 16
        %v1424 = vshrl.u32 %v1419, 16
        %vm1425 = vc.u32 %v1417, %v1421
        %v1426 = vsel %vm1425, 1, 0
        %v1427 = vadd.s32 %v1417, %v1421
        %v1428 = vadd.s32 %v1420, %v1426
        %vm1429 = vc.u32 %v1427, %v1423
        %v1430 = vsel %vm1429, 1, 0
        %v1431 = vadd.s32 %v1427, %v1423
        %v1432 = vadd.s32 %v1428, %v1430
        %v1433 = vadd.s32 %v1432, %v1422
        %v1434 = vadd.s32 %v1433, %v1424
        %v1435 = vand.u32 %v1412, 65535
        %v1436 = vshrl.u32 %v1412, 16
        %v1437 = vand.u32 %v1407, 65535
        %v1438 = vshrl.u32 %v1407, 16
        %v1439 = vmul.u32 %v1435, %v1437
        %v1440 = vmul.u32 %v1435, %v1438
        %v1441 = vmul.u32 %v1436, %v1437
        %v1442 = vmul.u32 %v1436, %v1438
        %v1443 = vshll.u32 %v1440, 16
        %v1444 = vshrl.u32 %v1440, 16
        %v1445 = vshll.u32 %v1441, 16
        %v1446 = vshrl.u32 %v1441, 16
        %vm1447 = vc.u32 %v1439, %v1443
        %v1448 = vsel %vm1447, 1, 0
        %v1449 = vadd.s32 %v1439, %v1443
        %v1450 = vadd.s32 %v1442, %v1448
        %vm1451 = vc.u32 %v1449, %v1445
        %v1452 = vsel %vm1451, 1, 0
        %v1453 = vadd.s32 %v1449, %v1445
        %v1454 = vadd.s32 %v1450, %v1452
        %v1455 = vadd.s32 %v1454, %v1444
        %v1456 = vadd.s32 %v1455, %v1446
        %v1457 = vmul.u32 %v1412, %v1403
        %v1458 = vadd.s32 %v1434, %v1453
        %vm1459 = vc.u32 %v1434, %v1453
        %v1460 = vadd.s32 %v1456, 1
        %v1461 = vsel %vm1459, %v1460, %v1456
        %v1462 = vadd.s32 %v1457, %v1461
        %v1463 = vadd.s32 %v1462, 536870912
        %v1464 = vshrl.u32 %v1463, 30
        %v1465 = vshll.u32 %v1464, 30
        %v1466 = vsub.s32 %v1462, %v1465
        %vm1467 = vcmp.lt.s32.totalorder %v1466, 0
        %v1468 = vsub.s32 0, %v1466
        %v1469 = vsel %vm1467, %v1468, %v1466
        %v1470 = vclz %v1469
        %v1471 = vsub.s32 %v1470, 2
        %vm1472 = vcmp.gt.s32.totalorder 0, %v1471
        %v1473 = vsel %vm1472, 0, %v1471
        %v1474 = vsub.s32 32, %v1473
        %v1475 = vshll.u32 %v1466, %v1473
        %v1476 = vshrl.u32 %v1458, %v1474
        %v1477 = vor.u32 %v1475, %v1476
        %v1478 = vsub.s32 4294967266, %v1473
        %v1479 = vadd.s32 %v1478, 127
        %v1480 = vshll.u32 %v1479, 23
        %v1481 = vor.u32 4788187, %v1480
        %v1482 = vand.u32 2147483647, %v1481
        %v1484 = vcvt.s32.f32 %v1477
        %v1485 = vmul.f32 %v1484, %v1482
        %v1486 = vxor.u32 %v1485, 2147483648
        %v1487 = vsel %vm1366, %v1486, %v1485
        %v1488 = vsub.s32 4, %v1464
        %v1489 = vsel %vm1366, %v1488, %v1464
        %v1490 = vsel %vm1365, %v270, %v1487
        %v1491 = vsel %vm1365, 0, %v1489
        %v1492 = vmul.f32 %v1490, %v1490
        %v1493 = vmul.f32 %v1492, -0.001358992
        %v1494 = vadd.f32 %v1493, 0.041655596
        %v1495 = vmul.f32 %v1492, %v1494
        %v1496 = vadd.f32 %v1495, -0.4999988
        %v1497 = vmul.f32 %v1492, %v1496
        %v1498 = vadd.f32 1.0, %v1497
        %v1499 = vmul.f32 %v1490, %v1490
        %v1500 = vmul.f32 %v1499, -0.00019511016
        %v1501 = vadd.f32 %v1500, 0.008332121
        %v1502 = vmul.f32 %v1499, %v1501
        %v1503 = vadd.f32 %v1502, -0.16666654
        %v1504 = vmul.f32 %v1499, %v1503
        %v1505 = vadd.f32 %v1504, 1.0
        %v1506 = vmul.f32 %v1505, %v1490
        %vm1507 = vweird.f32 %v270
        %v1508 = vadd.s32 %v1491, 3
        %v1509 = vand.u32 %v1508, 3
        %vm1510 = vcmp.lt.s32.totalorder %v1509, 2
        %vm1511 = vcmp.eq.s32.totalorder %v1509, 0
        %v1512 = vxor.u32 %v1506, 2147483648
        %v1513 = vsel %vm1511, %v1498, %v1512
        %vm1514 = vcmp.eq.s32.totalorder %v1509, 2
        %v1515 = vxor.u32 %v1498, 2147483648
        %v1516 = vsel %vm1514, %v1515, %v1506
        %v1517 = vsel %vm1510, %v1513, %v1516
        %v1518 = vsel %vm1507, nan, %v1517
        %v1519 = vand.u32 2147483647, %v271
        %vm1520 = vcmp.le.f32.partialorder %v1519, 0.7853982
        %vm1521 = vcmp.lt.s32.totalorder %v271, 0
        %v1522 = vand.u32 %v271, 2139095040
        %v1523 = vshrl.u32 %v1522, 23
        %v1524 = vsub.s32 %v1523, 127
        %v1525 = vand.u32 2147483647, %v271
        %v1526 = vand.u32 %v1525, 8388607
        %v1527 = vor.u32 %v1526, 8388608
        %v1528 = vsub.s32 0, %v1527
        %v1529 = vadd.s32 %v1524, 1
        %vm1530 = vcmp.gt.s32.totalorder %v1529, 0
        %v1531 = vsel %vm1530, %v1529, 0
        %v1532 = vshrl.u32 %v1531, 5
        %v1533 = vand.u32 %v1531, 31
        %v1534 = vsub.s32 32, %v1533
        %v1535 = vshrl.u32 683565275, %v1534
        %v1536 = vshll.u32 683565275, %v1533
        %v1537 = vshrl.u32 2475754826, %v1534
        %v1538 = vor.u32 %v1536, %v1537
        %v1539 = vshll.u32 2475754826, %v1533
        %v1540 = vshrl.u32 2131351028, %v1534
        %v1541 = vor.u32 %v1539, %v1540
        %v1542 = vshll.u32 2131351028, %v1533
        %v1543 = vshrl.u32 2102212464, %v1534
        %v1544 = vor.u32 %v1542, %v1543
        %v1545 = vshll.u32 2102212464, %v1533
        %v1546 = vshrl.u32 920167782, %v1534
        %v1547 = vor.u32 %v1545, %v1546
        %v1548 = vshll.u32 920167782, %v1533
        %v1549 = vshrl.u32 1326507024, %v1534
        %v1550 = vor.u32 %v1548, %v1549
        %vm1551 = vcmp.lt.s32.totalorder %v1532, 1
        %vm1552 = vcmp.lt.s32.totalorder %v1532, 2
        %vm1553 = vcmp.lt.s32.totalorder %v1532, 3
        %vm1554 = vcmp.lt.s32.totalorder %v1532, 4
        %v1555 = vsel %vm1551, %v1535, %v1538
        %v1556 = vsel %vm1554, %v1544, 2102212464
        %v1557 = vsel %vm1553, %v1541, %v1556
        %v1558 = vsel %vm1552, %v1555, %v1557
        %v1559 = vsel %vm1551, %v1538, %v1541
        %v1560 = vsel %vm1554, %v1547, 920167782
        %v1561 = vsel %vm1553, %v1544, %v1560
        %v1562 = vsel %vm1552, %v1559, %v1561
        %v1563 = vsel %vm1551, %v1541, %v1544
        %v1564 = vsel %vm1554, %v1550, 1326507024
        %v1565 = vsel %vm1553, %v1547, %v1564
        %v1566 = vsel %vm1552, %v1563, %v1565
        %v1567 = vshll.u32 %v1527, 8
        %v1568 = vand.u32 %v1567, 65535
        %v1569 = vshrl.u32 %v1567, 16
        %v1570 = vand.u32 %v1566, 65535
        %v1571 = vshrl.u32 %v1566, 16
        %v1572 = vmul.u32 %v1568, %v1570
        %v1573 = vmul.u32 %v1568, %v1571
        %v1574 = vmul.u32 %v1569, %v1570
        %v1575 = vmul.u32 %v1569, %v1571
        %v1576 = vshll.u32 %v1573, 16
        %v1577 = vshrl.u32 %v1573, 16
        %v1578 = vshll.u32 %v1574, 16
        %v1579 = vshrl.u32 %v1574, 16
        %vm1580 = vc.u32 %v1572, %v1576
        %v1581 = vsel %vm1580, 1, 0
        %v1582 = vadd.s32 %v1572, %v1576
        %v1583 = vadd.s32 %v1575, %v1581
        %vm1584 = vc.u32 %v1582, %v1578
        %v1585 = vsel %vm1584, 1, 0
        %v1586 = vadd.s32 %v1582, %v1578
        %v1587 = vadd.s32 %v1583, %v1585
        %v1588 = vadd.s32 %v1587, %v1577
        %v1589 = vadd.s32 %v1588, %v1579
        %v1590 = vand.u32 %v1567, 65535
        %v1591 = vshrl.u32 %v1567, 16
        %v1592 = vand.u32 %v1562, 65535
        %v1593 = vshrl.u32 %v1562, 16
        %v1594 = vmul.u32 %v1590, %v1592
        %v1595 = vmul.u32 %v1590, %v1593
        %v1596 = vmul.u32 %v1591, %v1592
        %v1597 = vmul.u32 %v1591, %v1593
        %v1598 = vshll.u32 %v1595, 16
        %v1599 = vshrl.u32 %v1595, 16
        %v1600 = vshll.u32 %v1596, 16
        %v1601 = vshrl.u32 %v1596, 16
        %vm1602 = vc.u32 %v1594, %v1598
        %v1603 = vsel %vm1602, 1, 0
        %v1604 = vadd.s32 %v1594, %v1598
        %v1605 = vadd.s32 %v1597, %v1603
        %vm1606 = vc.u32 %v1604, %v1600
        %v1607 = vsel %vm1606, 1, 0
        %v1608 = vadd.s32 %v1604, %v1600
        %v1609 = vadd.s32 %v1605, %v1607
        %v1610 = vadd.s32 %v1609, %v1599
        %v1611 = vadd.s32 %v1610, %v1601
        %v1612 = vmul.u32 %v1567, %v1558
        %v1613 = vadd.s32 %v1589, %v1608
        %vm1614 = vc.u32 %v1589, %v1608
        %v1615 = vadd.s32 %v1611, 1
        %v1616 = vsel %vm1614, %v1615, %v1611
        %v1617 = vadd.s32 %v1612, %v1616
        %v1618 = vadd.s32 %v1617, 536870912
        %v1619 = vshrl.u32 %v1618, 30
        %v1620 = vshll.u32 %v1619, 30
        %v1621 = vsub.s32 %v1617, %v1620
        %vm1622 = vcmp.lt.s32.totalorder %v1621, 0
        %v1623 = vsub.s32 0, %v1621
        %v1624 = vsel %vm1622, %v1623, %v1621
        %v1625 = vclz %v1624
        %v1626 = vsub.s32 %v1625, 2
        %vm1627 = vcmp.gt.s32.totalorder 0, %v1626
        %v1628 = vsel %vm1627, 0, %v1626
        %v1629 = vsub.s32 32, %v1628
        %v1630 = vshll.u32 %v1621, %v1628
        %v1631 = vshrl.u32 %v1613, %v1629
        %v1632 = vor.u32 %v1630, %v1631
        %v1633 = vsub.s32 4294967266, %v1628
        %v1634 = vadd.s32 %v1633, 127
        %v1635 = vshll.u32 %v1634, 23
        %v1636 = vor.u32 4788187, %v1635
        %v1637 = vand.u32 2147483647, %v1636
        %v1639 = vcvt.s32.f32 %v1632
        %v1640 = vmul.f32 %v1639, %v1637
        %v1641 = vxor.u32 %v1640, 2147483648
        %v1642 = vsel %vm1521, %v1641, %v1640
        %v1643 = vsub.s32 4, %v1619
        %v1644 = vsel %vm1521, %v1643, %v1619
        %v1645 = vsel %vm1520, %v271, %v1642
        %v1646 = vsel %vm1520, 0, %v1644
        %v1647 = vmul.f32 %v1645, %v1645
        %v1648 = vmul.f32 %v1647, -0.001358992
        %v1649 = vadd.f32 %v1648, 0.041655596
        %v1650 = vmul.f32 %v1647, %v1649
        %v1651 = vadd.f32 %v1650, -0.4999988
        %v1652 = vmul.f32 %v1647, %v1651
        %v1653 = vadd.f32 1.0, %v1652
        %v1654 = vmul.f32 %v1645, %v1645
        %v1655 = vmul.f32 %v1654, -0.00019511016
        %v1656 = vadd.f32 %v1655, 0.008332121
        %v1657 = vmul.f32 %v1654, %v1656
        %v1658 = vadd.f32 %v1657, -0.16666654
        %v1659 = vmul.f32 %v1654, %v1658
        %v1660 = vadd.f32 %v1659, 1.0
        %v1661 = vmul.f32 %v1660, %v1645
        %vm1662 = vweird.f32 %v271
        %v1663 = vadd.s32 %v1646, 3
        %v1664 = vand.u32 %v1663, 3
        %vm1665 = vcmp.lt.s32.totalorder %v1664, 2
        %vm1666 = vcmp.eq.s32.totalorder %v1664, 0
        %v1667 = vxor.u32 %v1661, 2147483648
        %v1668 = vsel %vm1666, %v1653, %v1667
        %vm1669 = vcmp.eq.s32.totalorder %v1664, 2
        %v1670 = vxor.u32 %v1653, 2147483648
        %v1671 = vsel %vm1669, %v1670, %v1661
        %v1672 = vsel %vm1665, %v1668, %v1671
        %v1673 = vsel %vm1662, nan, %v1672
        %v1674 = vand.u32 2147483647, %v272
        %vm1675 = vcmp.le.f32.partialorder %v1674, 0.7853982
        %vm1676 = vcmp.lt.s32.totalorder %v272, 0
        %v1677 = vand.u32 %v272, 2139095040
        %v1678 = vshrl.u32 %v1677, 23
        %v1679 = vsub.s32 %v1678, 127
        %v1680 = vand.u32 2147483647, %v272
        %v1681 = vand.u32 %v1680, 8388607
        %v1682 = vor.u32 %v1681, 8388608
        %v1683 = vsub.s32 0, %v1682
        %v1684 = vadd.s32 %v1679, 1
        %vm1685 = vcmp.gt.s32.totalorder %v1684, 0
        %v1686 = vsel %vm1685, %v1684, 0
        %v1687 = vshrl.u32 %v1686, 5
        %v1688 = vand.u32 %v1686, 31
        %v1689 = vsub.s32 32, %v1688
        %v1690 = vshrl.u32 683565275, %v1689
        %v1691 = vshll.u32 683565275, %v1688
        %v1692 = vshrl.u32 2475754826, %v1689
        %v1693 = vor.u32 %v1691, %v1692
        %v1694 = vshll.u32 2475754826, %v1688
        %v1695 = vshrl.u32 2131351028, %v1689
        %v1696 = vor.u32 %v1694, %v1695
        %v1697 = vshll.u32 2131351028, %v1688
        %v1698 = vshrl.u32 2102212464, %v1689
        %v1699 = vor.u32 %v1697, %v1698
        %v1700 = vshll.u32 2102212464, %v1688
        %v1701 = vshrl.u32 920167782, %v1689
        %v1702 = vor.u32 %v1700, %v1701
        %v1703 = vshll.u32 920167782, %v1688
        %v1704 = vshrl.u32 1326507024, %v1689
        %v1705 = vor.u32 %v1703, %v1704
        %vm1706 = vcmp.lt.s32.totalorder %v1687, 1
        %vm1707 = vcmp.lt.s32.totalorder %v1687, 2
        %vm1708 = vcmp.lt.s32.totalorder %v1687, 3
        %vm1709 = vcmp.lt.s32.totalorder %v1687, 4
        %v1710 = vsel %vm1706, %v1690, %v1693
        %v1711 = vsel %vm1709, %v1699, 2102212464
        %v1712 = vsel %vm1708, %v1696, %v1711
        %v1713 = vsel %vm1707, %v1710, %v1712
        %v1714 = vsel %vm1706, %v1693, %v1696
        %v1715 = vsel %vm1709, %v1702, 920167782
        %v1716 = vsel %vm1708, %v1699, %v1715
        %v1717 = vsel %vm1707, %v1714, %v1716
        %v1718 = vsel %vm1706, %v1696, %v1699
        %v1719 = vsel %vm1709, %v1705, 1326507024
        %v1720 = vsel %vm1708, %v1702, %v1719
        %v1721 = vsel %vm1707, %v1718, %v1720
        %v1722 = vshll.u32 %v1682, 8
        %v1723 = vand.u32 %v1722, 65535
        %v1724 = vshrl.u32 %v1722, 16
        %v1725 = vand.u32 %v1721, 65535
        %v1726 = vshrl.u32 %v1721, 16
        %v1727 = vmul.u32 %v1723, %v1725
        %v1728 = vmul.u32 %v1723, %v1726
        %v1729 = vmul.u32 %v1724, %v1725
        %v1730 = vmul.u32 %v1724, %v1726
        %v1731 = vshll.u32 %v1728, 16
        %v1732 = vshrl.u32 %v1728, 16
        %v1733 = vshll.u32 %v1729, 16
        %v1734 = vshrl.u32 %v1729, 16
        %vm1735 = vc.u32 %v1727, %v1731
        %v1736 = vsel %vm1735, 1, 0
        %v1737 = vadd.s32 %v1727, %v1731
        %v1738 = vadd.s32 %v1730, %v1736
        %vm1739 = vc.u32 %v1737, %v1733
        %v1740 = vsel %vm1739, 1, 0
        %v1741 = vadd.s32 %v1737, %v1733
        %v1742 = vadd.s32 %v1738, %v1740
        %v1743 = vadd.s32 %v1742, %v1732
        %v1744 = vadd.s32 %v1743, %v1734
        %v1745 = vand.u32 %v1722, 65535
        %v1746 = vshrl.u32 %v1722, 16
        %v1747 = vand.u32 %v1717, 65535
        %v1748 = vshrl.u32 %v1717, 16
        %v1749 = vmul.u32 %v1745, %v1747
        %v1750 = vmul.u32 %v1745, %v1748
        %v1751 = vmul.u32 %v1746, %v1747
        %v1752 = vmul.u32 %v1746, %v1748
        %v1753 = vshll.u32 %v1750, 16
        %v1754 = vshrl.u32 %v1750, 16
        %v1755 = vshll.u32 %v1751, 16
        %v1756 = vshrl.u32 %v1751, 16
        %vm1757 = vc.u32 %v1749, %v1753
        %v1758 = vsel %vm1757, 1, 0
        %v1759 = vadd.s32 %v1749, %v1753
        %v1760 = vadd.s32 %v1752, %v1758
        %vm1761 = vc.u32 %v1759, %v1755
        %v1762 = vsel %vm1761, 1, 0
        %v1763 = vadd.s32 %v1759, %v1755
        %v1764 = vadd.s32 %v1760, %v1762
        %v1765 = vadd.s32 %v1764, %v1754
        %v1766 = vadd.s32 %v1765, %v1756
        %v1767 = vmul.u32 %v1722, %v1713
        %v1768 = vadd.s32 %v1744, %v1763
        %vm1769 = vc.u32 %v1744, %v1763
        %v1770 = vadd.s32 %v1766, 1
        %v1771 = vsel %vm1769, %v1770, %v1766
        %v1772 = vadd.s32 %v1767, %v1771
        %v1773 = vadd.s32 %v1772, 536870912
        %v1774 = vshrl.u32 %v1773, 30
        %v1775 = vshll.u32 %v1774, 30
        %v1776 = vsub.s32 %v1772, %v1775
        %vm1777 = vcmp.lt.s32.totalorder %v1776, 0
        %v1778 = vsub.s32 0, %v1776
        %v1779 = vsel %vm1777, %v1778, %v1776
        %v1780 = vclz %v1779
        %v1781 = vsub.s32 %v1780, 2
        %vm1782 = vcmp.gt.s32.totalorder 0, %v1781
        %v1783 = vsel %vm1782, 0, %v1781
        %v1784 = vsub.s32 32, %v1783
        %v1785 = vshll.u32 %v1776, %v1783
        %v1786 = vshrl.u32 %v1768, %v1784
        %v1787 = vor.u32 %v1785, %v1786
        %v1788 = vsub.s32 4294967266, %v1783
        %v1789 = vadd.s32 %v1788, 127
        %v1790 = vshll.u32 %v1789, 23
        %v1791 = vor.u32 4788187, %v1790
        %v1792 = vand.u32 2147483647, %v1791
        %v1794 = vcvt.s32.f32 %v1787
        %v1795 = vmul.f32 %v1794, %v1792
        %v1796 = vxor.u32 %v1795, 2147483648
        %v1797 = vsel %vm1676, %v1796, %v1795
        %v1798 = vsub.s32 4, %v1774
        %v1799 = vsel %vm1676, %v1798, %v1774
        %v1800 = vsel %vm1675, %v272, %v1797
        %v1801 = vsel %vm1675, 0, %v1799
        %v1802 = vmul.f32 %v1800, %v1800
        %v1803 = vmul.f32 %v1802, -0.001358992
        %v1804 = vadd.f32 %v1803, 0.041655596
        %v1805 = vmul.f32 %v1802, %v1804
        %v1806 = vadd.f32 %v1805, -0.4999988
        %v1807 = vmul.f32 %v1802, %v1806
        %v1808 = vadd.f32 1.0, %v1807
        %v1809 = vmul.f32 %v1800, %v1800
        %v1810 = vmul.f32 %v1809, -0.00019511016
        %v1811 = vadd.f32 %v1810, 0.008332121
        %v1812 = vmul.f32 %v1809, %v1811
        %v1813 = vadd.f32 %v1812, -0.16666654
        %v1814 = vmul.f32 %v1809, %v1813
        %v1815 = vadd.f32 %v1814, 1.0
        %v1816 = vmul.f32 %v1815, %v1800
        %vm1817 = vweird.f32 %v272
        %v1818 = vadd.s32 %v1801, 3
        %v1819 = vand.u32 %v1818, 3
        %vm1820 = vcmp.lt.s32.totalorder %v1819, 2
        %vm1821 = vcmp.eq.s32.totalorder %v1819, 0
        %v1822 = vxor.u32 %v1816, 2147483648
        %v1823 = vsel %vm1821, %v1808, %v1822
        %vm1824 = vcmp.eq.s32.totalorder %v1819, 2
        %v1825 = vxor.u32 %v1808, 2147483648
        %v1826 = vsel %vm1824, %v1825, %v1816
        %v1827 = vsel %vm1820, %v1823, %v1826
        %v1828 = vsel %vm1817, nan, %v1827
        %v1829 = vand.u32 2147483647, %v273
        %vm1830 = vcmp.le.f32.partialorder %v1829, 0.7853982
        %vm1831 = vcmp.lt.s32.totalorder %v273, 0
        %v1832 = vand.u32 %v273, 2139095040
        %v1833 = vshrl.u32 %v1832, 23
        %v1834 = vsub.s32 %v1833, 127
        %v1835 = vand.u32 2147483647, %v273
        %v1836 = vand.u32 %v1835, 8388607
        %v1837 = vor.u32 %v1836, 8388608
        %v1838 = vsub.s32 0, %v1837
        %v1839 = vadd.s32 %v1834, 1
        %vm1840 = vcmp.gt.s32.totalorder %v1839, 0
        %v1841 = vsel %vm1840, %v1839, 0
        %v1842 = vshrl.u32 %v1841, 5
        %v1843 = vand.u32 %v1841, 31
        %v1844 = vsub.s32 32, %v1843
        %v1845 = vshrl.u32 683565275, %v1844
        %v1846 = vshll.u32 683565275, %v1843
        %v1847 = vshrl.u32 2475754826, %v1844
        %v1848 = vor.u32 %v1846, %v1847
        %v1849 = vshll.u32 2475754826, %v1843
        %v1850 = vshrl.u32 2131351028, %v1844
        %v1851 = vor.u32 %v1849, %v1850
        %v1852 = vshll.u32 2131351028, %v1843
        %v1853 = vshrl.u32 2102212464, %v1844
        %v1854 = vor.u32 %v1852, %v1853
        %v1855 = vshll.u32 2102212464, %v1843
        %v1856 = vshrl.u32 920167782, %v1844
        %v1857 = vor.u32 %v1855, %v1856
        %v1858 = vshll.u32 920167782, %v1843
        %v1859 = vshrl.u32 1326507024, %v1844
        %v1860 = vor.u32 %v1858, %v1859
        %vm1861 = vcmp.lt.s32.totalorder %v1842, 1
        %vm1862 = vcmp.lt.s32.totalorder %v1842, 2
        %vm1863 = vcmp.lt.s32.totalorder %v1842, 3
        %vm1864 = vcmp.lt.s32.totalorder %v1842, 4
        %v1865 = vsel %vm1861, %v1845, %v1848
        %v1866 = vsel %vm1864, %v1854, 2102212464
        %v1867 = vsel %vm1863, %v1851, %v1866
        %v1868 = vsel %vm1862, %v1865, %v1867
        %v1869 = vsel %vm1861, %v1848, %v1851
        %v1870 = vsel %vm1864, %v1857, 920167782
        %v1871 = vsel %vm1863, %v1854, %v1870
        %v1872 = vsel %vm1862, %v1869, %v1871
        %v1873 = vsel %vm1861, %v1851, %v1854
        %v1874 = vsel %vm1864, %v1860, 1326507024
        %v1875 = vsel %vm1863, %v1857, %v1874
        %v1876 = vsel %vm1862, %v1873, %v1875
        %v1877 = vshll.u32 %v1837, 8
        %v1878 = vand.u32 %v1877, 65535
        %v1879 = vshrl.u32 %v1877, 16
        %v1880 = vand.u32 %v1876, 65535
        %v1881 = vshrl.u32 %v1876, 16
        %v1882 = vmul.u32 %v1878, %v1880
        %v1883 = vmul.u32 %v1878, %v1881
        %v1884 = vmul.u32 %v1879, %v1880
        %v1885 = vmul.u32 %v1879, %v1881
        %v1886 = vshll.u32 %v1883, 16
        %v1887 = vshrl.u32 %v1883, 16
        %v1888 = vshll.u32 %v1884, 16
        %v1889 = vshrl.u32 %v1884, 16
        %vm1890 = vc.u32 %v1882, %v1886
        %v1891 = vsel %vm1890, 1, 0
        %v1892 = vadd.s32 %v1882, %v1886
        %v1893 = vadd.s32 %v1885, %v1891
        %vm1894 = vc.u32 %v1892, %v1888
        %v1895 = vsel %vm1894, 1, 0
        %v1896 = vadd.s32 %v1892, %v1888
        %v1897 = vadd.s32 %v1893, %v1895
        %v1898 = vadd.s32 %v1897, %v1887
        %v1899 = vadd.s32 %v1898, %v1889
        %v1900 = vand.u32 %v1877, 65535
        %v1901 = vshrl.u32 %v1877, 16
        %v1902 = vand.u32 %v1872, 65535
        %v1903 = vshrl.u32 %v1872, 16
        %v1904 = vmul.u32 %v1900, %v1902
        %v1905 = vmul.u32 %v1900, %v1903
        %v1906 = vmul.u32 %v1901, %v1902
        %v1907 = vmul.u32 %v1901, %v1903
        %v1908 = vshll.u32 %v1905, 16
        %v1909 = vshrl.u32 %v1905, 16
        %v1910 = vshll.u32 %v1906, 16
        %v1911 = vshrl.u32 %v1906, 16
        %vm1912 = vc.u32 %v1904, %v1908
        %v1913 = vsel %vm1912, 1, 0
        %v1914 = vadd.s32 %v1904, %v1908
        %v1915 = vadd.s32 %v1907, %v1913
        %vm1916 = vc.u32 %v1914, %v1910
        %v1917 = vsel %vm1916, 1, 0
        %v1918 = vadd.s32 %v1914, %v1910
        %v1919 = vadd.s32 %v1915, %v1917
        %v1920 = vadd.s32 %v1919, %v1909
        %v1921 = vadd.s32 %v1920, %v1911
        %v1922 = vmul.u32 %v1877, %v1868
        %v1923 = vadd.s32 %v1899, %v1918
        %vm1924 = vc.u32 %v1899, %v1918
        %v1925 = vadd.s32 %v1921, 1
        %v1926 = vsel %vm1924, %v1925, %v1921
        %v1927 = vadd.s32 %v1922, %v1926
        %v1928 = vadd.s32 %v1927, 536870912
        %v1929 = vshrl.u32 %v1928, 30
        %v1930 = vshll.u32 %v1929, 30
        %v1931 = vsub.s32 %v1927, %v1930
        %vm1932 = vcmp.lt.s32.totalorder %v1931, 0
        %v1933 = vsub.s32 0, %v1931
        %v1934 = vsel %vm1932, %v1933, %v1931
        %v1935 = vclz %v1934
        %v1936 = vsub.s32 %v1935, 2
        %vm1937 = vcmp.gt.s32.totalorder 0, %v1936
        %v1938 = vsel %vm1937, 0, %v1936
        %v1939 = vsub.s32 32, %v1938
        %v1940 = vshll.u32 %v1931, %v1938
        %v1941 = vshrl.u32 %v1923, %v1939
        %v1942 = vor.u32 %v1940, %v1941
        %v1943 = vsub.s32 4294967266, %v1938
        %v1944 = vadd.s32 %v1943, 127
        %v1945 = vshll.u32 %v1944, 23
        %v1946 = vor.u32 4788187, %v1945
        %v1947 = vand.u32 2147483647, %v1946
        %v1949 = vcvt.s32.f32 %v1942
        %v1950 = vmul.f32 %v1949, %v1947
        %v1951 = vxor.u32 %v1950, 2147483648
        %v1952 = vsel %vm1831, %v1951, %v1950
        %v1953 = vsub.s32 4, %v1929
        %v1954 = vsel %vm1831, %v1953, %v1929
        %v1955 = vsel %vm1830, %v273, %v1952
        %v1956 = vsel %vm1830, 0, %v1954
        %v1957 = vmul.f32 %v1955, %v1955
        %v1958 = vmul.f32 %v1957, -0.001358992
        %v1959 = vadd.f32 %v1958, 0.041655596
        %v1960 = vmul.f32 %v1957, %v1959
        %v1961 = vadd.f32 %v1960, -0.4999988
        %v1962 = vmul.f32 %v1957, %v1961
        %v1963 = vadd.f32 1.0, %v1962
        %v1964 = vmul.f32 %v1955, %v1955
        %v1965 = vmul.f32 %v1964, -0.00019511016
        %v1966 = vadd.f32 %v1965, 0.008332121
        %v1967 = vmul.f32 %v1964, %v1966
        %v1968 = vadd.f32 %v1967, -0.16666654
        %v1969 = vmul.f32 %v1964, %v1968
        %v1970 = vadd.f32 %v1969, 1.0
        %v1971 = vmul.f32 %v1970, %v1955
        %vm1972 = vweird.f32 %v273
        %v1973 = vadd.s32 %v1956, 3
        %v1974 = vand.u32 %v1973, 3
        %vm1975 = vcmp.lt.s32.totalorder %v1974, 2
        %vm1976 = vcmp.eq.s32.totalorder %v1974, 0
        %v1977 = vxor.u32 %v1971, 2147483648
        %v1978 = vsel %vm1976, %v1963, %v1977
        %vm1979 = vcmp.eq.s32.totalorder %v1974, 2
        %v1980 = vxor.u32 %v1963, 2147483648
        %v1981 = vsel %vm1979, %v1980, %v1971
        %v1982 = vsel %vm1975, %v1978, %v1981
        %v1983 = vsel %vm1972, nan, %v1982
        %v1984 = vand.u32 2147483647, %v274
        %vm1985 = vcmp.le.f32.partialorder %v1984, 0.7853982
        %vm1986 = vcmp.lt.s32.totalorder %v274, 0
        %v1987 = vand.u32 %v274, 2139095040
        %v1988 = vshrl.u32 %v1987, 23
        %v1989 = vsub.s32 %v1988, 127
        %v1990 = vand.u32 2147483647, %v274
        %v1991 = vand.u32 %v1990, 8388607
        %v1992 = vor.u32 %v1991, 8388608
        %v1993 = vsub.s32 0, %v1992
        %v1994 = vadd.s32 %v1989, 1
        %vm1995 = vcmp.gt.s32.totalorder %v1994, 0
        %v1996 = vsel %vm1995, %v1994, 0
        %v1997 = vshrl.u32 %v1996, 5
        %v1998 = vand.u32 %v1996, 31
        %v1999 = vsub.s32 32, %v1998
        %v2000 = vshrl.u32 683565275, %v1999
        %v2001 = vshll.u32 683565275, %v1998
        %v2002 = vshrl.u32 2475754826, %v1999
        %v2003 = vor.u32 %v2001, %v2002
        %v2004 = vshll.u32 2475754826, %v1998
        %v2005 = vshrl.u32 2131351028, %v1999
        %v2006 = vor.u32 %v2004, %v2005
        %v2007 = vshll.u32 2131351028, %v1998
        %v2008 = vshrl.u32 2102212464, %v1999
        %v2009 = vor.u32 %v2007, %v2008
        %v2010 = vshll.u32 2102212464, %v1998
        %v2011 = vshrl.u32 920167782, %v1999
        %v2012 = vor.u32 %v2010, %v2011
        %v2013 = vshll.u32 920167782, %v1998
        %v2014 = vshrl.u32 1326507024, %v1999
        %v2015 = vor.u32 %v2013, %v2014
        %vm2016 = vcmp.lt.s32.totalorder %v1997, 1
        %vm2017 = vcmp.lt.s32.totalorder %v1997, 2
        %vm2018 = vcmp.lt.s32.totalorder %v1997, 3
        %vm2019 = vcmp.lt.s32.totalorder %v1997, 4
        %v2020 = vsel %vm2016, %v2000, %v2003
        %v2021 = vsel %vm2019, %v2009, 2102212464
        %v2022 = vsel %vm2018, %v2006, %v2021
        %v2023 = vsel %vm2017, %v2020, %v2022
        %v2024 = vsel %vm2016, %v2003, %v2006
        %v2025 = vsel %vm2019, %v2012, 920167782
        %v2026 = vsel %vm2018, %v2009, %v2025
        %v2027 = vsel %vm2017, %v2024, %v2026
        %v2028 = vsel %vm2016, %v2006, %v2009
        %v2029 = vsel %vm2019, %v2015, 1326507024
        %v2030 = vsel %vm2018, %v2012, %v2029
        %v2031 = vsel %vm2017, %v2028, %v2030
        %v2032 = vshll.u32 %v1992, 8
        %v2033 = vand.u32 %v2032, 65535
        %v2034 = vshrl.u32 %v2032, 16
        %v2035 = vand.u32 %v2031, 65535
        %v2036 = vshrl.u32 %v2031, 16
        %v2037 = vmul.u32 %v2033, %v2035
        %v2038 = vmul.u32 %v2033, %v2036
        %v2039 = vmul.u32 %v2034, %v2035
        %v2040 = vmul.u32 %v2034, %v2036
        %v2041 = vshll.u32 %v2038, 16
        %v2042 = vshrl.u32 %v2038, 16
        %v2043 = vshll.u32 %v2039, 16
        %v2044 = vshrl.u32 %v2039, 16
        %vm2045 = vc.u32 %v2037, %v2041
        %v2046 = vsel %vm2045, 1, 0
        %v2047 = vadd.s32 %v2037, %v2041
        %v2048 = vadd.s32 %v2040, %v2046
        %vm2049 = vc.u32 %v2047, %v2043
        %v2050 = vsel %vm2049, 1, 0
        %v2051 = vadd.s32 %v2047, %v2043
        %v2052 = vadd.s32 %v2048, %v2050
        %v2053 = vadd.s32 %v2052, %v2042
        %v2054 = vadd.s32 %v2053, %v2044
        %v2055 = vand.u32 %v2032, 65535
        %v2056 = vshrl.u32 %v2032, 16
        %v2057 = vand.u32 %v2027, 65535
        %v2058 = vshrl.u32 %v2027, 16
        %v2059 = vmul.u32 %v2055, %v2057
        %v2060 = vmul.u32 %v2055, %v2058
        %v2061 = vmul.u32 %v2056, %v2057
        %v2062 = vmul.u32 %v2056, %v2058
        %v2063 = vshll.u32 %v2060, 16
        %v2064 = vshrl.u32 %v2060, 16
        %v2065 = vshll.u32 %v2061, 16
        %v2066 = vshrl.u32 %v2061, 16
        %vm2067 = vc.u32 %v2059, %v2063
        %v2068 = vsel %vm2067, 1, 0
        %v2069 = vadd.s32 %v2059, %v2063
        %v2070 = vadd.s32 %v2062, %v2068
        %vm2071 = vc.u32 %v2069, %v2065
        %v2072 = vsel %vm2071, 1, 0
        %v2073 = vadd.s32 %v2069, %v2065
        %v2074 = vadd.s32 %v2070, %v2072
        %v2075 = vadd.s32 %v2074, %v2064
        %v2076 = vadd.s32 %v2075, %v2066
        %v2077 = vmul.u32 %v2032, %v2023
        %v2078 = vadd.s32 %v2054, %v2073
        %vm2079 = vc.u32 %v2054, %v2073
        %v2080 = vadd.s32 %v2076, 1
        %v2081 = vsel %vm2079, %v2080, %v2076
        %v2082 = vadd.s32 %v2077, %v2081
        %v2083 = vadd.s32 %v2082, 536870912
        %v2084 = vshrl.u32 %v2083, 30
        %v2085 = vshll.u32 %v2084, 30
        %v2086 = vsub.s32 %v2082, %v2085
        %vm2087 = vcmp.lt.s32.totalorder %v2086, 0
        %v2088 = vsub.s32 0, %v2086
        %v2089 = vsel %vm2087, %v2088, %v2086
        %v2090 = vclz %v2089
        %v2091 = vsub.s32 %v2090, 2
        %vm2092 = vcmp.gt.s32.totalorder 0, %v2091
        %v2093 = vsel %vm2092, 0, %v2091
        %v2094 = vsub.s32 32, %v2093
        %v2095 = vshll.u32 %v2086, %v2093
        %v2096 = vshrl.u32 %v2078, %v2094
        %v2097 = vor.u32 %v2095, %v2096
        %v2098 = vsub.s32 4294967266, %v2093
        %v2099 = vadd.s32 %v2098, 127
        %v2100 = vshll.u32 %v2099, 23
        %v2101 = vor.u32 4788187, %v2100
        %v2102 = vand.u32 2147483647, %v2101
        %v2104 = vcvt.s32.f32 %v2097
        %v2105 = vmul.f32 %v2104, %v2102
        %v2106 = vxor.u32 %v2105, 2147483648
        %v2107 = vsel %vm1986, %v2106, %v2105
        %v2108 = vsub.s32 4, %v2084
        %v2109 = vsel %vm1986, %v2108, %v2084
        %v2110 = vsel %vm1985, %v274, %v2107
        %v2111 = vsel %vm1985, 0, %v2109
        %v2112 = vmul.f32 %v2110, %v2110
        %v2113 = vmul.f32 %v2112, -0.001358992
        %v2114 = vadd.f32 %v2113, 0.041655596
        %v2115 = vmul.f32 %v2112, %v2114
        %v2116 = vadd.f32 %v2115, -0.4999988
        %v2117 = vmul.f32 %v2112, %v2116
        %v2118 = vadd.f32 1.0, %v2117
        %v2119 = vmul.f32 %v2110, %v2110
        %v2120 = vmul.f32 %v2119, -0.00019511016
        %v2121 = vadd.f32 %v2120, 0.008332121
        %v2122 = vmul.f32 %v2119, %v2121
        %v2123 = vadd.f32 %v2122, -0.16666654
        %v2124 = vmul.f32 %v2119, %v2123
        %v2125 = vadd.f32 %v2124, 1.0
        %v2126 = vmul.f32 %v2125, %v2110
        %vm2127 = vweird.f32 %v274
        %v2128 = vadd.s32 %v2111, 3
        %v2129 = vand.u32 %v2128, 3
        %vm2130 = vcmp.lt.s32.totalorder %v2129, 2
        %vm2131 = vcmp.eq.s32.totalorder %v2129, 0
        %v2132 = vxor.u32 %v2126, 2147483648
        %v2133 = vsel %vm2131, %v2118, %v2132
        %vm2134 = vcmp.eq.s32.totalorder %v2129, 2
        %v2135 = vxor.u32 %v2118, 2147483648
        %v2136 = vsel %vm2134, %v2135, %v2126
        %v2137 = vsel %vm2130, %v2133, %v2136
        %v2138 = vsel %vm2127, nan, %v2137
        %v2139 = vand.u32 2147483647, %v275
        %vm2140 = vcmp.le.f32.partialorder %v2139, 0.7853982
        %vm2141 = vcmp.lt.s32.totalorder %v275, 0
        %v2142 = vand.u32 %v275, 2139095040
        %v2143 = vshrl.u32 %v2142, 23
        %v2144 = vsub.s32 %v2143, 127
        %v2145 = vand.u32 2147483647, %v275
        %v2146 = vand.u32 %v2145, 8388607
        %v2147 = vor.u32 %v2146, 8388608
        %v2148 = vsub.s32 0, %v2147
        %v2149 = vadd.s32 %v2144, 1
        %vm2150 = vcmp.gt.s32.totalorder %v2149, 0
        %v2151 = vsel %vm2150, %v2149, 0
        %v2152 = vshrl.u32 %v2151, 5
        %v2153 = vand.u32 %v2151, 31
        %v2154 = vsub.s32 32, %v2153
        %v2155 = vshrl.u32 683565275, %v2154
        %v2156 = vshll.u32 683565275, %v2153
        %v2157 = vshrl.u32 2475754826, %v2154
        %v2158 = vor.u32 %v2156, %v2157
        %v2159 = vshll.u32 2475754826, %v2153
        %v2160 = vshrl.u32 2131351028, %v2154
        %v2161 = vor.u32 %v2159, %v2160
        %v2162 = vshll.u32 2131351028, %v2153
        %v2163 = vshrl.u32 2102212464, %v2154
        %v2164 = vor.u32 %v2162, %v2163
        %v2165 = vshll.u32 2102212464, %v2153
        %v2166 = vshrl.u32 920167782, %v2154
        %v2167 = vor.u32 %v2165, %v2166
        %v2168 = vshll.u32 920167782, %v2153
        %v2169 = vshrl.u32 1326507024, %v2154
        %v2170 = vor.u32 %v2168, %v2169
        %vm2171 = vcmp.lt.s32.totalorder %v2152, 1
        %vm2172 = vcmp.lt.s32.totalorder %v2152, 2
        %vm2173 = vcmp.lt.s32.totalorder %v2152, 3
        %vm2174 = vcmp.lt.s32.totalorder %v2152, 4
        %v2175 = vsel %vm2171, %v2155, %v2158
        %v2176 = vsel %vm2174, %v2164, 2102212464
        %v2177 = vsel %vm2173, %v2161, %v2176
        %v2178 = vsel %vm2172, %v2175, %v2177
        %v2179 = vsel %vm2171, %v2158, %v2161
        %v2180 = vsel %vm2174, %v2167, 920167782
        %v2181 = vsel %vm2173, %v2164, %v2180
        %v2182 = vsel %vm2172, %v2179, %v2181
        %v2183 = vsel %vm2171, %v2161, %v2164
        %v2184 = vsel %vm2174, %v2170, 1326507024
        %v2185 = vsel %vm2173, %v2167, %v2184
        %v2186 = vsel %vm2172, %v2183, %v2185
        %v2187 = vshll.u32 %v2147, 8
        %v2188 = vand.u32 %v2187, 65535
        %v2189 = vshrl.u32 %v2187, 16
        %v2190 = vand.u32 %v2186, 65535
        %v2191 = vshrl.u32 %v2186, 16
        %v2192 = vmul.u32 %v2188, %v2190
        %v2193 = vmul.u32 %v2188, %v2191
        %v2194 = vmul.u32 %v2189, %v2190
        %v2195 = vmul.u32 %v2189, %v2191
        %v2196 = vshll.u32 %v2193, 16
        %v2197 = vshrl.u32 %v2193, 16
        %v2198 = vshll.u32 %v2194, 16
        %v2199 = vshrl.u32 %v2194, 16
        %vm2200 = vc.u32 %v2192, %v2196
        %v2201 = vsel %vm2200, 1, 0
        %v2202 = vadd.s32 %v2192, %v2196
        %v2203 = vadd.s32 %v2195, %v2201
        %vm2204 = vc.u32 %v2202, %v2198
        %v2205 = vsel %vm2204, 1, 0
        %v2206 = vadd.s32 %v2202, %v2198
        %v2207 = vadd.s32 %v2203, %v2205
        %v2208 = vadd.s32 %v2207, %v2197
        %v2209 = vadd.s32 %v2208, %v2199
        %v2210 = vand.u32 %v2187, 65535
        %v2211 = vshrl.u32 %v2187, 16
        %v2212 = vand.u32 %v2182, 65535
        %v2213 = vshrl.u32 %v2182, 16
        %v2214 = vmul.u32 %v2210, %v2212
        %v2215 = vmul.u32 %v2210, %v2213
        %v2216 = vmul.u32 %v2211, %v2212
        %v2217 = vmul.u32 %v2211, %v2213
        %v2218 = vshll.u32 %v2215, 16
        %v2219 = vshrl.u32 %v2215, 16
        %v2220 = vshll.u32 %v2216, 16
        %v2221 = vshrl.u32 %v2216, 16
        %vm2222 = vc.u32 %v2214, %v2218
        %v2223 = vsel %vm2222, 1, 0
        %v2224 = vadd.s32 %v2214, %v2218
        %v2225 = vadd.s32 %v2217, %v2223
        %vm2226 = vc.u32 %v2224, %v2220
        %v2227 = vsel %vm2226, 1, 0
        %v2228 = vadd.s32 %v2224, %v2220
        %v2229 = vadd.s32 %v2225, %v2227
        %v2230 = vadd.s32 %v2229, %v2219
        %v2231 = vadd.s32 %v2230, %v2221
        %v2232 = vmul.u32 %v2187, %v2178
        %v2233 = vadd.s32 %v2209, %v2228
        %vm2234 = vc.u32 %v2209, %v2228
        %v2235 = vadd.s32 %v2231, 1
        %v2236 = vsel %vm2234, %v2235, %v2231
        %v2237 = vadd.s32 %v2232, %v2236
        %v2238 = vadd.s32 %v2237, 536870912
        %v2239 = vshrl.u32 %v2238, 30
        %v2240 = vshll.u32 %v2239, 30
        %v2241 = vsub.s32 %v2237, %v2240
        %vm2242 = vcmp.lt.s32.totalorder %v2241, 0
        %v2243 = vsub.s32 0, %v2241
        %v2244 = vsel %vm2242, %v2243, %v2241
        %v2245 = vclz %v2244
        %v2246 = vsub.s32 %v2245, 2
        %vm2247 = vcmp.gt.s32.totalorder 0, %v2246
        %v2248 = vsel %vm2247, 0, %v2246
        %v2249 = vsub.s32 32, %v2248
        %v2250 = vshll.u32 %v2241, %v2248
        %v2251 = vshrl.u32 %v2233, %v2249
        %v2252 = vor.u32 %v2250, %v2251
        %v2253 = vsub.s32 4294967266, %v2248
        %v2254 = vadd.s32 %v2253, 127
        %v2255 = vshll.u32 %v2254, 23
        %v2256 = vor.u32 4788187, %v2255
        %v2257 = vand.u32 2147483647, %v2256
        %v2259 = vcvt.s32.f32 %v2252
        %v2260 = vmul.f32 %v2259, %v2257
        %v2261 = vxor.u32 %v2260, 2147483648
        %v2262 = vsel %vm2141, %v2261, %v2260
        %v2263 = vsub.s32 4, %v2239
        %v2264 = vsel %vm2141, %v2263, %v2239
        %v2265 = vsel %vm2140, %v275, %v2262
        %v2266 = vsel %vm2140, 0, %v2264
        %v2267 = vmul.f32 %v2265, %v2265
        %v2268 = vmul.f32 %v2267, -0.001358992
        %v2269 = vadd.f32 %v2268, 0.041655596
        %v2270 = vmul.f32 %v2267, %v2269
        %v2271 = vadd.f32 %v2270, -0.4999988
        %v2272 = vmul.f32 %v2267, %v2271
        %v2273 = vadd.f32 1.0, %v2272
        %v2274 = vmul.f32 %v2265, %v2265
        %v2275 = vmul.f32 %v2274, -0.00019511016
        %v2276 = vadd.f32 %v2275, 0.008332121
        %v2277 = vmul.f32 %v2274, %v2276
        %v2278 = vadd.f32 %v2277, -0.16666654
        %v2279 = vmul.f32 %v2274, %v2278
        %v2280 = vadd.f32 %v2279, 1.0
        %v2281 = vmul.f32 %v2280, %v2265
        %vm2282 = vweird.f32 %v275
        %v2283 = vadd.s32 %v2266, 3
        %v2284 = vand.u32 %v2283, 3
        %vm2285 = vcmp.lt.s32.totalorder %v2284, 2
        %vm2286 = vcmp.eq.s32.totalorder %v2284, 0
        %v2287 = vxor.u32 %v2281, 2147483648
        %v2288 = vsel %vm2286, %v2273, %v2287
        %vm2289 = vcmp.eq.s32.totalorder %v2284, 2
        %v2290 = vxor.u32 %v2273, 2147483648
        %v2291 = vsel %vm2289, %v2290, %v2281
        %v2292 = vsel %vm2285, %v2288, %v2291
        %v2293 = vsel %vm2282, nan, %v2292
        %v2294 = vand.u32 2147483647, %v276
        %vm2295 = vcmp.le.f32.partialorder %v2294, 0.7853982
        %vm2296 = vcmp.lt.s32.totalorder %v276, 0
        %v2297 = vand.u32 %v276, 2139095040
        %v2298 = vshrl.u32 %v2297, 23
        %v2299 = vsub.s32 %v2298, 127
        %v2300 = vand.u32 2147483647, %v276
        %v2301 = vand.u32 %v2300, 8388607
        %v2302 = vor.u32 %v2301, 8388608
        %v2303 = vsub.s32 0, %v2302
        %v2304 = vadd.s32 %v2299, 1
        %vm2305 = vcmp.gt.s32.totalorder %v2304, 0
        %v2306 = vsel %vm2305, %v2304, 0
        %v2307 = vshrl.u32 %v2306, 5
        %v2308 = vand.u32 %v2306, 31
        %v2309 = vsub.s32 32, %v2308
        %v2310 = vshrl.u32 683565275, %v2309
        %v2311 = vshll.u32 683565275, %v2308
        %v2312 = vshrl.u32 2475754826, %v2309
        %v2313 = vor.u32 %v2311, %v2312
        %v2314 = vshll.u32 2475754826, %v2308
        %v2315 = vshrl.u32 2131351028, %v2309
        %v2316 = vor.u32 %v2314, %v2315
        %v2317 = vshll.u32 2131351028, %v2308
        %v2318 = vshrl.u32 2102212464, %v2309
        %v2319 = vor.u32 %v2317, %v2318
        %v2320 = vshll.u32 2102212464, %v2308
        %v2321 = vshrl.u32 920167782, %v2309
        %v2322 = vor.u32 %v2320, %v2321
        %v2323 = vshll.u32 920167782, %v2308
        %v2324 = vshrl.u32 1326507024, %v2309
        %v2325 = vor.u32 %v2323, %v2324
        %vm2326 = vcmp.lt.s32.totalorder %v2307, 1
        %vm2327 = vcmp.lt.s32.totalorder %v2307, 2
        %vm2328 = vcmp.lt.s32.totalorder %v2307, 3
        %vm2329 = vcmp.lt.s32.totalorder %v2307, 4
        %v2330 = vsel %vm2326, %v2310, %v2313
        %v2331 = vsel %vm2329, %v2319, 2102212464
        %v2332 = vsel %vm2328, %v2316, %v2331
        %v2333 = vsel %vm2327, %v2330, %v2332
        %v2334 = vsel %vm2326, %v2313, %v2316
        %v2335 = vsel %vm2329, %v2322, 920167782
        %v2336 = vsel %vm2328, %v2319, %v2335
        %v2337 = vsel %vm2327, %v2334, %v2336
        %v2338 = vsel %vm2326, %v2316, %v2319
        %v2339 = vsel %vm2329, %v2325, 1326507024
        %v2340 = vsel %vm2328, %v2322, %v2339
        %v2341 = vsel %vm2327, %v2338, %v2340
        %v2342 = vshll.u32 %v2302, 8
        %v2343 = vand.u32 %v2342, 65535
        %v2344 = vshrl.u32 %v2342, 16
        %v2345 = vand.u32 %v2341, 65535
        %v2346 = vshrl.u32 %v2341, 16
        %v2347 = vmul.u32 %v2343, %v2345
        %v2348 = vmul.u32 %v2343, %v2346
        %v2349 = vmul.u32 %v2344, %v2345
        %v2350 = vmul.u32 %v2344, %v2346
        %v2351 = vshll.u32 %v2348, 16
        %v2352 = vshrl.u32 %v2348, 16
        %v2353 = vshll.u32 %v2349, 16
        %v2354 = vshrl.u32 %v2349, 16
        %vm2355 = vc.u32 %v2347, %v2351
        %v2356 = vsel %vm2355, 1, 0
        %v2357 = vadd.s32 %v2347, %v2351
        %v2358 = vadd.s32 %v2350, %v2356
        %vm2359 = vc.u32 %v2357, %v2353
        %v2360 = vsel %vm2359, 1, 0
        %v2361 = vadd.s32 %v2357, %v2353
        %v2362 = vadd.s32 %v2358, %v2360
        %v2363 = vadd.s32 %v2362, %v2352
        %v2364 = vadd.s32 %v2363, %v2354
        %v2365 = vand.u32 %v2342, 65535
        %v2366 = vshrl.u32 %v2342, 16
        %v2367 = vand.u32 %v2337, 65535
        %v2368 = vshrl.u32 %v2337, 16
        %v2369 = vmul.u32 %v2365, %v2367
        %v2370 = vmul.u32 %v2365, %v2368
        %v2371 = vmul.u32 %v2366, %v2367
        %v2372 = vmul.u32 %v2366, %v2368
        %v2373 = vshll.u32 %v2370, 16
        %v2374 = vshrl.u32 %v2370, 16
        %v2375 = vshll.u32 %v2371, 16
        %v2376 = vshrl.u32 %v2371, 16
        %vm2377 = vc.u32 %v2369, %v2373
        %v2378 = vsel %vm2377, 1, 0
        %v2379 = vadd.s32 %v2369, %v2373
        %v2380 = vadd.s32 %v2372, %v2378
        %vm2381 = vc.u32 %v2379, %v2375
        %v2382 = vsel %vm2381, 1, 0
        %v2383 = vadd.s32 %v2379, %v2375
        %v2384 = vadd.s32 %v2380, %v2382
        %v2385 = vadd.s32 %v2384, %v2374
        %v2386 = vadd.s32 %v2385, %v2376
        %v2387 = vmul.u32 %v2342, %v2333
        %v2388 = vadd.s32 %v2364, %v2383
        %vm2389 = vc.u32 %v2364, %v2383
        %v2390 = vadd.s32 %v2386, 1
        %v2391 = vsel %vm2389, %v2390, %v2386
        %v2392 = vadd.s32 %v2387, %v2391
        %v2393 = vadd.s32 %v2392, 536870912
        %v2394 = vshrl.u32 %v2393, 30
        %v2395 = vshll.u32 %v2394, 30
        %v2396 = vsub.s32 %v2392, %v2395
        %vm2397 = vcmp.lt.s32.totalorder %v2396, 0
        %v2398 = vsub.s32 0, %v2396
        %v2399 = vsel %vm2397, %v2398, %v2396
        %v2400 = vclz %v2399
        %v2401 = vsub.s32 %v2400, 2
        %vm2402 = vcmp.gt.s32.totalorder 0, %v2401
        %v2403 = vsel %vm2402, 0, %v2401
        %v2404 = vsub.s32 32, %v2403
        %v2405 = vshll.u32 %v2396, %v2403
        %v2406 = vshrl.u32 %v2388, %v2404
        %v2407 = vor.u32 %v2405, %v2406
        %v2408 = vsub.s32 4294967266, %v2403
        %v2409 = vadd.s32 %v2408, 127
        %v2410 = vshll.u32 %v2409, 23
        %v2411 = vor.u32 4788187, %v2410
        %v2412 = vand.u32 2147483647, %v2411
        %v2414 = vcvt.s32.f32 %v2407
        %v2415 = vmul.f32 %v2414, %v2412
        %v2416 = vxor.u32 %v2415, 2147483648
        %v2417 = vsel %vm2296, %v2416, %v2415
        %v2418 = vsub.s32 4, %v2394
        %v2419 = vsel %vm2296, %v2418, %v2394
        %v2420 = vsel %vm2295, %v276, %v2417
        %v2421 = vsel %vm2295, 0, %v2419
        %v2422 = vmul.f32 %v2420, %v2420
        %v2423 = vmul.f32 %v2422, -0.001358992
        %v2424 = vadd.f32 %v2423, 0.041655596
        %v2425 = vmul.f32 %v2422, %v2424
        %v2426 = vadd.f32 %v2425, -0.4999988
        %v2427 = vmul.f32 %v2422, %v2426
        %v2428 = vadd.f32 1.0, %v2427
        %v2429 = vmul.f32 %v2420, %v2420
        %v2430 = vmul.f32 %v2429, -0.00019511016
        %v2431 = vadd.f32 %v2430, 0.008332121
        %v2432 = vmul.f32 %v2429, %v2431
        %v2433 = vadd.f32 %v2432, -0.16666654
        %v2434 = vmul.f32 %v2429, %v2433
        %v2435 = vadd.f32 %v2434, 1.0
        %v2436 = vmul.f32 %v2435, %v2420
        %vm2437 = vweird.f32 %v276
        %v2438 = vadd.s32 %v2421, 3
        %v2439 = vand.u32 %v2438, 3
        %vm2440 = vcmp.lt.s32.totalorder %v2439, 2
        %vm2441 = vcmp.eq.s32.totalorder %v2439, 0
        %v2442 = vxor.u32 %v2436, 2147483648
        %v2443 = vsel %vm2441, %v2428, %v2442
        %vm2444 = vcmp.eq.s32.totalorder %v2439, 2
        %v2445 = vxor.u32 %v2428, 2147483648
        %v2446 = vsel %vm2444, %v2445, %v2436
        %v2447 = vsel %vm2440, %v2443, %v2446
        %v2448 = vsel %vm2437, nan, %v2447
        %v2449 = vand.u32 2147483647, %v277
        %vm2450 = vcmp.le.f32.partialorder %v2449, 0.7853982
        %vm2451 = vcmp.lt.s32.totalorder %v277, 0
        %v2452 = vand.u32 %v277, 2139095040
        %v2453 = vshrl.u32 %v2452, 23
        %v2454 = vsub.s32 %v2453, 127
        %v2455 = vand.u32 2147483647, %v277
        %v2456 = vand.u32 %v2455, 8388607
        %v2457 = vor.u32 %v2456, 8388608
        %v2458 = vsub.s32 0, %v2457
        %v2459 = vadd.s32 %v2454, 1
        %vm2460 = vcmp.gt.s32.totalorder %v2459, 0
        %v2461 = vsel %vm2460, %v2459, 0
        %v2462 = vshrl.u32 %v2461, 5
        %v2463 = vand.u32 %v2461, 31
        %v2464 = vsub.s32 32, %v2463
        %v2465 = vshrl.u32 683565275, %v2464
        %v2466 = vshll.u32 683565275, %v2463
        %v2467 = vshrl.u32 2475754826, %v2464
        %v2468 = vor.u32 %v2466, %v2467
        %v2469 = vshll.u32 2475754826, %v2463
        %v2470 = vshrl.u32 2131351028, %v2464
        %v2471 = vor.u32 %v2469, %v2470
        %v2472 = vshll.u32 2131351028, %v2463
        %v2473 = vshrl.u32 2102212464, %v2464
        %v2474 = vor.u32 %v2472, %v2473
        %v2475 = vshll.u32 2102212464, %v2463
        %v2476 = vshrl.u32 920167782, %v2464
        %v2477 = vor.u32 %v2475, %v2476
        %v2478 = vshll.u32 920167782, %v2463
        %v2479 = vshrl.u32 1326507024, %v2464
        %v2480 = vor.u32 %v2478, %v2479
        %vm2481 = vcmp.lt.s32.totalorder %v2462, 1
        %vm2482 = vcmp.lt.s32.totalorder %v2462, 2
        %vm2483 = vcmp.lt.s32.totalorder %v2462, 3
        %vm2484 = vcmp.lt.s32.totalorder %v2462, 4
        %v2485 = vsel %vm2481, %v2465, %v2468
        %v2486 = vsel %vm2484, %v2474, 2102212464
        %v2487 = vsel %vm2483, %v2471, %v2486
        %v2488 = vsel %vm2482, %v2485, %v2487
        %v2489 = vsel %vm2481, %v2468, %v2471
        %v2490 = vsel %vm2484, %v2477, 920167782
        %v2491 = vsel %vm2483, %v2474, %v2490
        %v2492 = vsel %vm2482, %v2489, %v2491
        %v2493 = vsel %vm2481, %v2471, %v2474
        %v2494 = vsel %vm2484, %v2480, 1326507024
        %v2495 = vsel %vm2483, %v2477, %v2494
        %v2496 = vsel %vm2482, %v2493, %v2495
        %v2497 = vshll.u32 %v2457, 8
        %v2498 = vand.u32 %v2497, 65535
        %v2499 = vshrl.u32 %v2497, 16
        %v2500 = vand.u32 %v2496, 65535
        %v2501 = vshrl.u32 %v2496, 16
        %v2502 = vmul.u32 %v2498, %v2500
        %v2503 = vmul.u32 %v2498, %v2501
        %v2504 = vmul.u32 %v2499, %v2500
        %v2505 = vmul.u32 %v2499, %v2501
        %v2506 = vshll.u32 %v2503, 16
        %v2507 = vshrl.u32 %v2503, 16
        %v2508 = vshll.u32 %v2504, 16
        %v2509 = vshrl.u32 %v2504, 16
        %vm2510 = vc.u32 %v2502, %v2506
        %v2511 = vsel %vm2510, 1, 0
        %v2512 = vadd.s32 %v2502, %v2506
        %v2513 = vadd.s32 %v2505, %v2511
        %vm2514 = vc.u32 %v2512, %v2508
        %v2515 = vsel %vm2514, 1, 0
        %v2516 = vadd.s32 %v2512, %v2508
        %v2517 = vadd.s32 %v2513, %v2515
        %v2518 = vadd.s32 %v2517, %v2507
        %v2519 = vadd.s32 %v2518, %v2509
        %v2520 = vand.u32 %v2497, 65535
        %v2521 = vshrl.u32 %v2497, 16
        %v2522 = vand.u32 %v2492, 65535
        %v2523 = vshrl.u32 %v2492, 16
        %v2524 = vmul.u32 %v2520, %v2522
        %v2525 = vmul.u32 %v2520, %v2523
        %v2526 = vmul.u32 %v2521, %v2522
        %v2527 = vmul.u32 %v2521, %v2523
        %v2528 = vshll.u32 %v2525, 16
        %v2529 = vshrl.u32 %v2525, 16
        %v2530 = vshll.u32 %v2526, 16
        %v2531 = vshrl.u32 %v2526, 16
        %vm2532 = vc.u32 %v2524, %v2528
        %v2533 = vsel %vm2532, 1, 0
        %v2534 = vadd.s32 %v2524, %v2528
        %v2535 = vadd.s32 %v2527, %v2533
        %vm2536 = vc.u32 %v2534, %v2530
        %v2537 = vsel %vm2536, 1, 0
        %v2538 = vadd.s32 %v2534, %v2530
        %v2539 = vadd.s32 %v2535, %v2537
        %v2540 = vadd.s32 %v2539, %v2529
        %v2541 = vadd.s32 %v2540, %v2531
        %v2542 = vmul.u32 %v2497, %v2488
        %v2543 = vadd.s32 %v2519, %v2538
        %vm2544 = vc.u32 %v2519, %v2538
        %v2545 = vadd.s32 %v2541, 1
        %v2546 = vsel %vm2544, %v2545, %v2541
        %v2547 = vadd.s32 %v2542, %v2546
        %v2548 = vadd.s32 %v2547, 536870912
        %v2549 = vshrl.u32 %v2548, 30
        %v2550 = vshll.u32 %v2549, 30
        %v2551 = vsub.s32 %v2547, %v2550
        %vm2552 = vcmp.lt.s32.totalorder %v2551, 0
        %v2553 = vsub.s32 0, %v2551
        %v2554 = vsel %vm2552, %v2553, %v2551
        %v2555 = vclz %v2554
        %v2556 = vsub.s32 %v2555, 2
        %vm2557 = vcmp.gt.s32.totalorder 0, %v2556
        %v2558 = vsel %vm2557, 0, %v2556
        %v2559 = vsub.s32 32, %v2558
        %v2560 = vshll.u32 %v2551, %v2558
        %v2561 = vshrl.u32 %v2543, %v2559
        %v2562 = vor.u32 %v2560, %v2561
        %v2563 = vsub.s32 4294967266, %v2558
        %v2564 = vadd.s32 %v2563, 127
        %v2565 = vshll.u32 %v2564, 23
        %v2566 = vor.u32 4788187, %v2565
        %v2567 = vand.u32 2147483647, %v2566
        %v2569 = vcvt.s32.f32 %v2562
        %v2570 = vmul.f32 %v2569, %v2567
        %v2571 = vxor.u32 %v2570, 2147483648
        %v2572 = vsel %vm2451, %v2571, %v2570
        %v2573 = vsub.s32 4, %v2549
        %v2574 = vsel %vm2451, %v2573, %v2549
        %v2575 = vsel %vm2450, %v277, %v2572
        %v2576 = vsel %vm2450, 0, %v2574
        %v2577 = vmul.f32 %v2575, %v2575
        %v2578 = vmul.f32 %v2577, -0.001358992
        %v2579 = vadd.f32 %v2578, 0.041655596
        %v2580 = vmul.f32 %v2577, %v2579
        %v2581 = vadd.f32 %v2580, -0.4999988
        %v2582 = vmul.f32 %v2577, %v2581
        %v2583 = vadd.f32 1.0, %v2582
        %v2584 = vmul.f32 %v2575, %v2575
        %v2585 = vmul.f32 %v2584, -0.00019511016
        %v2586 = vadd.f32 %v2585, 0.008332121
        %v2587 = vmul.f32 %v2584, %v2586
        %v2588 = vadd.f32 %v2587, -0.16666654
        %v2589 = vmul.f32 %v2584, %v2588
        %v2590 = vadd.f32 %v2589, 1.0
        %v2591 = vmul.f32 %v2590, %v2575
        %vm2592 = vweird.f32 %v277
        %v2593 = vadd.s32 %v2576, 3
        %v2594 = vand.u32 %v2593, 3
        %vm2595 = vcmp.lt.s32.totalorder %v2594, 2
        %vm2596 = vcmp.eq.s32.totalorder %v2594, 0
        %v2597 = vxor.u32 %v2591, 2147483648
        %v2598 = vsel %vm2596, %v2583, %v2597
        %vm2599 = vcmp.eq.s32.totalorder %v2594, 2
        %v2600 = vxor.u32 %v2583, 2147483648
        %v2601 = vsel %vm2599, %v2600, %v2591
        %v2602 = vsel %vm2595, %v2598, %v2601
        %v2603 = vsel %vm2592, nan, %v2602
        %v2604 = vand.u32 2147483647, %v278
        %vm2605 = vcmp.le.f32.partialorder %v2604, 0.7853982
        %vm2606 = vcmp.lt.s32.totalorder %v278, 0
        %v2607 = vand.u32 %v278, 2139095040
        %v2608 = vshrl.u32 %v2607, 23
        %v2609 = vsub.s32 %v2608, 127
        %v2610 = vand.u32 2147483647, %v278
        %v2611 = vand.u32 %v2610, 8388607
        %v2612 = vor.u32 %v2611, 8388608
        %v2613 = vsub.s32 0, %v2612
        %v2614 = vadd.s32 %v2609, 1
        %vm2615 = vcmp.gt.s32.totalorder %v2614, 0
        %v2616 = vsel %vm2615, %v2614, 0
        %v2617 = vshrl.u32 %v2616, 5
        %v2618 = vand.u32 %v2616, 31
        %v2619 = vsub.s32 32, %v2618
        %v2620 = vshrl.u32 683565275, %v2619
        %v2621 = vshll.u32 683565275, %v2618
        %v2622 = vshrl.u32 2475754826, %v2619
        %v2623 = vor.u32 %v2621, %v2622
        %v2624 = vshll.u32 2475754826, %v2618
        %v2625 = vshrl.u32 2131351028, %v2619
        %v2626 = vor.u32 %v2624, %v2625
        %v2627 = vshll.u32 2131351028, %v2618
        %v2628 = vshrl.u32 2102212464, %v2619
        %v2629 = vor.u32 %v2627, %v2628
        %v2630 = vshll.u32 2102212464, %v2618
        %v2631 = vshrl.u32 920167782, %v2619
        %v2632 = vor.u32 %v2630, %v2631
        %v2633 = vshll.u32 920167782, %v2618
        %v2634 = vshrl.u32 1326507024, %v2619
        %v2635 = vor.u32 %v2633, %v2634
        %vm2636 = vcmp.lt.s32.totalorder %v2617, 1
        %vm2637 = vcmp.lt.s32.totalorder %v2617, 2
        %vm2638 = vcmp.lt.s32.totalorder %v2617, 3
        %vm2639 = vcmp.lt.s32.totalorder %v2617, 4
        %v2640 = vsel %vm2636, %v2620, %v2623
        %v2641 = vsel %vm2639, %v2629, 2102212464
        %v2642 = vsel %vm2638, %v2626, %v2641
        %v2643 = vsel %vm2637, %v2640, %v2642
        %v2644 = vsel %vm2636, %v2623, %v2626
        %v2645 = vsel %vm2639, %v2632, 920167782
        %v2646 = vsel %vm2638, %v2629, %v2645
        %v2647 = vsel %vm2637, %v2644, %v2646
        %v2648 = vsel %vm2636, %v2626, %v2629
        %v2649 = vsel %vm2639, %v2635, 1326507024
        %v2650 = vsel %vm2638, %v2632, %v2649
        %v2651 = vsel %vm2637, %v2648, %v2650
        %v2652 = vshll.u32 %v2612, 8
        %v2653 = vand.u32 %v2652, 65535
        %v2654 = vshrl.u32 %v2652, 16
        %v2655 = vand.u32 %v2651, 65535
        %v2656 = vshrl.u32 %v2651, 16
        %v2657 = vmul.u32 %v2653, %v2655
        %v2658 = vmul.u32 %v2653, %v2656
        %v2659 = vmul.u32 %v2654, %v2655
        %v2660 = vmul.u32 %v2654, %v2656
        %v2661 = vshll.u32 %v2658, 16
        %v2662 = vshrl.u32 %v2658, 16
        %v2663 = vshll.u32 %v2659, 16
        %v2664 = vshrl.u32 %v2659, 16
        %vm2665 = vc.u32 %v2657, %v2661
        %v2666 = vsel %vm2665, 1, 0
        %v2667 = vadd.s32 %v2657, %v2661
        %v2668 = vadd.s32 %v2660, %v2666
        %vm2669 = vc.u32 %v2667, %v2663
        %v2670 = vsel %vm2669, 1, 0
        %v2671 = vadd.s32 %v2667, %v2663
        %v2672 = vadd.s32 %v2668, %v2670
        %v2673 = vadd.s32 %v2672, %v2662
        %v2674 = vadd.s32 %v2673, %v2664
        %v2675 = vand.u32 %v2652, 65535
        %v2676 = vshrl.u32 %v2652, 16
        %v2677 = vand.u32 %v2647, 65535
        %v2678 = vshrl.u32 %v2647, 16
        %v2679 = vmul.u32 %v2675, %v2677
        %v2680 = vmul.u32 %v2675, %v2678
        %v2681 = vmul.u32 %v2676, %v2677
        %v2682 = vmul.u32 %v2676, %v2678
        %v2683 = vshll.u32 %v2680, 16
        %v2684 = vshrl.u32 %v2680, 16
        %v2685 = vshll.u32 %v2681, 16
        %v2686 = vshrl.u32 %v2681, 16
        %vm2687 = vc.u32 %v2679, %v2683
        %v2688 = vsel %vm2687, 1, 0
        %v2689 = vadd.s32 %v2679, %v2683
        %v2690 = vadd.s32 %v2682, %v2688
        %vm2691 = vc.u32 %v2689, %v2685
        %v2692 = vsel %vm2691, 1, 0
        %v2693 = vadd.s32 %v2689, %v2685
        %v2694 = vadd.s32 %v2690, %v2692
        %v2695 = vadd.s32 %v2694, %v2684
        %v2696 = vadd.s32 %v2695, %v2686
        %v2697 = vmul.u32 %v2652, %v2643
        %v2698 = vadd.s32 %v2674, %v2693
        %vm2699 = vc.u32 %v2674, %v2693
        %v2700 = vadd.s32 %v2696, 1
        %v2701 = vsel %vm2699, %v2700, %v2696
        %v2702 = vadd.s32 %v2697, %v2701
        %v2703 = vadd.s32 %v2702, 536870912
        %v2704 = vshrl.u32 %v2703, 30
        %v2705 = vshll.u32 %v2704, 30
        %v2706 = vsub.s32 %v2702, %v2705
        %vm2707 = vcmp.lt.s32.totalorder %v2706, 0
        %v2708 = vsub.s32 0, %v2706
        %v2709 = vsel %vm2707, %v2708, %v2706
        %v2710 = vclz %v2709
        %v2711 = vsub.s32 %v2710, 2
        %vm2712 = vcmp.gt.s32.totalorder 0, %v2711
        %v2713 = vsel %vm2712, 0, %v2711
        %v2714 = vsub.s32 32, %v2713
        %v2715 = vshll.u32 %v2706, %v2713
        %v2716 = vshrl.u32 %v2698, %v2714
        %v2717 = vor.u32 %v2715, %v2716
        %v2718 = vsub.s32 4294967266, %v2713
        %v2719 = vadd.s32 %v2718, 127
        %v2720 = vshll.u32 %v2719, 23
        %v2721 = vor.u32 4788187, %v2720
        %v2722 = vand.u32 2147483647, %v2721
        %v2724 = vcvt.s32.f32 %v2717
        %v2725 = vmul.f32 %v2724, %v2722
        %v2726 = vxor.u32 %v2725, 2147483648
        %v2727 = vsel %vm2606, %v2726, %v2725
        %v2728 = vsub.s32 4, %v2704
        %v2729 = vsel %vm2606, %v2728, %v2704
        %v2730 = vsel %vm2605, %v278, %v2727
        %v2731 = vsel %vm2605, 0, %v2729
        %v2732 = vmul.f32 %v2730, %v2730
        %v2733 = vmul.f32 %v2732, -0.001358992
        %v2734 = vadd.f32 %v2733, 0.041655596
        %v2735 = vmul.f32 %v2732, %v2734
        %v2736 = vadd.f32 %v2735, -0.4999988
        %v2737 = vmul.f32 %v2732, %v2736
        %v2738 = vadd.f32 1.0, %v2737
        %v2739 = vmul.f32 %v2730, %v2730
        %v2740 = vmul.f32 %v2739, -0.00019511016
        %v2741 = vadd.f32 %v2740, 0.008332121
        %v2742 = vmul.f32 %v2739, %v2741
        %v2743 = vadd.f32 %v2742, -0.16666654
        %v2744 = vmul.f32 %v2739, %v2743
        %v2745 = vadd.f32 %v2744, 1.0
        %v2746 = vmul.f32 %v2745, %v2730
        %vm2747 = vweird.f32 %v278
        %v2748 = vadd.s32 %v2731, 3
        %v2749 = vand.u32 %v2748, 3
        %vm2750 = vcmp.lt.s32.totalorder %v2749, 2
        %vm2751 = vcmp.eq.s32.totalorder %v2749, 0
        %v2752 = vxor.u32 %v2746, 2147483648
        %v2753 = vsel %vm2751, %v2738, %v2752
        %vm2754 = vcmp.eq.s32.totalorder %v2749, 2
        %v2755 = vxor.u32 %v2738, 2147483648
        %v2756 = vsel %vm2754, %v2755, %v2746
        %v2757 = vsel %vm2750, %v2753, %v2756
        %v2758 = vsel %vm2747, nan, %v2757
        %2759 = vst [vmem:[%s151] sm:$0xff] %v433
        %2760 = vst [vmem:[%s151 + $0x8] sm:$0xff] %v588
        %2761 = vst [vmem:[%s151 + $0x10] sm:$0xff] %v743
        %2762 = vst [vmem:[%s151 + $0x18] sm:$0xff] %v898
        %2763 = vst [vmem:[%s151 + $0x20] sm:$0xff] %v1053
        %2764 = vst [vmem:[%s151 + $0x28] sm:$0xff] %v1208
        %2765 = vst [vmem:[%s151 + $0x30] sm:$0xff] %v1363
        %2766 = vst [vmem:[%s151 + $0x38] sm:$0xff] %v1518
        %2767 = vst [vmem:[%s151 + $0x40] sm:$0xff] %v1673
        %2768 = vst [vmem:[%s151 + $0x48] sm:$0xff] %v1828
        %2769 = vst [vmem:[%s151 + $0x50] sm:$0xff] %v1983
        %2770 = vst [vmem:[%s151 + $0x58] sm:$0xff] %v2138
        %2771 = vst [vmem:[%s151 + $0x60] sm:$0xff] %v2293
        %2772 = vst [vmem:[%s151 + $0x68] sm:$0xff] %v2448
        %2773 = vst [vmem:[%s151 + $0x70] sm:$0xff] %v2603
        %2774 = vst [vmem:[%s151 + $0x78] sm:$0xff] %v2758
        %v2776 = vperm.slane %v169, 0
        %v2777 = vperm.slane %v169, 1
        %v2780 = vmul.f32 %v2776, %v178
        %v2781 = vmul.f32 %v2777, %v178
        %v2782 = vmul.f32 %v2776, %v183
        %v2783 = vmul.f32 %v2777, %v183
        %v2784 = vmul.f32 %v2776, %v188
        %v2785 = vmul.f32 %v2777, %v188
        %v2786 = vmul.f32 %v2776, %v193
        %v2787 = vmul.f32 %v2777, %v193
        %v2788 = vmul.f32 %v2776, %v198
        %v2789 = vmul.f32 %v2777, %v198
        %v2790 = vmul.f32 %v2776, %v203
        %v2791 = vmul.f32 %v2777, %v203
        %v2792 = vmul.f32 %v2776, %v208
        %v2793 = vmul.f32 %v2777, %v208
        %v2794 = vmul.f32 %v2776, %v213
        %v2795 = vmul.f32 %v2777, %v213
        %v2796 = vadd.f32 %v2780, %v233
        %v2797 = vadd.f32 %v2781, %v233
        %v2798 = vadd.f32 %v2782, %v237
        %v2799 = vadd.f32 %v2783, %v237
        %v2800 = vadd.f32 %v2784, %v241
        %v2801 = vadd.f32 %v2785, %v241
        %v2802 = vadd.f32 %v2786, %v245
        %v2803 = vadd.f32 %v2787, %v245
        %v2804 = vadd.f32 %v2788, %v249
        %v2805 = vadd.f32 %v2789, %v249
        %v2806 = vadd.f32 %v2790, %v253
        %v2807 = vadd.f32 %v2791, %v253
        %v2808 = vadd.f32 %v2792, %v257
        %v2809 = vadd.f32 %v2793, %v257
        %v2810 = vadd.f32 %v2794, %v261
        %v2811 = vadd.f32 %v2795, %v261
        %v2812 = vand.u32 2147483647, %v2796
        %vm2813 = vcmp.le.f32.partialorder %v2812, 0.7853982
        %vm2814 = vcmp.lt.s32.totalorder %v2796, 0
        %v2815 = vand.u32 %v2796, 2139095040
        %v2816 = vshrl.u32 %v2815, 23
        %v2817 = vsub.s32 %v2816, 127
        %v2818 = vand.u32 2147483647, %v2796
        %v2819 = vand.u32 %v2818, 8388607
        %v2820 = vor.u32 %v2819, 8388608
        %v2821 = vsub.s32 0, %v2820
        %v2822 = vadd.s32 %v2817, 1
        %vm2823 = vcmp.gt.s32.totalorder %v2822, 0
        %v2824 = vsel %vm2823, %v2822, 0
        %v2825 = vshrl.u32 %v2824, 5
        %v2826 = vand.u32 %v2824, 31
        %v2827 = vsub.s32 32, %v2826
        %v2828 = vshrl.u32 683565275, %v2827
        %v2829 = vshll.u32 683565275, %v2826
        %v2830 = vshrl.u32 2475754826, %v2827
        %v2831 = vor.u32 %v2829, %v2830
        %v2832 = vshll.u32 2475754826, %v2826
        %v2833 = vshrl.u32 2131351028, %v2827
        %v2834 = vor.u32 %v2832, %v2833
        %v2835 = vshll.u32 2131351028, %v2826
        %v2836 = vshrl.u32 2102212464, %v2827
        %v2837 = vor.u32 %v2835, %v2836
        %v2838 = vshll.u32 2102212464, %v2826
        %v2839 = vshrl.u32 920167782, %v2827
        %v2840 = vor.u32 %v2838, %v2839
        %v2841 = vshll.u32 920167782, %v2826
        %v2842 = vshrl.u32 1326507024, %v2827
        %v2843 = vor.u32 %v2841, %v2842
        %vm2844 = vcmp.lt.s32.totalorder %v2825, 1
        %vm2845 = vcmp.lt.s32.totalorder %v2825, 2
        %vm2846 = vcmp.lt.s32.totalorder %v2825, 3
        %vm2847 = vcmp.lt.s32.totalorder %v2825, 4
        %v2848 = vsel %vm2844, %v2828, %v2831
        %v2849 = vsel %vm2847, %v2837, 2102212464
        %v2850 = vsel %vm2846, %v2834, %v2849
        %v2851 = vsel %vm2845, %v2848, %v2850
        %v2852 = vsel %vm2844, %v2831, %v2834
        %v2853 = vsel %vm2847, %v2840, 920167782
        %v2854 = vsel %vm2846, %v2837, %v2853
        %v2855 = vsel %vm2845, %v2852, %v2854
        %v2856 = vsel %vm2844, %v2834, %v2837
        %v2857 = vsel %vm2847, %v2843, 1326507024
        %v2858 = vsel %vm2846, %v2840, %v2857
        %v2859 = vsel %vm2845, %v2856, %v2858
        %v2860 = vshll.u32 %v2820, 8
        %v2861 = vand.u32 %v2860, 65535
        %v2862 = vshrl.u32 %v2860, 16
        %v2863 = vand.u32 %v2859, 65535
        %v2864 = vshrl.u32 %v2859, 16
        %v2865 = vmul.u32 %v2861, %v2863
        %v2866 = vmul.u32 %v2861, %v2864
        %v2867 = vmul.u32 %v2862, %v2863
        %v2868 = vmul.u32 %v2862, %v2864
        %v2869 = vshll.u32 %v2866, 16
        %v2870 = vshrl.u32 %v2866, 16
        %v2871 = vshll.u32 %v2867, 16
        %v2872 = vshrl.u32 %v2867, 16
        %vm2873 = vc.u32 %v2865, %v2869
        %v2874 = vsel %vm2873, 1, 0
        %v2875 = vadd.s32 %v2865, %v2869
        %v2876 = vadd.s32 %v2868, %v2874
        %vm2877 = vc.u32 %v2875, %v2871
        %v2878 = vsel %vm2877, 1, 0
        %v2879 = vadd.s32 %v2875, %v2871
        %v2880 = vadd.s32 %v2876, %v2878
        %v2881 = vadd.s32 %v2880, %v2870
        %v2882 = vadd.s32 %v2881, %v2872
        %v2883 = vand.u32 %v2860, 65535
        %v2884 = vshrl.u32 %v2860, 16
        %v2885 = vand.u32 %v2855, 65535
        %v2886 = vshrl.u32 %v2855, 16
        %v2887 = vmul.u32 %v2883, %v2885
        %v2888 = vmul.u32 %v2883, %v2886
        %v2889 = vmul.u32 %v2884, %v2885
        %v2890 = vmul.u32 %v2884, %v2886
        %v2891 = vshll.u32 %v2888, 16
        %v2892 = vshrl.u32 %v2888, 16
        %v2893 = vshll.u32 %v2889, 16
        %v2894 = vshrl.u32 %v2889, 16
        %vm2895 = vc.u32 %v2887, %v2891
        %v2896 = vsel %vm2895, 1, 0
        %v2897 = vadd.s32 %v2887, %v2891
        %v2898 = vadd.s32 %v2890, %v2896
        %vm2899 = vc.u32 %v2897, %v2893
        %v2900 = vsel %vm2899, 1, 0
        %v2901 = vadd.s32 %v2897, %v2893
        %v2902 = vadd.s32 %v2898, %v2900
        %v2903 = vadd.s32 %v2902, %v2892
        %v2904 = vadd.s32 %v2903, %v2894
        %v2905 = vmul.u32 %v2860, %v2851
        %v2906 = vadd.s32 %v2882, %v2901
        %vm2907 = vc.u32 %v2882, %v2901
        %v2908 = vadd.s32 %v2904, 1
        %v2909 = vsel %vm2907, %v2908, %v2904
        %v2910 = vadd.s32 %v2905, %v2909
        %v2911 = vadd.s32 %v2910, 536870912
        %v2912 = vshrl.u32 %v2911, 30
        %v2913 = vshll.u32 %v2912, 30
        %v2914 = vsub.s32 %v2910, %v2913
        %vm2915 = vcmp.lt.s32.totalorder %v2914, 0
        %v2916 = vsub.s32 0, %v2914
        %v2917 = vsel %vm2915, %v2916, %v2914
        %v2918 = vclz %v2917
        %v2919 = vsub.s32 %v2918, 2
        %vm2920 = vcmp.gt.s32.totalorder 0, %v2919
        %v2921 = vsel %vm2920, 0, %v2919
        %v2922 = vsub.s32 32, %v2921
        %v2923 = vshll.u32 %v2914, %v2921
        %v2924 = vshrl.u32 %v2906, %v2922
        %v2925 = vor.u32 %v2923, %v2924
        %v2926 = vsub.s32 4294967266, %v2921
        %v2927 = vadd.s32 %v2926, 127
        %v2928 = vshll.u32 %v2927, 23
        %v2929 = vor.u32 4788187, %v2928
        %v2930 = vand.u32 2147483647, %v2929
        %v2932 = vcvt.s32.f32 %v2925
        %v2933 = vmul.f32 %v2932, %v2930
        %v2934 = vxor.u32 %v2933, 2147483648
        %v2935 = vsel %vm2814, %v2934, %v2933
        %v2936 = vsub.s32 4, %v2912
        %v2937 = vsel %vm2814, %v2936, %v2912
        %v2938 = vsel %vm2813, %v2796, %v2935
        %v2939 = vsel %vm2813, 0, %v2937
        %v2940 = vmul.f32 %v2938, %v2938
        %v2941 = vmul.f32 %v2940, -0.001358992
        %v2942 = vadd.f32 %v2941, 0.041655596
        %v2943 = vmul.f32 %v2940, %v2942
        %v2944 = vadd.f32 %v2943, -0.4999988
        %v2945 = vmul.f32 %v2940, %v2944
        %v2946 = vadd.f32 1.0, %v2945
        %v2947 = vmul.f32 %v2938, %v2938
        %v2948 = vmul.f32 %v2947, -0.00019511016
        %v2949 = vadd.f32 %v2948, 0.008332121
        %v2950 = vmul.f32 %v2947, %v2949
        %v2951 = vadd.f32 %v2950, -0.16666654
        %v2952 = vmul.f32 %v2947, %v2951
        %v2953 = vadd.f32 %v2952, 1.0
        %v2954 = vmul.f32 %v2953, %v2938
        %vm2955 = vweird.f32 %v2796
        %v2956 = vadd.s32 %v2939, 3
        %v2957 = vand.u32 %v2956, 3
        %vm2958 = vcmp.lt.s32.totalorder %v2957, 2
        %vm2959 = vcmp.eq.s32.totalorder %v2957, 0
        %v2960 = vxor.u32 %v2954, 2147483648
        %v2961 = vsel %vm2959, %v2946, %v2960
        %vm2962 = vcmp.eq.s32.totalorder %v2957, 2
        %v2963 = vxor.u32 %v2946, 2147483648
        %v2964 = vsel %vm2962, %v2963, %v2954
        %v2965 = vsel %vm2958, %v2961, %v2964
        %v2966 = vsel %vm2955, nan, %v2965
        %v2967 = vand.u32 2147483647, %v2797
        %vm2968 = vcmp.le.f32.partialorder %v2967, 0.7853982
        %vm2969 = vcmp.lt.s32.totalorder %v2797, 0
        %v2970 = vand.u32 %v2797, 2139095040
        %v2971 = vshrl.u32 %v2970, 23
        %v2972 = vsub.s32 %v2971, 127
        %v2973 = vand.u32 2147483647, %v2797
        %v2974 = vand.u32 %v2973, 8388607
        %v2975 = vor.u32 %v2974, 8388608
        %v2976 = vsub.s32 0, %v2975
        %v2977 = vadd.s32 %v2972, 1
        %vm2978 = vcmp.gt.s32.totalorder %v2977, 0
        %v2979 = vsel %vm2978, %v2977, 0
        %v2980 = vshrl.u32 %v2979, 5
        %v2981 = vand.u32 %v2979, 31
        %v2982 = vsub.s32 32, %v2981
        %v2983 = vshrl.u32 683565275, %v2982
        %v2984 = vshll.u32 683565275, %v2981
        %v2985 = vshrl.u32 2475754826, %v2982
        %v2986 = vor.u32 %v2984, %v2985
        %v2987 = vshll.u32 2475754826, %v2981
        %v2988 = vshrl.u32 2131351028, %v2982
        %v2989 = vor.u32 %v2987, %v2988
        %v2990 = vshll.u32 2131351028, %v2981
        %v2991 = vshrl.u32 2102212464, %v2982
        %v2992 = vor.u32 %v2990, %v2991
        %v2993 = vshll.u32 2102212464, %v2981
        %v2994 = vshrl.u32 920167782, %v2982
        %v2995 = vor.u32 %v2993, %v2994
        %v2996 = vshll.u32 920167782, %v2981
        %v2997 = vshrl.u32 1326507024, %v2982
        %v2998 = vor.u32 %v2996, %v2997
        %vm2999 = vcmp.lt.s32.totalorder %v2980, 1
        %vm3000 = vcmp.lt.s32.totalorder %v2980, 2
        %vm3001 = vcmp.lt.s32.totalorder %v2980, 3
        %vm3002 = vcmp.lt.s32.totalorder %v2980, 4
        %v3003 = vsel %vm2999, %v2983, %v2986
        %v3004 = vsel %vm3002, %v2992, 2102212464
        %v3005 = vsel %vm3001, %v2989, %v3004
        %v3006 = vsel %vm3000, %v3003, %v3005
        %v3007 = vsel %vm2999, %v2986, %v2989
        %v3008 = vsel %vm3002, %v2995, 920167782
        %v3009 = vsel %vm3001, %v2992, %v3008
        %v3010 = vsel %vm3000, %v3007, %v3009
        %v3011 = vsel %vm2999, %v2989, %v2992
        %v3012 = vsel %vm3002, %v2998, 1326507024
        %v3013 = vsel %vm3001, %v2995, %v3012
        %v3014 = vsel %vm3000, %v3011, %v3013
        %v3015 = vshll.u32 %v2975, 8
        %v3016 = vand.u32 %v3015, 65535
        %v3017 = vshrl.u32 %v3015, 16
        %v3018 = vand.u32 %v3014, 65535
        %v3019 = vshrl.u32 %v3014, 16
        %v3020 = vmul.u32 %v3016, %v3018
        %v3021 = vmul.u32 %v3016, %v3019
        %v3022 = vmul.u32 %v3017, %v3018
        %v3023 = vmul.u32 %v3017, %v3019
        %v3024 = vshll.u32 %v3021, 16
        %v3025 = vshrl.u32 %v3021, 16
        %v3026 = vshll.u32 %v3022, 16
        %v3027 = vshrl.u32 %v3022, 16
        %vm3028 = vc.u32 %v3020, %v3024
        %v3029 = vsel %vm3028, 1, 0
        %v3030 = vadd.s32 %v3020, %v3024
        %v3031 = vadd.s32 %v3023, %v3029
        %vm3032 = vc.u32 %v3030, %v3026
        %v3033 = vsel %vm3032, 1, 0
        %v3034 = vadd.s32 %v3030, %v3026
        %v3035 = vadd.s32 %v3031, %v3033
        %v3036 = vadd.s32 %v3035, %v3025
        %v3037 = vadd.s32 %v3036, %v3027
        %v3038 = vand.u32 %v3015, 65535
        %v3039 = vshrl.u32 %v3015, 16
        %v3040 = vand.u32 %v3010, 65535
        %v3041 = vshrl.u32 %v3010, 16
        %v3042 = vmul.u32 %v3038, %v3040
        %v3043 = vmul.u32 %v3038, %v3041
        %v3044 = vmul.u32 %v3039, %v3040
        %v3045 = vmul.u32 %v3039, %v3041
        %v3046 = vshll.u32 %v3043, 16
        %v3047 = vshrl.u32 %v3043, 16
        %v3048 = vshll.u32 %v3044, 16
        %v3049 = vshrl.u32 %v3044, 16
        %vm3050 = vc.u32 %v3042, %v3046
        %v3051 = vsel %vm3050, 1, 0
        %v3052 = vadd.s32 %v3042, %v3046
        %v3053 = vadd.s32 %v3045, %v3051
        %vm3054 = vc.u32 %v3052, %v3048
        %v3055 = vsel %vm3054, 1, 0
        %v3056 = vadd.s32 %v3052, %v3048
        %v3057 = vadd.s32 %v3053, %v3055
        %v3058 = vadd.s32 %v3057, %v3047
        %v3059 = vadd.s32 %v3058, %v3049
        %v3060 = vmul.u32 %v3015, %v3006
        %v3061 = vadd.s32 %v3037, %v3056
        %vm3062 = vc.u32 %v3037, %v3056
        %v3063 = vadd.s32 %v3059, 1
        %v3064 = vsel %vm3062, %v3063, %v3059
        %v3065 = vadd.s32 %v3060, %v3064
        %v3066 = vadd.s32 %v3065, 536870912
        %v3067 = vshrl.u32 %v3066, 30
        %v3068 = vshll.u32 %v3067, 30
        %v3069 = vsub.s32 %v3065, %v3068
        %vm3070 = vcmp.lt.s32.totalorder %v3069, 0
        %v3071 = vsub.s32 0, %v3069
        %v3072 = vsel %vm3070, %v3071, %v3069
        %v3073 = vclz %v3072
        %v3074 = vsub.s32 %v3073, 2
        %vm3075 = vcmp.gt.s32.totalorder 0, %v3074
        %v3076 = vsel %vm3075, 0, %v3074
        %v3077 = vsub.s32 32, %v3076
        %v3078 = vshll.u32 %v3069, %v3076
        %v3079 = vshrl.u32 %v3061, %v3077
        %v3080 = vor.u32 %v3078, %v3079
        %v3081 = vsub.s32 4294967266, %v3076
        %v3082 = vadd.s32 %v3081, 127
        %v3083 = vshll.u32 %v3082, 23
        %v3084 = vor.u32 4788187, %v3083
        %v3085 = vand.u32 2147483647, %v3084
        %v3087 = vcvt.s32.f32 %v3080
        %v3088 = vmul.f32 %v3087, %v3085
        %v3089 = vxor.u32 %v3088, 2147483648
        %v3090 = vsel %vm2969, %v3089, %v3088
        %v3091 = vsub.s32 4, %v3067
        %v3092 = vsel %vm2969, %v3091, %v3067
        %v3093 = vsel %vm2968, %v2797, %v3090
        %v3094 = vsel %vm2968, 0, %v3092
        %v3095 = vmul.f32 %v3093, %v3093
        %v3096 = vmul.f32 %v3095, -0.001358992
        %v3097 = vadd.f32 %v3096, 0.041655596
        %v3098 = vmul.f32 %v3095, %v3097
        %v3099 = vadd.f32 %v3098, -0.4999988
        %v3100 = vmul.f32 %v3095, %v3099
        %v3101 = vadd.f32 1.0, %v3100
        %v3102 = vmul.f32 %v3093, %v3093
        %v3103 = vmul.f32 %v3102, -0.00019511016
        %v3104 = vadd.f32 %v3103, 0.008332121
        %v3105 = vmul.f32 %v3102, %v3104
        %v3106 = vadd.f32 %v3105, -0.16666654
        %v3107 = vmul.f32 %v3102, %v3106
        %v3108 = vadd.f32 %v3107, 1.0
        %v3109 = vmul.f32 %v3108, %v3093
        %vm3110 = vweird.f32 %v2797
        %v3111 = vadd.s32 %v3094, 3
        %v3112 = vand.u32 %v3111, 3
        %vm3113 = vcmp.lt.s32.totalorder %v3112, 2
        %vm3114 = vcmp.eq.s32.totalorder %v3112, 0
        %v3115 = vxor.u32 %v3109, 2147483648
        %v3116 = vsel %vm3114, %v3101, %v3115
        %vm3117 = vcmp.eq.s32.totalorder %v3112, 2
        %v3118 = vxor.u32 %v3101, 2147483648
        %v3119 = vsel %vm3117, %v3118, %v3109
        %v3120 = vsel %vm3113, %v3116, %v3119
        %v3121 = vsel %vm3110, nan, %v3120
        %v3122 = vand.u32 2147483647, %v2798
        %vm3123 = vcmp.le.f32.partialorder %v3122, 0.7853982
        %vm3124 = vcmp.lt.s32.totalorder %v2798, 0
        %v3125 = vand.u32 %v2798, 2139095040
        %v3126 = vshrl.u32 %v3125, 23
        %v3127 = vsub.s32 %v3126, 127
        %v3128 = vand.u32 2147483647, %v2798
        %v3129 = vand.u32 %v3128, 8388607
        %v3130 = vor.u32 %v3129, 8388608
        %v3131 = vsub.s32 0, %v3130
        %v3132 = vadd.s32 %v3127, 1
        %vm3133 = vcmp.gt.s32.totalorder %v3132, 0
        %v3134 = vsel %vm3133, %v3132, 0
        %v3135 = vshrl.u32 %v3134, 5
        %v3136 = vand.u32 %v3134, 31
        %v3137 = vsub.s32 32, %v3136
        %v3138 = vshrl.u32 683565275, %v3137
        %v3139 = vshll.u32 683565275, %v3136
        %v3140 = vshrl.u32 2475754826, %v3137
        %v3141 = vor.u32 %v3139, %v3140
        %v3142 = vshll.u32 2475754826, %v3136
        %v3143 = vshrl.u32 2131351028, %v3137
        %v3144 = vor.u32 %v3142, %v3143
        %v3145 = vshll.u32 2131351028, %v3136
        %v3146 = vshrl.u32 2102212464, %v3137
        %v3147 = vor.u32 %v3145, %v3146
        %v3148 = vshll.u32 2102212464, %v3136
        %v3149 = vshrl.u32 920167782, %v3137
        %v3150 = vor.u32 %v3148, %v3149
        %v3151 = vshll.u32 920167782, %v3136
        %v3152 = vshrl.u32 1326507024, %v3137
        %v3153 = vor.u32 %v3151, %v3152
        %vm3154 = vcmp.lt.s32.totalorder %v3135, 1
        %vm3155 = vcmp.lt.s32.totalorder %v3135, 2
        %vm3156 = vcmp.lt.s32.totalorder %v3135, 3
        %vm3157 = vcmp.lt.s32.totalorder %v3135, 4
        %v3158 = vsel %vm3154, %v3138, %v3141
        %v3159 = vsel %vm3157, %v3147, 2102212464
        %v3160 = vsel %vm3156, %v3144, %v3159
        %v3161 = vsel %vm3155, %v3158, %v3160
        %v3162 = vsel %vm3154, %v3141, %v3144
        %v3163 = vsel %vm3157, %v3150, 920167782
        %v3164 = vsel %vm3156, %v3147, %v3163
        %v3165 = vsel %vm3155, %v3162, %v3164
        %v3166 = vsel %vm3154, %v3144, %v3147
        %v3167 = vsel %vm3157, %v3153, 1326507024
        %v3168 = vsel %vm3156, %v3150, %v3167
        %v3169 = vsel %vm3155, %v3166, %v3168
        %v3170 = vshll.u32 %v3130, 8
        %v3171 = vand.u32 %v3170, 65535
        %v3172 = vshrl.u32 %v3170, 16
        %v3173 = vand.u32 %v3169, 65535
        %v3174 = vshrl.u32 %v3169, 16
        %v3175 = vmul.u32 %v3171, %v3173
        %v3176 = vmul.u32 %v3171, %v3174
        %v3177 = vmul.u32 %v3172, %v3173
        %v3178 = vmul.u32 %v3172, %v3174
        %v3179 = vshll.u32 %v3176, 16
        %v3180 = vshrl.u32 %v3176, 16
        %v3181 = vshll.u32 %v3177, 16
        %v3182 = vshrl.u32 %v3177, 16
        %vm3183 = vc.u32 %v3175, %v3179
        %v3184 = vsel %vm3183, 1, 0
        %v3185 = vadd.s32 %v3175, %v3179
        %v3186 = vadd.s32 %v3178, %v3184
        %vm3187 = vc.u32 %v3185, %v3181
        %v3188 = vsel %vm3187, 1, 0
        %v3189 = vadd.s32 %v3185, %v3181
        %v3190 = vadd.s32 %v3186, %v3188
        %v3191 = vadd.s32 %v3190, %v3180
        %v3192 = vadd.s32 %v3191, %v3182
        %v3193 = vand.u32 %v3170, 65535
        %v3194 = vshrl.u32 %v3170, 16
        %v3195 = vand.u32 %v3165, 65535
        %v3196 = vshrl.u32 %v3165, 16
        %v3197 = vmul.u32 %v3193, %v3195
        %v3198 = vmul.u32 %v3193, %v3196
        %v3199 = vmul.u32 %v3194, %v3195
        %v3200 = vmul.u32 %v3194, %v3196
        %v3201 = vshll.u32 %v3198, 16
        %v3202 = vshrl.u32 %v3198, 16
        %v3203 = vshll.u32 %v3199, 16
        %v3204 = vshrl.u32 %v3199, 16
        %vm3205 = vc.u32 %v3197, %v3201
        %v3206 = vsel %vm3205, 1, 0
        %v3207 = vadd.s32 %v3197, %v3201
        %v3208 = vadd.s32 %v3200, %v3206
        %vm3209 = vc.u32 %v3207, %v3203
        %v3210 = vsel %vm3209, 1, 0
        %v3211 = vadd.s32 %v3207, %v3203
        %v3212 = vadd.s32 %v3208, %v3210
        %v3213 = vadd.s32 %v3212, %v3202
        %v3214 = vadd.s32 %v3213, %v3204
        %v3215 = vmul.u32 %v3170, %v3161
        %v3216 = vadd.s32 %v3192, %v3211
        %vm3217 = vc.u32 %v3192, %v3211
        %v3218 = vadd.s32 %v3214, 1
        %v3219 = vsel %vm3217, %v3218, %v3214
        %v3220 = vadd.s32 %v3215, %v3219
        %v3221 = vadd.s32 %v3220, 536870912
        %v3222 = vshrl.u32 %v3221, 30
        %v3223 = vshll.u32 %v3222, 30
        %v3224 = vsub.s32 %v3220, %v3223
        %vm3225 = vcmp.lt.s32.totalorder %v3224, 0
        %v3226 = vsub.s32 0, %v3224
        %v3227 = vsel %vm3225, %v3226, %v3224
        %v3228 = vclz %v3227
        %v3229 = vsub.s32 %v3228, 2
        %vm3230 = vcmp.gt.s32.totalorder 0, %v3229
        %v3231 = vsel %vm3230, 0, %v3229
        %v3232 = vsub.s32 32, %v3231
        %v3233 = vshll.u32 %v3224, %v3231
        %v3234 = vshrl.u32 %v3216, %v3232
        %v3235 = vor.u32 %v3233, %v3234
        %v3236 = vsub.s32 4294967266, %v3231
        %v3237 = vadd.s32 %v3236, 127
        %v3238 = vshll.u32 %v3237, 23
        %v3239 = vor.u32 4788187, %v3238
        %v3240 = vand.u32 2147483647, %v3239
        %v3242 = vcvt.s32.f32 %v3235
        %v3243 = vmul.f32 %v3242, %v3240
        %v3244 = vxor.u32 %v3243, 2147483648
        %v3245 = vsel %vm3124, %v3244, %v3243
        %v3246 = vsub.s32 4, %v3222
        %v3247 = vsel %vm3124, %v3246, %v3222
        %v3248 = vsel %vm3123, %v2798, %v3245
        %v3249 = vsel %vm3123, 0, %v3247
        %v3250 = vmul.f32 %v3248, %v3248
        %v3251 = vmul.f32 %v3250, -0.001358992
        %v3252 = vadd.f32 %v3251, 0.041655596
        %v3253 = vmul.f32 %v3250, %v3252
        %v3254 = vadd.f32 %v3253, -0.4999988
        %v3255 = vmul.f32 %v3250, %v3254
        %v3256 = vadd.f32 1.0, %v3255
        %v3257 = vmul.f32 %v3248, %v3248
        %v3258 = vmul.f32 %v3257, -0.00019511016
        %v3259 = vadd.f32 %v3258, 0.008332121
        %v3260 = vmul.f32 %v3257, %v3259
        %v3261 = vadd.f32 %v3260, -0.16666654
        %v3262 = vmul.f32 %v3257, %v3261
        %v3263 = vadd.f32 %v3262, 1.0
        %v3264 = vmul.f32 %v3263, %v3248
        %vm3265 = vweird.f32 %v2798
        %v3266 = vadd.s32 %v3249, 3
        %v3267 = vand.u32 %v3266, 3
        %vm3268 = vcmp.lt.s32.totalorder %v3267, 2
        %vm3269 = vcmp.eq.s32.totalorder %v3267, 0
        %v3270 = vxor.u32 %v3264, 2147483648
        %v3271 = vsel %vm3269, %v3256, %v3270
        %vm3272 = vcmp.eq.s32.totalorder %v3267, 2
        %v3273 = vxor.u32 %v3256, 2147483648
        %v3274 = vsel %vm3272, %v3273, %v3264
        %v3275 = vsel %vm3268, %v3271, %v3274
        %v3276 = vsel %vm3265, nan, %v3275
        %v3277 = vand.u32 2147483647, %v2799
        %vm3278 = vcmp.le.f32.partialorder %v3277, 0.7853982
        %vm3279 = vcmp.lt.s32.totalorder %v2799, 0
        %v3280 = vand.u32 %v2799, 2139095040
        %v3281 = vshrl.u32 %v3280, 23
        %v3282 = vsub.s32 %v3281, 127
        %v3283 = vand.u32 2147483647, %v2799
        %v3284 = vand.u32 %v3283, 8388607
        %v3285 = vor.u32 %v3284, 8388608
        %v3286 = vsub.s32 0, %v3285
        %v3287 = vadd.s32 %v3282, 1
        %vm3288 = vcmp.gt.s32.totalorder %v3287, 0
        %v3289 = vsel %vm3288, %v3287, 0
        %v3290 = vshrl.u32 %v3289, 5
        %v3291 = vand.u32 %v3289, 31
        %v3292 = vsub.s32 32, %v3291
        %v3293 = vshrl.u32 683565275, %v3292
        %v3294 = vshll.u32 683565275, %v3291
        %v3295 = vshrl.u32 2475754826, %v3292
        %v3296 = vor.u32 %v3294, %v3295
        %v3297 = vshll.u32 2475754826, %v3291
        %v3298 = vshrl.u32 2131351028, %v3292
        %v3299 = vor.u32 %v3297, %v3298
        %v3300 = vshll.u32 2131351028, %v3291
        %v3301 = vshrl.u32 2102212464, %v3292
        %v3302 = vor.u32 %v3300, %v3301
        %v3303 = vshll.u32 2102212464, %v3291
        %v3304 = vshrl.u32 920167782, %v3292
        %v3305 = vor.u32 %v3303, %v3304
        %v3306 = vshll.u32 920167782, %v3291
        %v3307 = vshrl.u32 1326507024, %v3292
        %v3308 = vor.u32 %v3306, %v3307
        %vm3309 = vcmp.lt.s32.totalorder %v3290, 1
        %vm3310 = vcmp.lt.s32.totalorder %v3290, 2
        %vm3311 = vcmp.lt.s32.totalorder %v3290, 3
        %vm3312 = vcmp.lt.s32.totalorder %v3290, 4
        %v3313 = vsel %vm3309, %v3293, %v3296
        %v3314 = vsel %vm3312, %v3302, 2102212464
        %v3315 = vsel %vm3311, %v3299, %v3314
        %v3316 = vsel %vm3310, %v3313, %v3315
        %v3317 = vsel %vm3309, %v3296, %v3299
        %v3318 = vsel %vm3312, %v3305, 920167782
        %v3319 = vsel %vm3311, %v3302, %v3318
        %v3320 = vsel %vm3310, %v3317, %v3319
        %v3321 = vsel %vm3309, %v3299, %v3302
        %v3322 = vsel %vm3312, %v3308, 1326507024
        %v3323 = vsel %vm3311, %v3305, %v3322
        %v3324 = vsel %vm3310, %v3321, %v3323
        %v3325 = vshll.u32 %v3285, 8
        %v3326 = vand.u32 %v3325, 65535
        %v3327 = vshrl.u32 %v3325, 16
        %v3328 = vand.u32 %v3324, 65535
        %v3329 = vshrl.u32 %v3324, 16
        %v3330 = vmul.u32 %v3326, %v3328
        %v3331 = vmul.u32 %v3326, %v3329
        %v3332 = vmul.u32 %v3327, %v3328
        %v3333 = vmul.u32 %v3327, %v3329
        %v3334 = vshll.u32 %v3331, 16
        %v3335 = vshrl.u32 %v3331, 16
        %v3336 = vshll.u32 %v3332, 16
        %v3337 = vshrl.u32 %v3332, 16
        %vm3338 = vc.u32 %v3330, %v3334
        %v3339 = vsel %vm3338, 1, 0
        %v3340 = vadd.s32 %v3330, %v3334
        %v3341 = vadd.s32 %v3333, %v3339
        %vm3342 = vc.u32 %v3340, %v3336
        %v3343 = vsel %vm3342, 1, 0
        %v3344 = vadd.s32 %v3340, %v3336
        %v3345 = vadd.s32 %v3341, %v3343
        %v3346 = vadd.s32 %v3345, %v3335
        %v3347 = vadd.s32 %v3346, %v3337
        %v3348 = vand.u32 %v3325, 65535
        %v3349 = vshrl.u32 %v3325, 16
        %v3350 = vand.u32 %v3320, 65535
        %v3351 = vshrl.u32 %v3320, 16
        %v3352 = vmul.u32 %v3348, %v3350
        %v3353 = vmul.u32 %v3348, %v3351
        %v3354 = vmul.u32 %v3349, %v3350
        %v3355 = vmul.u32 %v3349, %v3351
        %v3356 = vshll.u32 %v3353, 16
        %v3357 = vshrl.u32 %v3353, 16
        %v3358 = vshll.u32 %v3354, 16
        %v3359 = vshrl.u32 %v3354, 16
        %vm3360 = vc.u32 %v3352, %v3356
        %v3361 = vsel %vm3360, 1, 0
        %v3362 = vadd.s32 %v3352, %v3356
        %v3363 = vadd.s32 %v3355, %v3361
        %vm3364 = vc.u32 %v3362, %v3358
        %v3365 = vsel %vm3364, 1, 0
        %v3366 = vadd.s32 %v3362, %v3358
        %v3367 = vadd.s32 %v3363, %v3365
        %v3368 = vadd.s32 %v3367, %v3357
        %v3369 = vadd.s32 %v3368, %v3359
        %v3370 = vmul.u32 %v3325, %v3316
        %v3371 = vadd.s32 %v3347, %v3366
        %vm3372 = vc.u32 %v3347, %v3366
        %v3373 = vadd.s32 %v3369, 1
        %v3374 = vsel %vm3372, %v3373, %v3369
        %v3375 = vadd.s32 %v3370, %v3374
        %v3376 = vadd.s32 %v3375, 536870912
        %v3377 = vshrl.u32 %v3376, 30
        %v3378 = vshll.u32 %v3377, 30
        %v3379 = vsub.s32 %v3375, %v3378
        %vm3380 = vcmp.lt.s32.totalorder %v3379, 0
        %v3381 = vsub.s32 0, %v3379
        %v3382 = vsel %vm3380, %v3381, %v3379
        %v3383 = vclz %v3382
        %v3384 = vsub.s32 %v3383, 2
        %vm3385 = vcmp.gt.s32.totalorder 0, %v3384
        %v3386 = vsel %vm3385, 0, %v3384
        %v3387 = vsub.s32 32, %v3386
        %v3388 = vshll.u32 %v3379, %v3386
        %v3389 = vshrl.u32 %v3371, %v3387
        %v3390 = vor.u32 %v3388, %v3389
        %v3391 = vsub.s32 4294967266, %v3386
        %v3392 = vadd.s32 %v3391, 127
        %v3393 = vshll.u32 %v3392, 23
        %v3394 = vor.u32 4788187, %v3393
        %v3395 = vand.u32 2147483647, %v3394
        %v3397 = vcvt.s32.f32 %v3390
        %v3398 = vmul.f32 %v3397, %v3395
        %v3399 = vxor.u32 %v3398, 2147483648
        %v3400 = vsel %vm3279, %v3399, %v3398
        %v3401 = vsub.s32 4, %v3377
        %v3402 = vsel %vm3279, %v3401, %v3377
        %v3403 = vsel %vm3278, %v2799, %v3400
        %v3404 = vsel %vm3278, 0, %v3402
        %v3405 = vmul.f32 %v3403, %v3403
        %v3406 = vmul.f32 %v3405, -0.001358992
        %v3407 = vadd.f32 %v3406, 0.041655596
        %v3408 = vmul.f32 %v3405, %v3407
        %v3409 = vadd.f32 %v3408, -0.4999988
        %v3410 = vmul.f32 %v3405, %v3409
        %v3411 = vadd.f32 1.0, %v3410
        %v3412 = vmul.f32 %v3403, %v3403
        %v3413 = vmul.f32 %v3412, -0.00019511016
        %v3414 = vadd.f32 %v3413, 0.008332121
        %v3415 = vmul.f32 %v3412, %v3414
        %v3416 = vadd.f32 %v3415, -0.16666654
        %v3417 = vmul.f32 %v3412, %v3416
        %v3418 = vadd.f32 %v3417, 1.0
        %v3419 = vmul.f32 %v3418, %v3403
        %vm3420 = vweird.f32 %v2799
        %v3421 = vadd.s32 %v3404, 3
        %v3422 = vand.u32 %v3421, 3
        %vm3423 = vcmp.lt.s32.totalorder %v3422, 2
        %vm3424 = vcmp.eq.s32.totalorder %v3422, 0
        %v3425 = vxor.u32 %v3419, 2147483648
        %v3426 = vsel %vm3424, %v3411, %v3425
        %vm3427 = vcmp.eq.s32.totalorder %v3422, 2
        %v3428 = vxor.u32 %v3411, 2147483648
        %v3429 = vsel %vm3427, %v3428, %v3419
        %v3430 = vsel %vm3423, %v3426, %v3429
        %v3431 = vsel %vm3420, nan, %v3430
        %v3432 = vand.u32 2147483647, %v2800
        %vm3433 = vcmp.le.f32.partialorder %v3432, 0.7853982
        %vm3434 = vcmp.lt.s32.totalorder %v2800, 0
        %v3435 = vand.u32 %v2800, 2139095040
        %v3436 = vshrl.u32 %v3435, 23
        %v3437 = vsub.s32 %v3436, 127
        %v3438 = vand.u32 2147483647, %v2800
        %v3439 = vand.u32 %v3438, 8388607
        %v3440 = vor.u32 %v3439, 8388608
        %v3441 = vsub.s32 0, %v3440
        %v3442 = vadd.s32 %v3437, 1
        %vm3443 = vcmp.gt.s32.totalorder %v3442, 0
        %v3444 = vsel %vm3443, %v3442, 0
        %v3445 = vshrl.u32 %v3444, 5
        %v3446 = vand.u32 %v3444, 31
        %v3447 = vsub.s32 32, %v3446
        %v3448 = vshrl.u32 683565275, %v3447
        %v3449 = vshll.u32 683565275, %v3446
        %v3450 = vshrl.u32 2475754826, %v3447
        %v3451 = vor.u32 %v3449, %v3450
        %v3452 = vshll.u32 2475754826, %v3446
        %v3453 = vshrl.u32 2131351028, %v3447
        %v3454 = vor.u32 %v3452, %v3453
        %v3455 = vshll.u32 2131351028, %v3446
        %v3456 = vshrl.u32 2102212464, %v3447
        %v3457 = vor.u32 %v3455, %v3456
        %v3458 = vshll.u32 2102212464, %v3446
        %v3459 = vshrl.u32 920167782, %v3447
        %v3460 = vor.u32 %v3458, %v3459
        %v3461 = vshll.u32 920167782, %v3446
        %v3462 = vshrl.u32 1326507024, %v3447
        %v3463 = vor.u32 %v3461, %v3462
        %vm3464 = vcmp.lt.s32.totalorder %v3445, 1
        %vm3465 = vcmp.lt.s32.totalorder %v3445, 2
        %vm3466 = vcmp.lt.s32.totalorder %v3445, 3
        %vm3467 = vcmp.lt.s32.totalorder %v3445, 4
        %v3468 = vsel %vm3464, %v3448, %v3451
        %v3469 = vsel %vm3467, %v3457, 2102212464
        %v3470 = vsel %vm3466, %v3454, %v3469
        %v3471 = vsel %vm3465, %v3468, %v3470
        %v3472 = vsel %vm3464, %v3451, %v3454
        %v3473 = vsel %vm3467, %v3460, 920167782
        %v3474 = vsel %vm3466, %v3457, %v3473
        %v3475 = vsel %vm3465, %v3472, %v3474
        %v3476 = vsel %vm3464, %v3454, %v3457
        %v3477 = vsel %vm3467, %v3463, 1326507024
        %v3478 = vsel %vm3466, %v3460, %v3477
        %v3479 = vsel %vm3465, %v3476, %v3478
        %v3480 = vshll.u32 %v3440, 8
        %v3481 = vand.u32 %v3480, 65535
        %v3482 = vshrl.u32 %v3480, 16
        %v3483 = vand.u32 %v3479, 65535
        %v3484 = vshrl.u32 %v3479, 16
        %v3485 = vmul.u32 %v3481, %v3483
        %v3486 = vmul.u32 %v3481, %v3484
        %v3487 = vmul.u32 %v3482, %v3483
        %v3488 = vmul.u32 %v3482, %v3484
        %v3489 = vshll.u32 %v3486, 16
        %v3490 = vshrl.u32 %v3486, 16
        %v3491 = vshll.u32 %v3487, 16
        %v3492 = vshrl.u32 %v3487, 16
        %vm3493 = vc.u32 %v3485, %v3489
        %v3494 = vsel %vm3493, 1, 0
        %v3495 = vadd.s32 %v3485, %v3489
        %v3496 = vadd.s32 %v3488, %v3494
        %vm3497 = vc.u32 %v3495, %v3491
        %v3498 = vsel %vm3497, 1, 0
        %v3499 = vadd.s32 %v3495, %v3491
        %v3500 = vadd.s32 %v3496, %v3498
        %v3501 = vadd.s32 %v3500, %v3490
        %v3502 = vadd.s32 %v3501, %v3492
        %v3503 = vand.u32 %v3480, 65535
        %v3504 = vshrl.u32 %v3480, 16
        %v3505 = vand.u32 %v3475, 65535
        %v3506 = vshrl.u32 %v3475, 16
        %v3507 = vmul.u32 %v3503, %v3505
        %v3508 = vmul.u32 %v3503, %v3506
        %v3509 = vmul.u32 %v3504, %v3505
        %v3510 = vmul.u32 %v3504, %v3506
        %v3511 = vshll.u32 %v3508, 16
        %v3512 = vshrl.u32 %v3508, 16
        %v3513 = vshll.u32 %v3509, 16
        %v3514 = vshrl.u32 %v3509, 16
        %vm3515 = vc.u32 %v3507, %v3511
        %v3516 = vsel %vm3515, 1, 0
        %v3517 = vadd.s32 %v3507, %v3511
        %v3518 = vadd.s32 %v3510, %v3516
        %vm3519 = vc.u32 %v3517, %v3513
        %v3520 = vsel %vm3519, 1, 0
        %v3521 = vadd.s32 %v3517, %v3513
        %v3522 = vadd.s32 %v3518, %v3520
        %v3523 = vadd.s32 %v3522, %v3512
        %v3524 = vadd.s32 %v3523, %v3514
        %v3525 = vmul.u32 %v3480, %v3471
        %v3526 = vadd.s32 %v3502, %v3521
        %vm3527 = vc.u32 %v3502, %v3521
        %v3528 = vadd.s32 %v3524, 1
        %v3529 = vsel %vm3527, %v3528, %v3524
        %v3530 = vadd.s32 %v3525, %v3529
        %v3531 = vadd.s32 %v3530, 536870912
        %v3532 = vshrl.u32 %v3531, 30
        %v3533 = vshll.u32 %v3532, 30
        %v3534 = vsub.s32 %v3530, %v3533
        %vm3535 = vcmp.lt.s32.totalorder %v3534, 0
        %v3536 = vsub.s32 0, %v3534
        %v3537 = vsel %vm3535, %v3536, %v3534
        %v3538 = vclz %v3537
        %v3539 = vsub.s32 %v3538, 2
        %vm3540 = vcmp.gt.s32.totalorder 0, %v3539
        %v3541 = vsel %vm3540, 0, %v3539
        %v3542 = vsub.s32 32, %v3541
        %v3543 = vshll.u32 %v3534, %v3541
        %v3544 = vshrl.u32 %v3526, %v3542
        %v3545 = vor.u32 %v3543, %v3544
        %v3546 = vsub.s32 4294967266, %v3541
        %v3547 = vadd.s32 %v3546, 127
        %v3548 = vshll.u32 %v3547, 23
        %v3549 = vor.u32 4788187, %v3548
        %v3550 = vand.u32 2147483647, %v3549
        %v3552 = vcvt.s32.f32 %v3545
        %v3553 = vmul.f32 %v3552, %v3550
        %v3554 = vxor.u32 %v3553, 2147483648
        %v3555 = vsel %vm3434, %v3554, %v3553
        %v3556 = vsub.s32 4, %v3532
        %v3557 = vsel %vm3434, %v3556, %v3532
        %v3558 = vsel %vm3433, %v2800, %v3555
        %v3559 = vsel %vm3433, 0, %v3557
        %v3560 = vmul.f32 %v3558, %v3558
        %v3561 = vmul.f32 %v3560, -0.001358992
        %v3562 = vadd.f32 %v3561, 0.041655596
        %v3563 = vmul.f32 %v3560, %v3562
        %v3564 = vadd.f32 %v3563, -0.4999988
        %v3565 = vmul.f32 %v3560, %v3564
        %v3566 = vadd.f32 1.0, %v3565
        %v3567 = vmul.f32 %v3558, %v3558
        %v3568 = vmul.f32 %v3567, -0.00019511016
        %v3569 = vadd.f32 %v3568, 0.008332121
        %v3570 = vmul.f32 %v3567, %v3569
        %v3571 = vadd.f32 %v3570, -0.16666654
        %v3572 = vmul.f32 %v3567, %v3571
        %v3573 = vadd.f32 %v3572, 1.0
        %v3574 = vmul.f32 %v3573, %v3558
        %vm3575 = vweird.f32 %v2800
        %v3576 = vadd.s32 %v3559, 3
        %v3577 = vand.u32 %v3576, 3
        %vm3578 = vcmp.lt.s32.totalorder %v3577, 2
        %vm3579 = vcmp.eq.s32.totalorder %v3577, 0
        %v3580 = vxor.u32 %v3574, 2147483648
        %v3581 = vsel %vm3579, %v3566, %v3580
        %vm3582 = vcmp.eq.s32.totalorder %v3577, 2
        %v3583 = vxor.u32 %v3566, 2147483648
        %v3584 = vsel %vm3582, %v3583, %v3574
        %v3585 = vsel %vm3578, %v3581, %v3584
        %v3586 = vsel %vm3575, nan, %v3585
        %v3587 = vand.u32 2147483647, %v2801
        %vm3588 = vcmp.le.f32.partialorder %v3587, 0.7853982
        %vm3589 = vcmp.lt.s32.totalorder %v2801, 0
        %v3590 = vand.u32 %v2801, 2139095040
        %v3591 = vshrl.u32 %v3590, 23
        %v3592 = vsub.s32 %v3591, 127
        %v3593 = vand.u32 2147483647, %v2801
        %v3594 = vand.u32 %v3593, 8388607
        %v3595 = vor.u32 %v3594, 8388608
        %v3596 = vsub.s32 0, %v3595
        %v3597 = vadd.s32 %v3592, 1
        %vm3598 = vcmp.gt.s32.totalorder %v3597, 0
        %v3599 = vsel %vm3598, %v3597, 0
        %v3600 = vshrl.u32 %v3599, 5
        %v3601 = vand.u32 %v3599, 31
        %v3602 = vsub.s32 32, %v3601
        %v3603 = vshrl.u32 683565275, %v3602
        %v3604 = vshll.u32 683565275, %v3601
        %v3605 = vshrl.u32 2475754826, %v3602
        %v3606 = vor.u32 %v3604, %v3605
        %v3607 = vshll.u32 2475754826, %v3601
        %v3608 = vshrl.u32 2131351028, %v3602
        %v3609 = vor.u32 %v3607, %v3608
        %v3610 = vshll.u32 2131351028, %v3601
        %v3611 = vshrl.u32 2102212464, %v3602
        %v3612 = vor.u32 %v3610, %v3611
        %v3613 = vshll.u32 2102212464, %v3601
        %v3614 = vshrl.u32 920167782, %v3602
        %v3615 = vor.u32 %v3613, %v3614
        %v3616 = vshll.u32 920167782, %v3601
        %v3617 = vshrl.u32 1326507024, %v3602
        %v3618 = vor.u32 %v3616, %v3617
        %vm3619 = vcmp.lt.s32.totalorder %v3600, 1
        %vm3620 = vcmp.lt.s32.totalorder %v3600, 2
        %vm3621 = vcmp.lt.s32.totalorder %v3600, 3
        %vm3622 = vcmp.lt.s32.totalorder %v3600, 4
        %v3623 = vsel %vm3619, %v3603, %v3606
        %v3624 = vsel %vm3622, %v3612, 2102212464
        %v3625 = vsel %vm3621, %v3609, %v3624
        %v3626 = vsel %vm3620, %v3623, %v3625
        %v3627 = vsel %vm3619, %v3606, %v3609
        %v3628 = vsel %vm3622, %v3615, 920167782
        %v3629 = vsel %vm3621, %v3612, %v3628
        %v3630 = vsel %vm3620, %v3627, %v3629
        %v3631 = vsel %vm3619, %v3609, %v3612
        %v3632 = vsel %vm3622, %v3618, 1326507024
        %v3633 = vsel %vm3621, %v3615, %v3632
        %v3634 = vsel %vm3620, %v3631, %v3633
        %v3635 = vshll.u32 %v3595, 8
        %v3636 = vand.u32 %v3635, 65535
        %v3637 = vshrl.u32 %v3635, 16
        %v3638 = vand.u32 %v3634, 65535
        %v3639 = vshrl.u32 %v3634, 16
        %v3640 = vmul.u32 %v3636, %v3638
        %v3641 = vmul.u32 %v3636, %v3639
        %v3642 = vmul.u32 %v3637, %v3638
        %v3643 = vmul.u32 %v3637, %v3639
        %v3644 = vshll.u32 %v3641, 16
        %v3645 = vshrl.u32 %v3641, 16
        %v3646 = vshll.u32 %v3642, 16
        %v3647 = vshrl.u32 %v3642, 16
        %vm3648 = vc.u32 %v3640, %v3644
        %v3649 = vsel %vm3648, 1, 0
        %v3650 = vadd.s32 %v3640, %v3644
        %v3651 = vadd.s32 %v3643, %v3649
        %vm3652 = vc.u32 %v3650, %v3646
        %v3653 = vsel %vm3652, 1, 0
        %v3654 = vadd.s32 %v3650, %v3646
        %v3655 = vadd.s32 %v3651, %v3653
        %v3656 = vadd.s32 %v3655, %v3645
        %v3657 = vadd.s32 %v3656, %v3647
        %v3658 = vand.u32 %v3635, 65535
        %v3659 = vshrl.u32 %v3635, 16
        %v3660 = vand.u32 %v3630, 65535
        %v3661 = vshrl.u32 %v3630, 16
        %v3662 = vmul.u32 %v3658, %v3660
        %v3663 = vmul.u32 %v3658, %v3661
        %v3664 = vmul.u32 %v3659, %v3660
        %v3665 = vmul.u32 %v3659, %v3661
        %v3666 = vshll.u32 %v3663, 16
        %v3667 = vshrl.u32 %v3663, 16
        %v3668 = vshll.u32 %v3664, 16
        %v3669 = vshrl.u32 %v3664, 16
        %vm3670 = vc.u32 %v3662, %v3666
        %v3671 = vsel %vm3670, 1, 0
        %v3672 = vadd.s32 %v3662, %v3666
        %v3673 = vadd.s32 %v3665, %v3671
        %vm3674 = vc.u32 %v3672, %v3668
        %v3675 = vsel %vm3674, 1, 0
        %v3676 = vadd.s32 %v3672, %v3668
        %v3677 = vadd.s32 %v3673, %v3675
        %v3678 = vadd.s32 %v3677, %v3667
        %v3679 = vadd.s32 %v3678, %v3669
        %v3680 = vmul.u32 %v3635, %v3626
        %v3681 = vadd.s32 %v3657, %v3676
        %vm3682 = vc.u32 %v3657, %v3676
        %v3683 = vadd.s32 %v3679, 1
        %v3684 = vsel %vm3682, %v3683, %v3679
        %v3685 = vadd.s32 %v3680, %v3684
        %v3686 = vadd.s32 %v3685, 536870912
        %v3687 = vshrl.u32 %v3686, 30
        %v3688 = vshll.u32 %v3687, 30
        %v3689 = vsub.s32 %v3685, %v3688
        %vm3690 = vcmp.lt.s32.totalorder %v3689, 0
        %v3691 = vsub.s32 0, %v3689
        %v3692 = vsel %vm3690, %v3691, %v3689
        %v3693 = vclz %v3692
        %v3694 = vsub.s32 %v3693, 2
        %vm3695 = vcmp.gt.s32.totalorder 0, %v3694
        %v3696 = vsel %vm3695, 0, %v3694
        %v3697 = vsub.s32 32, %v3696
        %v3698 = vshll.u32 %v3689, %v3696
        %v3699 = vshrl.u32 %v3681, %v3697
        %v3700 = vor.u32 %v3698, %v3699
        %v3701 = vsub.s32 4294967266, %v3696
        %v3702 = vadd.s32 %v3701, 127
        %v3703 = vshll.u32 %v3702, 23
        %v3704 = vor.u32 4788187, %v3703
        %v3705 = vand.u32 2147483647, %v3704
        %v3707 = vcvt.s32.f32 %v3700
        %v3708 = vmul.f32 %v3707, %v3705
        %v3709 = vxor.u32 %v3708, 2147483648
        %v3710 = vsel %vm3589, %v3709, %v3708
        %v3711 = vsub.s32 4, %v3687
        %v3712 = vsel %vm3589, %v3711, %v3687
        %v3713 = vsel %vm3588, %v2801, %v3710
        %v3714 = vsel %vm3588, 0, %v3712
        %v3715 = vmul.f32 %v3713, %v3713
        %v3716 = vmul.f32 %v3715, -0.001358992
        %v3717 = vadd.f32 %v3716, 0.041655596
        %v3718 = vmul.f32 %v3715, %v3717
        %v3719 = vadd.f32 %v3718, -0.4999988
        %v3720 = vmul.f32 %v3715, %v3719
        %v3721 = vadd.f32 1.0, %v3720
        %v3722 = vmul.f32 %v3713, %v3713
        %v3723 = vmul.f32 %v3722, -0.00019511016
        %v3724 = vadd.f32 %v3723, 0.008332121
        %v3725 = vmul.f32 %v3722, %v3724
        %v3726 = vadd.f32 %v3725, -0.16666654
        %v3727 = vmul.f32 %v3722, %v3726
        %v3728 = vadd.f32 %v3727, 1.0
        %v3729 = vmul.f32 %v3728, %v3713
        %vm3730 = vweird.f32 %v2801
        %v3731 = vadd.s32 %v3714, 3
        %v3732 = vand.u32 %v3731, 3
        %vm3733 = vcmp.lt.s32.totalorder %v3732, 2
        %vm3734 = vcmp.eq.s32.totalorder %v3732, 0
        %v3735 = vxor.u32 %v3729, 2147483648
        %v3736 = vsel %vm3734, %v3721, %v3735
        %vm3737 = vcmp.eq.s32.totalorder %v3732, 2
        %v3738 = vxor.u32 %v3721, 2147483648
        %v3739 = vsel %vm3737, %v3738, %v3729
        %v3740 = vsel %vm3733, %v3736, %v3739
        %v3741 = vsel %vm3730, nan, %v3740
        %v3742 = vand.u32 2147483647, %v2802
        %vm3743 = vcmp.le.f32.partialorder %v3742, 0.7853982
        %vm3744 = vcmp.lt.s32.totalorder %v2802, 0
        %v3745 = vand.u32 %v2802, 2139095040
        %v3746 = vshrl.u32 %v3745, 23
        %v3747 = vsub.s32 %v3746, 127
        %v3748 = vand.u32 2147483647, %v2802
        %v3749 = vand.u32 %v3748, 8388607
        %v3750 = vor.u32 %v3749, 8388608
        %v3751 = vsub.s32 0, %v3750
        %v3752 = vadd.s32 %v3747, 1
        %vm3753 = vcmp.gt.s32.totalorder %v3752, 0
        %v3754 = vsel %vm3753, %v3752, 0
        %v3755 = vshrl.u32 %v3754, 5
        %v3756 = vand.u32 %v3754, 31
        %v3757 = vsub.s32 32, %v3756
        %v3758 = vshrl.u32 683565275, %v3757
        %v3759 = vshll.u32 683565275, %v3756
        %v3760 = vshrl.u32 2475754826, %v3757
        %v3761 = vor.u32 %v3759, %v3760
        %v3762 = vshll.u32 2475754826, %v3756
        %v3763 = vshrl.u32 2131351028, %v3757
        %v3764 = vor.u32 %v3762, %v3763
        %v3765 = vshll.u32 2131351028, %v3756
        %v3766 = vshrl.u32 2102212464, %v3757
        %v3767 = vor.u32 %v3765, %v3766
        %v3768 = vshll.u32 2102212464, %v3756
        %v3769 = vshrl.u32 920167782, %v3757
        %v3770 = vor.u32 %v3768, %v3769
        %v3771 = vshll.u32 920167782, %v3756
        %v3772 = vshrl.u32 1326507024, %v3757
        %v3773 = vor.u32 %v3771, %v3772
        %vm3774 = vcmp.lt.s32.totalorder %v3755, 1
        %vm3775 = vcmp.lt.s32.totalorder %v3755, 2
        %vm3776 = vcmp.lt.s32.totalorder %v3755, 3
        %vm3777 = vcmp.lt.s32.totalorder %v3755, 4
        %v3778 = vsel %vm3774, %v3758, %v3761
        %v3779 = vsel %vm3777, %v3767, 2102212464
        %v3780 = vsel %vm3776, %v3764, %v3779
        %v3781 = vsel %vm3775, %v3778, %v3780
        %v3782 = vsel %vm3774, %v3761, %v3764
        %v3783 = vsel %vm3777, %v3770, 920167782
        %v3784 = vsel %vm3776, %v3767, %v3783
        %v3785 = vsel %vm3775, %v3782, %v3784
        %v3786 = vsel %vm3774, %v3764, %v3767
        %v3787 = vsel %vm3777, %v3773, 1326507024
        %v3788 = vsel %vm3776, %v3770, %v3787
        %v3789 = vsel %vm3775, %v3786, %v3788
        %v3790 = vshll.u32 %v3750, 8
        %v3791 = vand.u32 %v3790, 65535
        %v3792 = vshrl.u32 %v3790, 16
        %v3793 = vand.u32 %v3789, 65535
        %v3794 = vshrl.u32 %v3789, 16
        %v3795 = vmul.u32 %v3791, %v3793
        %v3796 = vmul.u32 %v3791, %v3794
        %v3797 = vmul.u32 %v3792, %v3793
        %v3798 = vmul.u32 %v3792, %v3794
        %v3799 = vshll.u32 %v3796, 16
        %v3800 = vshrl.u32 %v3796, 16
        %v3801 = vshll.u32 %v3797, 16
        %v3802 = vshrl.u32 %v3797, 16
        %vm3803 = vc.u32 %v3795, %v3799
        %v3804 = vsel %vm3803, 1, 0
        %v3805 = vadd.s32 %v3795, %v3799
        %v3806 = vadd.s32 %v3798, %v3804
        %vm3807 = vc.u32 %v3805, %v3801
        %v3808 = vsel %vm3807, 1, 0
        %v3809 = vadd.s32 %v3805, %v3801
        %v3810 = vadd.s32 %v3806, %v3808
        %v3811 = vadd.s32 %v3810, %v3800
        %v3812 = vadd.s32 %v3811, %v3802
        %v3813 = vand.u32 %v3790, 65535
        %v3814 = vshrl.u32 %v3790, 16
        %v3815 = vand.u32 %v3785, 65535
        %v3816 = vshrl.u32 %v3785, 16
        %v3817 = vmul.u32 %v3813, %v3815
        %v3818 = vmul.u32 %v3813, %v3816
        %v3819 = vmul.u32 %v3814, %v3815
        %v3820 = vmul.u32 %v3814, %v3816
        %v3821 = vshll.u32 %v3818, 16
        %v3822 = vshrl.u32 %v3818, 16
        %v3823 = vshll.u32 %v3819, 16
        %v3824 = vshrl.u32 %v3819, 16
        %vm3825 = vc.u32 %v3817, %v3821
        %v3826 = vsel %vm3825, 1, 0
        %v3827 = vadd.s32 %v3817, %v3821
        %v3828 = vadd.s32 %v3820, %v3826
        %vm3829 = vc.u32 %v3827, %v3823
        %v3830 = vsel %vm3829, 1, 0
        %v3831 = vadd.s32 %v3827, %v3823
        %v3832 = vadd.s32 %v3828, %v3830
        %v3833 = vadd.s32 %v3832, %v3822
        %v3834 = vadd.s32 %v3833, %v3824
        %v3835 = vmul.u32 %v3790, %v3781
        %v3836 = vadd.s32 %v3812, %v3831
        %vm3837 = vc.u32 %v3812, %v3831
        %v3838 = vadd.s32 %v3834, 1
        %v3839 = vsel %vm3837, %v3838, %v3834
        %v3840 = vadd.s32 %v3835, %v3839
        %v3841 = vadd.s32 %v3840, 536870912
        %v3842 = vshrl.u32 %v3841, 30
        %v3843 = vshll.u32 %v3842, 30
        %v3844 = vsub.s32 %v3840, %v3843
        %vm3845 = vcmp.lt.s32.totalorder %v3844, 0
        %v3846 = vsub.s32 0, %v3844
        %v3847 = vsel %vm3845, %v3846, %v3844
        %v3848 = vclz %v3847
        %v3849 = vsub.s32 %v3848, 2
        %vm3850 = vcmp.gt.s32.totalorder 0, %v3849
        %v3851 = vsel %vm3850, 0, %v3849
        %v3852 = vsub.s32 32, %v3851
        %v3853 = vshll.u32 %v3844, %v3851
        %v3854 = vshrl.u32 %v3836, %v3852
        %v3855 = vor.u32 %v3853, %v3854
        %v3856 = vsub.s32 4294967266, %v3851
        %v3857 = vadd.s32 %v3856, 127
        %v3858 = vshll.u32 %v3857, 23
        %v3859 = vor.u32 4788187, %v3858
        %v3860 = vand.u32 2147483647, %v3859
        %v3862 = vcvt.s32.f32 %v3855
        %v3863 = vmul.f32 %v3862, %v3860
        %v3864 = vxor.u32 %v3863, 2147483648
        %v3865 = vsel %vm3744, %v3864, %v3863
        %v3866 = vsub.s32 4, %v3842
        %v3867 = vsel %vm3744, %v3866, %v3842
        %v3868 = vsel %vm3743, %v2802, %v3865
        %v3869 = vsel %vm3743, 0, %v3867
        %v3870 = vmul.f32 %v3868, %v3868
        %v3871 = vmul.f32 %v3870, -0.001358992
        %v3872 = vadd.f32 %v3871, 0.041655596
        %v3873 = vmul.f32 %v3870, %v3872
        %v3874 = vadd.f32 %v3873, -0.4999988
        %v3875 = vmul.f32 %v3870, %v3874
        %v3876 = vadd.f32 1.0, %v3875
        %v3877 = vmul.f32 %v3868, %v3868
        %v3878 = vmul.f32 %v3877, -0.00019511016
        %v3879 = vadd.f32 %v3878, 0.008332121
        %v3880 = vmul.f32 %v3877, %v3879
        %v3881 = vadd.f32 %v3880, -0.16666654
        %v3882 = vmul.f32 %v3877, %v3881
        %v3883 = vadd.f32 %v3882, 1.0
        %v3884 = vmul.f32 %v3883, %v3868
        %vm3885 = vweird.f32 %v2802
        %v3886 = vadd.s32 %v3869, 3
        %v3887 = vand.u32 %v3886, 3
        %vm3888 = vcmp.lt.s32.totalorder %v3887, 2
        %vm3889 = vcmp.eq.s32.totalorder %v3887, 0
        %v3890 = vxor.u32 %v3884, 2147483648
        %v3891 = vsel %vm3889, %v3876, %v3890
        %vm3892 = vcmp.eq.s32.totalorder %v3887, 2
        %v3893 = vxor.u32 %v3876, 2147483648
        %v3894 = vsel %vm3892, %v3893, %v3884
        %v3895 = vsel %vm3888, %v3891, %v3894
        %v3896 = vsel %vm3885, nan, %v3895
        %v3897 = vand.u32 2147483647, %v2803
        %vm3898 = vcmp.le.f32.partialorder %v3897, 0.7853982
        %vm3899 = vcmp.lt.s32.totalorder %v2803, 0
        %v3900 = vand.u32 %v2803, 2139095040
        %v3901 = vshrl.u32 %v3900, 23
        %v3902 = vsub.s32 %v3901, 127
        %v3903 = vand.u32 2147483647, %v2803
        %v3904 = vand.u32 %v3903, 8388607
        %v3905 = vor.u32 %v3904, 8388608
        %v3906 = vsub.s32 0, %v3905
        %v3907 = vadd.s32 %v3902, 1
        %vm3908 = vcmp.gt.s32.totalorder %v3907, 0
        %v3909 = vsel %vm3908, %v3907, 0
        %v3910 = vshrl.u32 %v3909, 5
        %v3911 = vand.u32 %v3909, 31
        %v3912 = vsub.s32 32, %v3911
        %v3913 = vshrl.u32 683565275, %v3912
        %v3914 = vshll.u32 683565275, %v3911
        %v3915 = vshrl.u32 2475754826, %v3912
        %v3916 = vor.u32 %v3914, %v3915
        %v3917 = vshll.u32 2475754826, %v3911
        %v3918 = vshrl.u32 2131351028, %v3912
        %v3919 = vor.u32 %v3917, %v3918
        %v3920 = vshll.u32 2131351028, %v3911
        %v3921 = vshrl.u32 2102212464, %v3912
        %v3922 = vor.u32 %v3920, %v3921
        %v3923 = vshll.u32 2102212464, %v3911
        %v3924 = vshrl.u32 920167782, %v3912
        %v3925 = vor.u32 %v3923, %v3924
        %v3926 = vshll.u32 920167782, %v3911
        %v3927 = vshrl.u32 1326507024, %v3912
        %v3928 = vor.u32 %v3926, %v3927
        %vm3929 = vcmp.lt.s32.totalorder %v3910, 1
        %vm3930 = vcmp.lt.s32.totalorder %v3910, 2
        %vm3931 = vcmp.lt.s32.totalorder %v3910, 3
        %vm3932 = vcmp.lt.s32.totalorder %v3910, 4
        %v3933 = vsel %vm3929, %v3913, %v3916
        %v3934 = vsel %vm3932, %v3922, 2102212464
        %v3935 = vsel %vm3931, %v3919, %v3934
        %v3936 = vsel %vm3930, %v3933, %v3935
        %v3937 = vsel %vm3929, %v3916, %v3919
        %v3938 = vsel %vm3932, %v3925, 920167782
        %v3939 = vsel %vm3931, %v3922, %v3938
        %v3940 = vsel %vm3930, %v3937, %v3939
        %v3941 = vsel %vm3929, %v3919, %v3922
        %v3942 = vsel %vm3932, %v3928, 1326507024
        %v3943 = vsel %vm3931, %v3925, %v3942
        %v3944 = vsel %vm3930, %v3941, %v3943
        %v3945 = vshll.u32 %v3905, 8
        %v3946 = vand.u32 %v3945, 65535
        %v3947 = vshrl.u32 %v3945, 16
        %v3948 = vand.u32 %v3944, 65535
        %v3949 = vshrl.u32 %v3944, 16
        %v3950 = vmul.u32 %v3946, %v3948
        %v3951 = vmul.u32 %v3946, %v3949
        %v3952 = vmul.u32 %v3947, %v3948
        %v3953 = vmul.u32 %v3947, %v3949
        %v3954 = vshll.u32 %v3951, 16
        %v3955 = vshrl.u32 %v3951, 16
        %v3956 = vshll.u32 %v3952, 16
        %v3957 = vshrl.u32 %v3952, 16
        %vm3958 = vc.u32 %v3950, %v3954
        %v3959 = vsel %vm3958, 1, 0
        %v3960 = vadd.s32 %v3950, %v3954
        %v3961 = vadd.s32 %v3953, %v3959
        %vm3962 = vc.u32 %v3960, %v3956
        %v3963 = vsel %vm3962, 1, 0
        %v3964 = vadd.s32 %v3960, %v3956
        %v3965 = vadd.s32 %v3961, %v3963
        %v3966 = vadd.s32 %v3965, %v3955
        %v3967 = vadd.s32 %v3966, %v3957
        %v3968 = vand.u32 %v3945, 65535
        %v3969 = vshrl.u32 %v3945, 16
        %v3970 = vand.u32 %v3940, 65535
        %v3971 = vshrl.u32 %v3940, 16
        %v3972 = vmul.u32 %v3968, %v3970
        %v3973 = vmul.u32 %v3968, %v3971
        %v3974 = vmul.u32 %v3969, %v3970
        %v3975 = vmul.u32 %v3969, %v3971
        %v3976 = vshll.u32 %v3973, 16
        %v3977 = vshrl.u32 %v3973, 16
        %v3978 = vshll.u32 %v3974, 16
        %v3979 = vshrl.u32 %v3974, 16
        %vm3980 = vc.u32 %v3972, %v3976
        %v3981 = vsel %vm3980, 1, 0
        %v3982 = vadd.s32 %v3972, %v3976
        %v3983 = vadd.s32 %v3975, %v3981
        %vm3984 = vc.u32 %v3982, %v3978
        %v3985 = vsel %vm3984, 1, 0
        %v3986 = vadd.s32 %v3982, %v3978
        %v3987 = vadd.s32 %v3983, %v3985
        %v3988 = vadd.s32 %v3987, %v3977
        %v3989 = vadd.s32 %v3988, %v3979
        %v3990 = vmul.u32 %v3945, %v3936
        %v3991 = vadd.s32 %v3967, %v3986
        %vm3992 = vc.u32 %v3967, %v3986
        %v3993 = vadd.s32 %v3989, 1
        %v3994 = vsel %vm3992, %v3993, %v3989
        %v3995 = vadd.s32 %v3990, %v3994
        %v3996 = vadd.s32 %v3995, 536870912
        %v3997 = vshrl.u32 %v3996, 30
        %v3998 = vshll.u32 %v3997, 30
        %v3999 = vsub.s32 %v3995, %v3998
        %vm4000 = vcmp.lt.s32.totalorder %v3999, 0
        %v4001 = vsub.s32 0, %v3999
        %v4002 = vsel %vm4000, %v4001, %v3999
        %v4003 = vclz %v4002
        %v4004 = vsub.s32 %v4003, 2
        %vm4005 = vcmp.gt.s32.totalorder 0, %v4004
        %v4006 = vsel %vm4005, 0, %v4004
        %v4007 = vsub.s32 32, %v4006
        %v4008 = vshll.u32 %v3999, %v4006
        %v4009 = vshrl.u32 %v3991, %v4007
        %v4010 = vor.u32 %v4008, %v4009
        %v4011 = vsub.s32 4294967266, %v4006
        %v4012 = vadd.s32 %v4011, 127
        %v4013 = vshll.u32 %v4012, 23
        %v4014 = vor.u32 4788187, %v4013
        %v4015 = vand.u32 2147483647, %v4014
        %v4017 = vcvt.s32.f32 %v4010
        %v4018 = vmul.f32 %v4017, %v4015
        %v4019 = vxor.u32 %v4018, 2147483648
        %v4020 = vsel %vm3899, %v4019, %v4018
        %v4021 = vsub.s32 4, %v3997
        %v4022 = vsel %vm3899, %v4021, %v3997
        %v4023 = vsel %vm3898, %v2803, %v4020
        %v4024 = vsel %vm3898, 0, %v4022
        %v4025 = vmul.f32 %v4023, %v4023
        %v4026 = vmul.f32 %v4025, -0.001358992
        %v4027 = vadd.f32 %v4026, 0.041655596
        %v4028 = vmul.f32 %v4025, %v4027
        %v4029 = vadd.f32 %v4028, -0.4999988
        %v4030 = vmul.f32 %v4025, %v4029
        %v4031 = vadd.f32 1.0, %v4030
        %v4032 = vmul.f32 %v4023, %v4023
        %v4033 = vmul.f32 %v4032, -0.00019511016
        %v4034 = vadd.f32 %v4033, 0.008332121
        %v4035 = vmul.f32 %v4032, %v4034
        %v4036 = vadd.f32 %v4035, -0.16666654
        %v4037 = vmul.f32 %v4032, %v4036
        %v4038 = vadd.f32 %v4037, 1.0
        %v4039 = vmul.f32 %v4038, %v4023
        %vm4040 = vweird.f32 %v2803
        %v4041 = vadd.s32 %v4024, 3
        %v4042 = vand.u32 %v4041, 3
        %vm4043 = vcmp.lt.s32.totalorder %v4042, 2
        %vm4044 = vcmp.eq.s32.totalorder %v4042, 0
        %v4045 = vxor.u32 %v4039, 2147483648
        %v4046 = vsel %vm4044, %v4031, %v4045
        %vm4047 = vcmp.eq.s32.totalorder %v4042, 2
        %v4048 = vxor.u32 %v4031, 2147483648
        %v4049 = vsel %vm4047, %v4048, %v4039
        %v4050 = vsel %vm4043, %v4046, %v4049
        %v4051 = vsel %vm4040, nan, %v4050
        %v4052 = vand.u32 2147483647, %v2804
        %vm4053 = vcmp.le.f32.partialorder %v4052, 0.7853982
        %vm4054 = vcmp.lt.s32.totalorder %v2804, 0
        %v4055 = vand.u32 %v2804, 2139095040
        %v4056 = vshrl.u32 %v4055, 23
        %v4057 = vsub.s32 %v4056, 127
        %v4058 = vand.u32 2147483647, %v2804
        %v4059 = vand.u32 %v4058, 8388607
        %v4060 = vor.u32 %v4059, 8388608
        %v4061 = vsub.s32 0, %v4060
        %v4062 = vadd.s32 %v4057, 1
        %vm4063 = vcmp.gt.s32.totalorder %v4062, 0
        %v4064 = vsel %vm4063, %v4062, 0
        %v4065 = vshrl.u32 %v4064, 5
        %v4066 = vand.u32 %v4064, 31
        %v4067 = vsub.s32 32, %v4066
        %v4068 = vshrl.u32 683565275, %v4067
        %v4069 = vshll.u32 683565275, %v4066
        %v4070 = vshrl.u32 2475754826, %v4067
        %v4071 = vor.u32 %v4069, %v4070
        %v4072 = vshll.u32 2475754826, %v4066
        %v4073 = vshrl.u32 2131351028, %v4067
        %v4074 = vor.u32 %v4072, %v4073
        %v4075 = vshll.u32 2131351028, %v4066
        %v4076 = vshrl.u32 2102212464, %v4067
        %v4077 = vor.u32 %v4075, %v4076
        %v4078 = vshll.u32 2102212464, %v4066
        %v4079 = vshrl.u32 920167782, %v4067
        %v4080 = vor.u32 %v4078, %v4079
        %v4081 = vshll.u32 920167782, %v4066
        %v4082 = vshrl.u32 1326507024, %v4067
        %v4083 = vor.u32 %v4081, %v4082
        %vm4084 = vcmp.lt.s32.totalorder %v4065, 1
        %vm4085 = vcmp.lt.s32.totalorder %v4065, 2
        %vm4086 = vcmp.lt.s32.totalorder %v4065, 3
        %vm4087 = vcmp.lt.s32.totalorder %v4065, 4
        %v4088 = vsel %vm4084, %v4068, %v4071
        %v4089 = vsel %vm4087, %v4077, 2102212464
        %v4090 = vsel %vm4086, %v4074, %v4089
        %v4091 = vsel %vm4085, %v4088, %v4090
        %v4092 = vsel %vm4084, %v4071, %v4074
        %v4093 = vsel %vm4087, %v4080, 920167782
        %v4094 = vsel %vm4086, %v4077, %v4093
        %v4095 = vsel %vm4085, %v4092, %v4094
        %v4096 = vsel %vm4084, %v4074, %v4077
        %v4097 = vsel %vm4087, %v4083, 1326507024
        %v4098 = vsel %vm4086, %v4080, %v4097
        %v4099 = vsel %vm4085, %v4096, %v4098
        %v4100 = vshll.u32 %v4060, 8
        %v4101 = vand.u32 %v4100, 65535
        %v4102 = vshrl.u32 %v4100, 16
        %v4103 = vand.u32 %v4099, 65535
        %v4104 = vshrl.u32 %v4099, 16
        %v4105 = vmul.u32 %v4101, %v4103
        %v4106 = vmul.u32 %v4101, %v4104
        %v4107 = vmul.u32 %v4102, %v4103
        %v4108 = vmul.u32 %v4102, %v4104
        %v4109 = vshll.u32 %v4106, 16
        %v4110 = vshrl.u32 %v4106, 16
        %v4111 = vshll.u32 %v4107, 16
        %v4112 = vshrl.u32 %v4107, 16
        %vm4113 = vc.u32 %v4105, %v4109
        %v4114 = vsel %vm4113, 1, 0
        %v4115 = vadd.s32 %v4105, %v4109
        %v4116 = vadd.s32 %v4108, %v4114
        %vm4117 = vc.u32 %v4115, %v4111
        %v4118 = vsel %vm4117, 1, 0
        %v4119 = vadd.s32 %v4115, %v4111
        %v4120 = vadd.s32 %v4116, %v4118
        %v4121 = vadd.s32 %v4120, %v4110
        %v4122 = vadd.s32 %v4121, %v4112
        %v4123 = vand.u32 %v4100, 65535
        %v4124 = vshrl.u32 %v4100, 16
        %v4125 = vand.u32 %v4095, 65535
        %v4126 = vshrl.u32 %v4095, 16
        %v4127 = vmul.u32 %v4123, %v4125
        %v4128 = vmul.u32 %v4123, %v4126
        %v4129 = vmul.u32 %v4124, %v4125
        %v4130 = vmul.u32 %v4124, %v4126
        %v4131 = vshll.u32 %v4128, 16
        %v4132 = vshrl.u32 %v4128, 16
        %v4133 = vshll.u32 %v4129, 16
        %v4134 = vshrl.u32 %v4129, 16
        %vm4135 = vc.u32 %v4127, %v4131
        %v4136 = vsel %vm4135, 1, 0
        %v4137 = vadd.s32 %v4127, %v4131
        %v4138 = vadd.s32 %v4130, %v4136
        %vm4139 = vc.u32 %v4137, %v4133
        %v4140 = vsel %vm4139, 1, 0
        %v4141 = vadd.s32 %v4137, %v4133
        %v4142 = vadd.s32 %v4138, %v4140
        %v4143 = vadd.s32 %v4142, %v4132
        %v4144 = vadd.s32 %v4143, %v4134
        %v4145 = vmul.u32 %v4100, %v4091
        %v4146 = vadd.s32 %v4122, %v4141
        %vm4147 = vc.u32 %v4122, %v4141
        %v4148 = vadd.s32 %v4144, 1
        %v4149 = vsel %vm4147, %v4148, %v4144
        %v4150 = vadd.s32 %v4145, %v4149
        %v4151 = vadd.s32 %v4150, 536870912
        %v4152 = vshrl.u32 %v4151, 30
        %v4153 = vshll.u32 %v4152, 30
        %v4154 = vsub.s32 %v4150, %v4153
        %vm4155 = vcmp.lt.s32.totalorder %v4154, 0
        %v4156 = vsub.s32 0, %v4154
        %v4157 = vsel %vm4155, %v4156, %v4154
        %v4158 = vclz %v4157
        %v4159 = vsub.s32 %v4158, 2
        %vm4160 = vcmp.gt.s32.totalorder 0, %v4159
        %v4161 = vsel %vm4160, 0, %v4159
        %v4162 = vsub.s32 32, %v4161
        %v4163 = vshll.u32 %v4154, %v4161
        %v4164 = vshrl.u32 %v4146, %v4162
        %v4165 = vor.u32 %v4163, %v4164
        %v4166 = vsub.s32 4294967266, %v4161
        %v4167 = vadd.s32 %v4166, 127
        %v4168 = vshll.u32 %v4167, 23
        %v4169 = vor.u32 4788187, %v4168
        %v4170 = vand.u32 2147483647, %v4169
        %v4172 = vcvt.s32.f32 %v4165
        %v4173 = vmul.f32 %v4172, %v4170
        %v4174 = vxor.u32 %v4173, 2147483648
        %v4175 = vsel %vm4054, %v4174, %v4173
        %v4176 = vsub.s32 4, %v4152
        %v4177 = vsel %vm4054, %v4176, %v4152
        %v4178 = vsel %vm4053, %v2804, %v4175
        %v4179 = vsel %vm4053, 0, %v4177
        %v4180 = vmul.f32 %v4178, %v4178
        %v4181 = vmul.f32 %v4180, -0.001358992
        %v4182 = vadd.f32 %v4181, 0.041655596
        %v4183 = vmul.f32 %v4180, %v4182
        %v4184 = vadd.f32 %v4183, -0.4999988
        %v4185 = vmul.f32 %v4180, %v4184
        %v4186 = vadd.f32 1.0, %v4185
        %v4187 = vmul.f32 %v4178, %v4178
        %v4188 = vmul.f32 %v4187, -0.00019511016
        %v4189 = vadd.f32 %v4188, 0.008332121
        %v4190 = vmul.f32 %v4187, %v4189
        %v4191 = vadd.f32 %v4190, -0.16666654
        %v4192 = vmul.f32 %v4187, %v4191
        %v4193 = vadd.f32 %v4192, 1.0
        %v4194 = vmul.f32 %v4193, %v4178
        %vm4195 = vweird.f32 %v2804
        %v4196 = vadd.s32 %v4179, 3
        %v4197 = vand.u32 %v4196, 3
        %vm4198 = vcmp.lt.s32.totalorder %v4197, 2
        %vm4199 = vcmp.eq.s32.totalorder %v4197, 0
        %v4200 = vxor.u32 %v4194, 2147483648
        %v4201 = vsel %vm4199, %v4186, %v4200
        %vm4202 = vcmp.eq.s32.totalorder %v4197, 2
        %v4203 = vxor.u32 %v4186, 2147483648
        %v4204 = vsel %vm4202, %v4203, %v4194
        %v4205 = vsel %vm4198, %v4201, %v4204
        %v4206 = vsel %vm4195, nan, %v4205
        %v4207 = vand.u32 2147483647, %v2805
        %vm4208 = vcmp.le.f32.partialorder %v4207, 0.7853982
        %vm4209 = vcmp.lt.s32.totalorder %v2805, 0
        %v4210 = vand.u32 %v2805, 2139095040
        %v4211 = vshrl.u32 %v4210, 23
        %v4212 = vsub.s32 %v4211, 127
        %v4213 = vand.u32 2147483647, %v2805
        %v4214 = vand.u32 %v4213, 8388607
        %v4215 = vor.u32 %v4214, 8388608
        %v4216 = vsub.s32 0, %v4215
        %v4217 = vadd.s32 %v4212, 1
        %vm4218 = vcmp.gt.s32.totalorder %v4217, 0
        %v4219 = vsel %vm4218, %v4217, 0
        %v4220 = vshrl.u32 %v4219, 5
        %v4221 = vand.u32 %v4219, 31
        %v4222 = vsub.s32 32, %v4221
        %v4223 = vshrl.u32 683565275, %v4222
        %v4224 = vshll.u32 683565275, %v4221
        %v4225 = vshrl.u32 2475754826, %v4222
        %v4226 = vor.u32 %v4224, %v4225
        %v4227 = vshll.u32 2475754826, %v4221
        %v4228 = vshrl.u32 2131351028, %v4222
        %v4229 = vor.u32 %v4227, %v4228
        %v4230 = vshll.u32 2131351028, %v4221
        %v4231 = vshrl.u32 2102212464, %v4222
        %v4232 = vor.u32 %v4230, %v4231
        %v4233 = vshll.u32 2102212464, %v4221
        %v4234 = vshrl.u32 920167782, %v4222
        %v4235 = vor.u32 %v4233, %v4234
        %v4236 = vshll.u32 920167782, %v4221
        %v4237 = vshrl.u32 1326507024, %v4222
        %v4238 = vor.u32 %v4236, %v4237
        %vm4239 = vcmp.lt.s32.totalorder %v4220, 1
        %vm4240 = vcmp.lt.s32.totalorder %v4220, 2
        %vm4241 = vcmp.lt.s32.totalorder %v4220, 3
        %vm4242 = vcmp.lt.s32.totalorder %v4220, 4
        %v4243 = vsel %vm4239, %v4223, %v4226
        %v4244 = vsel %vm4242, %v4232, 2102212464
        %v4245 = vsel %vm4241, %v4229, %v4244
        %v4246 = vsel %vm4240, %v4243, %v4245
        %v4247 = vsel %vm4239, %v4226, %v4229
        %v4248 = vsel %vm4242, %v4235, 920167782
        %v4249 = vsel %vm4241, %v4232, %v4248
        %v4250 = vsel %vm4240, %v4247, %v4249
        %v4251 = vsel %vm4239, %v4229, %v4232
        %v4252 = vsel %vm4242, %v4238, 1326507024
        %v4253 = vsel %vm4241, %v4235, %v4252
        %v4254 = vsel %vm4240, %v4251, %v4253
        %v4255 = vshll.u32 %v4215, 8
        %v4256 = vand.u32 %v4255, 65535
        %v4257 = vshrl.u32 %v4255, 16
        %v4258 = vand.u32 %v4254, 65535
        %v4259 = vshrl.u32 %v4254, 16
        %v4260 = vmul.u32 %v4256, %v4258
        %v4261 = vmul.u32 %v4256, %v4259
        %v4262 = vmul.u32 %v4257, %v4258
        %v4263 = vmul.u32 %v4257, %v4259
        %v4264 = vshll.u32 %v4261, 16
        %v4265 = vshrl.u32 %v4261, 16
        %v4266 = vshll.u32 %v4262, 16
        %v4267 = vshrl.u32 %v4262, 16
        %vm4268 = vc.u32 %v4260, %v4264
        %v4269 = vsel %vm4268, 1, 0
        %v4270 = vadd.s32 %v4260, %v4264
        %v4271 = vadd.s32 %v4263, %v4269
        %vm4272 = vc.u32 %v4270, %v4266
        %v4273 = vsel %vm4272, 1, 0
        %v4274 = vadd.s32 %v4270, %v4266
        %v4275 = vadd.s32 %v4271, %v4273
        %v4276 = vadd.s32 %v4275, %v4265
        %v4277 = vadd.s32 %v4276, %v4267
        %v4278 = vand.u32 %v4255, 65535
        %v4279 = vshrl.u32 %v4255, 16
        %v4280 = vand.u32 %v4250, 65535
        %v4281 = vshrl.u32 %v4250, 16
        %v4282 = vmul.u32 %v4278, %v4280
        %v4283 = vmul.u32 %v4278, %v4281
        %v4284 = vmul.u32 %v4279, %v4280
        %v4285 = vmul.u32 %v4279, %v4281
        %v4286 = vshll.u32 %v4283, 16
        %v4287 = vshrl.u32 %v4283, 16
        %v4288 = vshll.u32 %v4284, 16
        %v4289 = vshrl.u32 %v4284, 16
        %vm4290 = vc.u32 %v4282, %v4286
        %v4291 = vsel %vm4290, 1, 0
        %v4292 = vadd.s32 %v4282, %v4286
        %v4293 = vadd.s32 %v4285, %v4291
        %vm4294 = vc.u32 %v4292, %v4288
        %v4295 = vsel %vm4294, 1, 0
        %v4296 = vadd.s32 %v4292, %v4288
        %v4297 = vadd.s32 %v4293, %v4295
        %v4298 = vadd.s32 %v4297, %v4287
        %v4299 = vadd.s32 %v4298, %v4289
        %v4300 = vmul.u32 %v4255, %v4246
        %v4301 = vadd.s32 %v4277, %v4296
        %vm4302 = vc.u32 %v4277, %v4296
        %v4303 = vadd.s32 %v4299, 1
        %v4304 = vsel %vm4302, %v4303, %v4299
        %v4305 = vadd.s32 %v4300, %v4304
        %v4306 = vadd.s32 %v4305, 536870912
        %v4307 = vshrl.u32 %v4306, 30
        %v4308 = vshll.u32 %v4307, 30
        %v4309 = vsub.s32 %v4305, %v4308
        %vm4310 = vcmp.lt.s32.totalorder %v4309, 0
        %v4311 = vsub.s32 0, %v4309
        %v4312 = vsel %vm4310, %v4311, %v4309
        %v4313 = vclz %v4312
        %v4314 = vsub.s32 %v4313, 2
        %vm4315 = vcmp.gt.s32.totalorder 0, %v4314
        %v4316 = vsel %vm4315, 0, %v4314
        %v4317 = vsub.s32 32, %v4316
        %v4318 = vshll.u32 %v4309, %v4316
        %v4319 = vshrl.u32 %v4301, %v4317
        %v4320 = vor.u32 %v4318, %v4319
        %v4321 = vsub.s32 4294967266, %v4316
        %v4322 = vadd.s32 %v4321, 127
        %v4323 = vshll.u32 %v4322, 23
        %v4324 = vor.u32 4788187, %v4323
        %v4325 = vand.u32 2147483647, %v4324
        %v4327 = vcvt.s32.f32 %v4320
        %v4328 = vmul.f32 %v4327, %v4325
        %v4329 = vxor.u32 %v4328, 2147483648
        %v4330 = vsel %vm4209, %v4329, %v4328
        %v4331 = vsub.s32 4, %v4307
        %v4332 = vsel %vm4209, %v4331, %v4307
        %v4333 = vsel %vm4208, %v2805, %v4330
        %v4334 = vsel %vm4208, 0, %v4332
        %v4335 = vmul.f32 %v4333, %v4333
        %v4336 = vmul.f32 %v4335, -0.001358992
        %v4337 = vadd.f32 %v4336, 0.041655596
        %v4338 = vmul.f32 %v4335, %v4337
        %v4339 = vadd.f32 %v4338, -0.4999988
        %v4340 = vmul.f32 %v4335, %v4339
        %v4341 = vadd.f32 1.0, %v4340
        %v4342 = vmul.f32 %v4333, %v4333
        %v4343 = vmul.f32 %v4342, -0.00019511016
        %v4344 = vadd.f32 %v4343, 0.008332121
        %v4345 = vmul.f32 %v4342, %v4344
        %v4346 = vadd.f32 %v4345, -0.16666654
        %v4347 = vmul.f32 %v4342, %v4346
        %v4348 = vadd.f32 %v4347, 1.0
        %v4349 = vmul.f32 %v4348, %v4333
        %vm4350 = vweird.f32 %v2805
        %v4351 = vadd.s32 %v4334, 3
        %v4352 = vand.u32 %v4351, 3
        %vm4353 = vcmp.lt.s32.totalorder %v4352, 2
        %vm4354 = vcmp.eq.s32.totalorder %v4352, 0
        %v4355 = vxor.u32 %v4349, 2147483648
        %v4356 = vsel %vm4354, %v4341, %v4355
        %vm4357 = vcmp.eq.s32.totalorder %v4352, 2
        %v4358 = vxor.u32 %v4341, 2147483648
        %v4359 = vsel %vm4357, %v4358, %v4349
        %v4360 = vsel %vm4353, %v4356, %v4359
        %v4361 = vsel %vm4350, nan, %v4360
        %v4362 = vand.u32 2147483647, %v2806
        %vm4363 = vcmp.le.f32.partialorder %v4362, 0.7853982
        %vm4364 = vcmp.lt.s32.totalorder %v2806, 0
        %v4365 = vand.u32 %v2806, 2139095040
        %v4366 = vshrl.u32 %v4365, 23
        %v4367 = vsub.s32 %v4366, 127
        %v4368 = vand.u32 2147483647, %v2806
        %v4369 = vand.u32 %v4368, 8388607
        %v4370 = vor.u32 %v4369, 8388608
        %v4371 = vsub.s32 0, %v4370
        %v4372 = vadd.s32 %v4367, 1
        %vm4373 = vcmp.gt.s32.totalorder %v4372, 0
        %v4374 = vsel %vm4373, %v4372, 0
        %v4375 = vshrl.u32 %v4374, 5
        %v4376 = vand.u32 %v4374, 31
        %v4377 = vsub.s32 32, %v4376
        %v4378 = vshrl.u32 683565275, %v4377
        %v4379 = vshll.u32 683565275, %v4376
        %v4380 = vshrl.u32 2475754826, %v4377
        %v4381 = vor.u32 %v4379, %v4380
        %v4382 = vshll.u32 2475754826, %v4376
        %v4383 = vshrl.u32 2131351028, %v4377
        %v4384 = vor.u32 %v4382, %v4383
        %v4385 = vshll.u32 2131351028, %v4376
        %v4386 = vshrl.u32 2102212464, %v4377
        %v4387 = vor.u32 %v4385, %v4386
        %v4388 = vshll.u32 2102212464, %v4376
        %v4389 = vshrl.u32 920167782, %v4377
        %v4390 = vor.u32 %v4388, %v4389
        %v4391 = vshll.u32 920167782, %v4376
        %v4392 = vshrl.u32 1326507024, %v4377
        %v4393 = vor.u32 %v4391, %v4392
        %vm4394 = vcmp.lt.s32.totalorder %v4375, 1
        %vm4395 = vcmp.lt.s32.totalorder %v4375, 2
        %vm4396 = vcmp.lt.s32.totalorder %v4375, 3
        %vm4397 = vcmp.lt.s32.totalorder %v4375, 4
        %v4398 = vsel %vm4394, %v4378, %v4381
        %v4399 = vsel %vm4397, %v4387, 2102212464
        %v4400 = vsel %vm4396, %v4384, %v4399
        %v4401 = vsel %vm4395, %v4398, %v4400
        %v4402 = vsel %vm4394, %v4381, %v4384
        %v4403 = vsel %vm4397, %v4390, 920167782
        %v4404 = vsel %vm4396, %v4387, %v4403
        %v4405 = vsel %vm4395, %v4402, %v4404
        %v4406 = vsel %vm4394, %v4384, %v4387
        %v4407 = vsel %vm4397, %v4393, 1326507024
        %v4408 = vsel %vm4396, %v4390, %v4407
        %v4409 = vsel %vm4395, %v4406, %v4408
        %v4410 = vshll.u32 %v4370, 8
        %v4411 = vand.u32 %v4410, 65535
        %v4412 = vshrl.u32 %v4410, 16
        %v4413 = vand.u32 %v4409, 65535
        %v4414 = vshrl.u32 %v4409, 16
        %v4415 = vmul.u32 %v4411, %v4413
        %v4416 = vmul.u32 %v4411, %v4414
        %v4417 = vmul.u32 %v4412, %v4413
        %v4418 = vmul.u32 %v4412, %v4414
        %v4419 = vshll.u32 %v4416, 16
        %v4420 = vshrl.u32 %v4416, 16
        %v4421 = vshll.u32 %v4417, 16
        %v4422 = vshrl.u32 %v4417, 16
        %vm4423 = vc.u32 %v4415, %v4419
        %v4424 = vsel %vm4423, 1, 0
        %v4425 = vadd.s32 %v4415, %v4419
        %v4426 = vadd.s32 %v4418, %v4424
        %vm4427 = vc.u32 %v4425, %v4421
        %v4428 = vsel %vm4427, 1, 0
        %v4429 = vadd.s32 %v4425, %v4421
        %v4430 = vadd.s32 %v4426, %v4428
        %v4431 = vadd.s32 %v4430, %v4420
        %v4432 = vadd.s32 %v4431, %v4422
        %v4433 = vand.u32 %v4410, 65535
        %v4434 = vshrl.u32 %v4410, 16
        %v4435 = vand.u32 %v4405, 65535
        %v4436 = vshrl.u32 %v4405, 16
        %v4437 = vmul.u32 %v4433, %v4435
        %v4438 = vmul.u32 %v4433, %v4436
        %v4439 = vmul.u32 %v4434, %v4435
        %v4440 = vmul.u32 %v4434, %v4436
        %v4441 = vshll.u32 %v4438, 16
        %v4442 = vshrl.u32 %v4438, 16
        %v4443 = vshll.u32 %v4439, 16
        %v4444 = vshrl.u32 %v4439, 16
        %vm4445 = vc.u32 %v4437, %v4441
        %v4446 = vsel %vm4445, 1, 0
        %v4447 = vadd.s32 %v4437, %v4441
        %v4448 = vadd.s32 %v4440, %v4446
        %vm4449 = vc.u32 %v4447, %v4443
        %v4450 = vsel %vm4449, 1, 0
        %v4451 = vadd.s32 %v4447, %v4443
        %v4452 = vadd.s32 %v4448, %v4450
        %v4453 = vadd.s32 %v4452, %v4442
        %v4454 = vadd.s32 %v4453, %v4444
        %v4455 = vmul.u32 %v4410, %v4401
        %v4456 = vadd.s32 %v4432, %v4451
        %vm4457 = vc.u32 %v4432, %v4451
        %v4458 = vadd.s32 %v4454, 1
        %v4459 = vsel %vm4457, %v4458, %v4454
        %v4460 = vadd.s32 %v4455, %v4459
        %v4461 = vadd.s32 %v4460, 536870912
        %v4462 = vshrl.u32 %v4461, 30
        %v4463 = vshll.u32 %v4462, 30
        %v4464 = vsub.s32 %v4460, %v4463
        %vm4465 = vcmp.lt.s32.totalorder %v4464, 0
        %v4466 = vsub.s32 0, %v4464
        %v4467 = vsel %vm4465, %v4466, %v4464
        %v4468 = vclz %v4467
        %v4469 = vsub.s32 %v4468, 2
        %vm4470 = vcmp.gt.s32.totalorder 0, %v4469
        %v4471 = vsel %vm4470, 0, %v4469
        %v4472 = vsub.s32 32, %v4471
        %v4473 = vshll.u32 %v4464, %v4471
        %v4474 = vshrl.u32 %v4456, %v4472
        %v4475 = vor.u32 %v4473, %v4474
        %v4476 = vsub.s32 4294967266, %v4471
        %v4477 = vadd.s32 %v4476, 127
        %v4478 = vshll.u32 %v4477, 23
        %v4479 = vor.u32 4788187, %v4478
        %v4480 = vand.u32 2147483647, %v4479
        %v4482 = vcvt.s32.f32 %v4475
        %v4483 = vmul.f32 %v4482, %v4480
        %v4484 = vxor.u32 %v4483, 2147483648
        %v4485 = vsel %vm4364, %v4484, %v4483
        %v4486 = vsub.s32 4, %v4462
        %v4487 = vsel %vm4364, %v4486, %v4462
        %v4488 = vsel %vm4363, %v2806, %v4485
        %v4489 = vsel %vm4363, 0, %v4487
        %v4490 = vmul.f32 %v4488, %v4488
        %v4491 = vmul.f32 %v4490, -0.001358992
        %v4492 = vadd.f32 %v4491, 0.041655596
        %v4493 = vmul.f32 %v4490, %v4492
        %v4494 = vadd.f32 %v4493, -0.4999988
        %v4495 = vmul.f32 %v4490, %v4494
        %v4496 = vadd.f32 1.0, %v4495
        %v4497 = vmul.f32 %v4488, %v4488
        %v4498 = vmul.f32 %v4497, -0.00019511016
        %v4499 = vadd.f32 %v4498, 0.008332121
        %v4500 = vmul.f32 %v4497, %v4499
        %v4501 = vadd.f32 %v4500, -0.16666654
        %v4502 = vmul.f32 %v4497, %v4501
        %v4503 = vadd.f32 %v4502, 1.0
        %v4504 = vmul.f32 %v4503, %v4488
        %vm4505 = vweird.f32 %v2806
        %v4506 = vadd.s32 %v4489, 3
        %v4507 = vand.u32 %v4506, 3
        %vm4508 = vcmp.lt.s32.totalorder %v4507, 2
        %vm4509 = vcmp.eq.s32.totalorder %v4507, 0
        %v4510 = vxor.u32 %v4504, 2147483648
        %v4511 = vsel %vm4509, %v4496, %v4510
        %vm4512 = vcmp.eq.s32.totalorder %v4507, 2
        %v4513 = vxor.u32 %v4496, 2147483648
        %v4514 = vsel %vm4512, %v4513, %v4504
        %v4515 = vsel %vm4508, %v4511, %v4514
        %v4516 = vsel %vm4505, nan, %v4515
        %v4517 = vand.u32 2147483647, %v2807
        %vm4518 = vcmp.le.f32.partialorder %v4517, 0.7853982
        %vm4519 = vcmp.lt.s32.totalorder %v2807, 0
        %v4520 = vand.u32 %v2807, 2139095040
        %v4521 = vshrl.u32 %v4520, 23
        %v4522 = vsub.s32 %v4521, 127
        %v4523 = vand.u32 2147483647, %v2807
        %v4524 = vand.u32 %v4523, 8388607
        %v4525 = vor.u32 %v4524, 8388608
        %v4526 = vsub.s32 0, %v4525
        %v4527 = vadd.s32 %v4522, 1
        %vm4528 = vcmp.gt.s32.totalorder %v4527, 0
        %v4529 = vsel %vm4528, %v4527, 0
        %v4530 = vshrl.u32 %v4529, 5
        %v4531 = vand.u32 %v4529, 31
        %v4532 = vsub.s32 32, %v4531
        %v4533 = vshrl.u32 683565275, %v4532
        %v4534 = vshll.u32 683565275, %v4531
        %v4535 = vshrl.u32 2475754826, %v4532
        %v4536 = vor.u32 %v4534, %v4535
        %v4537 = vshll.u32 2475754826, %v4531
        %v4538 = vshrl.u32 2131351028, %v4532
        %v4539 = vor.u32 %v4537, %v4538
        %v4540 = vshll.u32 2131351028, %v4531
        %v4541 = vshrl.u32 2102212464, %v4532
        %v4542 = vor.u32 %v4540, %v4541
        %v4543 = vshll.u32 2102212464, %v4531
        %v4544 = vshrl.u32 920167782, %v4532
        %v4545 = vor.u32 %v4543, %v4544
        %v4546 = vshll.u32 920167782, %v4531
        %v4547 = vshrl.u32 1326507024, %v4532
        %v4548 = vor.u32 %v4546, %v4547
        %vm4549 = vcmp.lt.s32.totalorder %v4530, 1
        %vm4550 = vcmp.lt.s32.totalorder %v4530, 2
        %vm4551 = vcmp.lt.s32.totalorder %v4530, 3
        %vm4552 = vcmp.lt.s32.totalorder %v4530, 4
        %v4553 = vsel %vm4549, %v4533, %v4536
        %v4554 = vsel %vm4552, %v4542, 2102212464
        %v4555 = vsel %vm4551, %v4539, %v4554
        %v4556 = vsel %vm4550, %v4553, %v4555
        %v4557 = vsel %vm4549, %v4536, %v4539
        %v4558 = vsel %vm4552, %v4545, 920167782
        %v4559 = vsel %vm4551, %v4542, %v4558
        %v4560 = vsel %vm4550, %v4557, %v4559
        %v4561 = vsel %vm4549, %v4539, %v4542
        %v4562 = vsel %vm4552, %v4548, 1326507024
        %v4563 = vsel %vm4551, %v4545, %v4562
        %v4564 = vsel %vm4550, %v4561, %v4563
        %v4565 = vshll.u32 %v4525, 8
        %v4566 = vand.u32 %v4565, 65535
        %v4567 = vshrl.u32 %v4565, 16
        %v4568 = vand.u32 %v4564, 65535
        %v4569 = vshrl.u32 %v4564, 16
        %v4570 = vmul.u32 %v4566, %v4568
        %v4571 = vmul.u32 %v4566, %v4569
        %v4572 = vmul.u32 %v4567, %v4568
        %v4573 = vmul.u32 %v4567, %v4569
        %v4574 = vshll.u32 %v4571, 16
        %v4575 = vshrl.u32 %v4571, 16
        %v4576 = vshll.u32 %v4572, 16
        %v4577 = vshrl.u32 %v4572, 16
        %vm4578 = vc.u32 %v4570, %v4574
        %v4579 = vsel %vm4578, 1, 0
        %v4580 = vadd.s32 %v4570, %v4574
        %v4581 = vadd.s32 %v4573, %v4579
        %vm4582 = vc.u32 %v4580, %v4576
        %v4583 = vsel %vm4582, 1, 0
        %v4584 = vadd.s32 %v4580, %v4576
        %v4585 = vadd.s32 %v4581, %v4583
        %v4586 = vadd.s32 %v4585, %v4575
        %v4587 = vadd.s32 %v4586, %v4577
        %v4588 = vand.u32 %v4565, 65535
        %v4589 = vshrl.u32 %v4565, 16
        %v4590 = vand.u32 %v4560, 65535
        %v4591 = vshrl.u32 %v4560, 16
        %v4592 = vmul.u32 %v4588, %v4590
        %v4593 = vmul.u32 %v4588, %v4591
        %v4594 = vmul.u32 %v4589, %v4590
        %v4595 = vmul.u32 %v4589, %v4591
        %v4596 = vshll.u32 %v4593, 16
        %v4597 = vshrl.u32 %v4593, 16
        %v4598 = vshll.u32 %v4594, 16
        %v4599 = vshrl.u32 %v4594, 16
        %vm4600 = vc.u32 %v4592, %v4596
        %v4601 = vsel %vm4600, 1, 0
        %v4602 = vadd.s32 %v4592, %v4596
        %v4603 = vadd.s32 %v4595, %v4601
        %vm4604 = vc.u32 %v4602, %v4598
        %v4605 = vsel %vm4604, 1, 0
        %v4606 = vadd.s32 %v4602, %v4598
        %v4607 = vadd.s32 %v4603, %v4605
        %v4608 = vadd.s32 %v4607, %v4597
        %v4609 = vadd.s32 %v4608, %v4599
        %v4610 = vmul.u32 %v4565, %v4556
        %v4611 = vadd.s32 %v4587, %v4606
        %vm4612 = vc.u32 %v4587, %v4606
        %v4613 = vadd.s32 %v4609, 1
        %v4614 = vsel %vm4612, %v4613, %v4609
        %v4615 = vadd.s32 %v4610, %v4614
        %v4616 = vadd.s32 %v4615, 536870912
        %v4617 = vshrl.u32 %v4616, 30
        %v4618 = vshll.u32 %v4617, 30
        %v4619 = vsub.s32 %v4615, %v4618
        %vm4620 = vcmp.lt.s32.totalorder %v4619, 0
        %v4621 = vsub.s32 0, %v4619
        %v4622 = vsel %vm4620, %v4621, %v4619
        %v4623 = vclz %v4622
        %v4624 = vsub.s32 %v4623, 2
        %vm4625 = vcmp.gt.s32.totalorder 0, %v4624
        %v4626 = vsel %vm4625, 0, %v4624
        %v4627 = vsub.s32 32, %v4626
        %v4628 = vshll.u32 %v4619, %v4626
        %v4629 = vshrl.u32 %v4611, %v4627
        %v4630 = vor.u32 %v4628, %v4629
        %v4631 = vsub.s32 4294967266, %v4626
        %v4632 = vadd.s32 %v4631, 127
        %v4633 = vshll.u32 %v4632, 23
        %v4634 = vor.u32 4788187, %v4633
        %v4635 = vand.u32 2147483647, %v4634
        %v4637 = vcvt.s32.f32 %v4630
        %v4638 = vmul.f32 %v4637, %v4635
        %v4639 = vxor.u32 %v4638, 2147483648
        %v4640 = vsel %vm4519, %v4639, %v4638
        %v4641 = vsub.s32 4, %v4617
        %v4642 = vsel %vm4519, %v4641, %v4617
        %v4643 = vsel %vm4518, %v2807, %v4640
        %v4644 = vsel %vm4518, 0, %v4642
        %v4645 = vmul.f32 %v4643, %v4643
        %v4646 = vmul.f32 %v4645, -0.001358992
        %v4647 = vadd.f32 %v4646, 0.041655596
        %v4648 = vmul.f32 %v4645, %v4647
        %v4649 = vadd.f32 %v4648, -0.4999988
        %v4650 = vmul.f32 %v4645, %v4649
        %v4651 = vadd.f32 1.0, %v4650
        %v4652 = vmul.f32 %v4643, %v4643
        %v4653 = vmul.f32 %v4652, -0.00019511016
        %v4654 = vadd.f32 %v4653, 0.008332121
        %v4655 = vmul.f32 %v4652, %v4654
        %v4656 = vadd.f32 %v4655, -0.16666654
        %v4657 = vmul.f32 %v4652, %v4656
        %v4658 = vadd.f32 %v4657, 1.0
        %v4659 = vmul.f32 %v4658, %v4643
        %vm4660 = vweird.f32 %v2807
        %v4661 = vadd.s32 %v4644, 3
        %v4662 = vand.u32 %v4661, 3
        %vm4663 = vcmp.lt.s32.totalorder %v4662, 2
        %vm4664 = vcmp.eq.s32.totalorder %v4662, 0
        %v4665 = vxor.u32 %v4659, 2147483648
        %v4666 = vsel %vm4664, %v4651, %v4665
        %vm4667 = vcmp.eq.s32.totalorder %v4662, 2
        %v4668 = vxor.u32 %v4651, 2147483648
        %v4669 = vsel %vm4667, %v4668, %v4659
        %v4670 = vsel %vm4663, %v4666, %v4669
        %v4671 = vsel %vm4660, nan, %v4670
        %v4672 = vand.u32 2147483647, %v2808
        %vm4673 = vcmp.le.f32.partialorder %v4672, 0.7853982
        %vm4674 = vcmp.lt.s32.totalorder %v2808, 0
        %v4675 = vand.u32 %v2808, 2139095040
        %v4676 = vshrl.u32 %v4675, 23
        %v4677 = vsub.s32 %v4676, 127
        %v4678 = vand.u32 2147483647, %v2808
        %v4679 = vand.u32 %v4678, 8388607
        %v4680 = vor.u32 %v4679, 8388608
        %v4681 = vsub.s32 0, %v4680
        %v4682 = vadd.s32 %v4677, 1
        %vm4683 = vcmp.gt.s32.totalorder %v4682, 0
        %v4684 = vsel %vm4683, %v4682, 0
        %v4685 = vshrl.u32 %v4684, 5
        %v4686 = vand.u32 %v4684, 31
        %v4687 = vsub.s32 32, %v4686
        %v4688 = vshrl.u32 683565275, %v4687
        %v4689 = vshll.u32 683565275, %v4686
        %v4690 = vshrl.u32 2475754826, %v4687
        %v4691 = vor.u32 %v4689, %v4690
        %v4692 = vshll.u32 2475754826, %v4686
        %v4693 = vshrl.u32 2131351028, %v4687
        %v4694 = vor.u32 %v4692, %v4693
        %v4695 = vshll.u32 2131351028, %v4686
        %v4696 = vshrl.u32 2102212464, %v4687
        %v4697 = vor.u32 %v4695, %v4696
        %v4698 = vshll.u32 2102212464, %v4686
        %v4699 = vshrl.u32 920167782, %v4687
        %v4700 = vor.u32 %v4698, %v4699
        %v4701 = vshll.u32 920167782, %v4686
        %v4702 = vshrl.u32 1326507024, %v4687
        %v4703 = vor.u32 %v4701, %v4702
        %vm4704 = vcmp.lt.s32.totalorder %v4685, 1
        %vm4705 = vcmp.lt.s32.totalorder %v4685, 2
        %vm4706 = vcmp.lt.s32.totalorder %v4685, 3
        %vm4707 = vcmp.lt.s32.totalorder %v4685, 4
        %v4708 = vsel %vm4704, %v4688, %v4691
        %v4709 = vsel %vm4707, %v4697, 2102212464
        %v4710 = vsel %vm4706, %v4694, %v4709
        %v4711 = vsel %vm4705, %v4708, %v4710
        %v4712 = vsel %vm4704, %v4691, %v4694
        %v4713 = vsel %vm4707, %v4700, 920167782
        %v4714 = vsel %vm4706, %v4697, %v4713
        %v4715 = vsel %vm4705, %v4712, %v4714
        %v4716 = vsel %vm4704, %v4694, %v4697
        %v4717 = vsel %vm4707, %v4703, 1326507024
        %v4718 = vsel %vm4706, %v4700, %v4717
        %v4719 = vsel %vm4705, %v4716, %v4718
        %v4720 = vshll.u32 %v4680, 8
        %v4721 = vand.u32 %v4720, 65535
        %v4722 = vshrl.u32 %v4720, 16
        %v4723 = vand.u32 %v4719, 65535
        %v4724 = vshrl.u32 %v4719, 16
        %v4725 = vmul.u32 %v4721, %v4723
        %v4726 = vmul.u32 %v4721, %v4724
        %v4727 = vmul.u32 %v4722, %v4723
        %v4728 = vmul.u32 %v4722, %v4724
        %v4729 = vshll.u32 %v4726, 16
        %v4730 = vshrl.u32 %v4726, 16
        %v4731 = vshll.u32 %v4727, 16
        %v4732 = vshrl.u32 %v4727, 16
        %vm4733 = vc.u32 %v4725, %v4729
        %v4734 = vsel %vm4733, 1, 0
        %v4735 = vadd.s32 %v4725, %v4729
        %v4736 = vadd.s32 %v4728, %v4734
        %vm4737 = vc.u32 %v4735, %v4731
        %v4738 = vsel %vm4737, 1, 0
        %v4739 = vadd.s32 %v4735, %v4731
        %v4740 = vadd.s32 %v4736, %v4738
        %v4741 = vadd.s32 %v4740, %v4730
        %v4742 = vadd.s32 %v4741, %v4732
        %v4743 = vand.u32 %v4720, 65535
        %v4744 = vshrl.u32 %v4720, 16
        %v4745 = vand.u32 %v4715, 65535
        %v4746 = vshrl.u32 %v4715, 16
        %v4747 = vmul.u32 %v4743, %v4745
        %v4748 = vmul.u32 %v4743, %v4746
        %v4749 = vmul.u32 %v4744, %v4745
        %v4750 = vmul.u32 %v4744, %v4746
        %v4751 = vshll.u32 %v4748, 16
        %v4752 = vshrl.u32 %v4748, 16
        %v4753 = vshll.u32 %v4749, 16
        %v4754 = vshrl.u32 %v4749, 16
        %vm4755 = vc.u32 %v4747, %v4751
        %v4756 = vsel %vm4755, 1, 0
        %v4757 = vadd.s32 %v4747, %v4751
        %v4758 = vadd.s32 %v4750, %v4756
        %vm4759 = vc.u32 %v4757, %v4753
        %v4760 = vsel %vm4759, 1, 0
        %v4761 = vadd.s32 %v4757, %v4753
        %v4762 = vadd.s32 %v4758, %v4760
        %v4763 = vadd.s32 %v4762, %v4752
        %v4764 = vadd.s32 %v4763, %v4754
        %v4765 = vmul.u32 %v4720, %v4711
        %v4766 = vadd.s32 %v4742, %v4761
        %vm4767 = vc.u32 %v4742, %v4761
        %v4768 = vadd.s32 %v4764, 1
        %v4769 = vsel %vm4767, %v4768, %v4764
        %v4770 = vadd.s32 %v4765, %v4769
        %v4771 = vadd.s32 %v4770, 536870912
        %v4772 = vshrl.u32 %v4771, 30
        %v4773 = vshll.u32 %v4772, 30
        %v4774 = vsub.s32 %v4770, %v4773
        %vm4775 = vcmp.lt.s32.totalorder %v4774, 0
        %v4776 = vsub.s32 0, %v4774
        %v4777 = vsel %vm4775, %v4776, %v4774
        %v4778 = vclz %v4777
        %v4779 = vsub.s32 %v4778, 2
        %vm4780 = vcmp.gt.s32.totalorder 0, %v4779
        %v4781 = vsel %vm4780, 0, %v4779
        %v4782 = vsub.s32 32, %v4781
        %v4783 = vshll.u32 %v4774, %v4781
        %v4784 = vshrl.u32 %v4766, %v4782
        %v4785 = vor.u32 %v4783, %v4784
        %v4786 = vsub.s32 4294967266, %v4781
        %v4787 = vadd.s32 %v4786, 127
        %v4788 = vshll.u32 %v4787, 23
        %v4789 = vor.u32 4788187, %v4788
        %v4790 = vand.u32 2147483647, %v4789
        %v4792 = vcvt.s32.f32 %v4785
        %v4793 = vmul.f32 %v4792, %v4790
        %v4794 = vxor.u32 %v4793, 2147483648
        %v4795 = vsel %vm4674, %v4794, %v4793
        %v4796 = vsub.s32 4, %v4772
        %v4797 = vsel %vm4674, %v4796, %v4772
        %v4798 = vsel %vm4673, %v2808, %v4795
        %v4799 = vsel %vm4673, 0, %v4797
        %v4800 = vmul.f32 %v4798, %v4798
        %v4801 = vmul.f32 %v4800, -0.001358992
        %v4802 = vadd.f32 %v4801, 0.041655596
        %v4803 = vmul.f32 %v4800, %v4802
        %v4804 = vadd.f32 %v4803, -0.4999988
        %v4805 = vmul.f32 %v4800, %v4804
        %v4806 = vadd.f32 1.0, %v4805
        %v4807 = vmul.f32 %v4798, %v4798
        %v4808 = vmul.f32 %v4807, -0.00019511016
        %v4809 = vadd.f32 %v4808, 0.008332121
        %v4810 = vmul.f32 %v4807, %v4809
        %v4811 = vadd.f32 %v4810, -0.16666654
        %v4812 = vmul.f32 %v4807, %v4811
        %v4813 = vadd.f32 %v4812, 1.0
        %v4814 = vmul.f32 %v4813, %v4798
        %vm4815 = vweird.f32 %v2808
        %v4816 = vadd.s32 %v4799, 3
        %v4817 = vand.u32 %v4816, 3
        %vm4818 = vcmp.lt.s32.totalorder %v4817, 2
        %vm4819 = vcmp.eq.s32.totalorder %v4817, 0
        %v4820 = vxor.u32 %v4814, 2147483648
        %v4821 = vsel %vm4819, %v4806, %v4820
        %vm4822 = vcmp.eq.s32.totalorder %v4817, 2
        %v4823 = vxor.u32 %v4806, 2147483648
        %v4824 = vsel %vm4822, %v4823, %v4814
        %v4825 = vsel %vm4818, %v4821, %v4824
        %v4826 = vsel %vm4815, nan, %v4825
        %v4827 = vand.u32 2147483647, %v2809
        %vm4828 = vcmp.le.f32.partialorder %v4827, 0.7853982
        %vm4829 = vcmp.lt.s32.totalorder %v2809, 0
        %v4830 = vand.u32 %v2809, 2139095040
        %v4831 = vshrl.u32 %v4830, 23
        %v4832 = vsub.s32 %v4831, 127
        %v4833 = vand.u32 2147483647, %v2809
        %v4834 = vand.u32 %v4833, 8388607
        %v4835 = vor.u32 %v4834, 8388608
        %v4836 = vsub.s32 0, %v4835
        %v4837 = vadd.s32 %v4832, 1
        %vm4838 = vcmp.gt.s32.totalorder %v4837, 0
        %v4839 = vsel %vm4838, %v4837, 0
        %v4840 = vshrl.u32 %v4839, 5
        %v4841 = vand.u32 %v4839, 31
        %v4842 = vsub.s32 32, %v4841
        %v4843 = vshrl.u32 683565275, %v4842
        %v4844 = vshll.u32 683565275, %v4841
        %v4845 = vshrl.u32 2475754826, %v4842
        %v4846 = vor.u32 %v4844, %v4845
        %v4847 = vshll.u32 2475754826, %v4841
        %v4848 = vshrl.u32 2131351028, %v4842
        %v4849 = vor.u32 %v4847, %v4848
        %v4850 = vshll.u32 2131351028, %v4841
        %v4851 = vshrl.u32 2102212464, %v4842
        %v4852 = vor.u32 %v4850, %v4851
        %v4853 = vshll.u32 2102212464, %v4841
        %v4854 = vshrl.u32 920167782, %v4842
        %v4855 = vor.u32 %v4853, %v4854
        %v4856 = vshll.u32 920167782, %v4841
        %v4857 = vshrl.u32 1326507024, %v4842
        %v4858 = vor.u32 %v4856, %v4857
        %vm4859 = vcmp.lt.s32.totalorder %v4840, 1
        %vm4860 = vcmp.lt.s32.totalorder %v4840, 2
        %vm4861 = vcmp.lt.s32.totalorder %v4840, 3
        %vm4862 = vcmp.lt.s32.totalorder %v4840, 4
        %v4863 = vsel %vm4859, %v4843, %v4846
        %v4864 = vsel %vm4862, %v4852, 2102212464
        %v4865 = vsel %vm4861, %v4849, %v4864
        %v4866 = vsel %vm4860, %v4863, %v4865
        %v4867 = vsel %vm4859, %v4846, %v4849
        %v4868 = vsel %vm4862, %v4855, 920167782
        %v4869 = vsel %vm4861, %v4852, %v4868
        %v4870 = vsel %vm4860, %v4867, %v4869
        %v4871 = vsel %vm4859, %v4849, %v4852
        %v4872 = vsel %vm4862, %v4858, 1326507024
        %v4873 = vsel %vm4861, %v4855, %v4872
        %v4874 = vsel %vm4860, %v4871, %v4873
        %v4875 = vshll.u32 %v4835, 8
        %v4876 = vand.u32 %v4875, 65535
        %v4877 = vshrl.u32 %v4875, 16
        %v4878 = vand.u32 %v4874, 65535
        %v4879 = vshrl.u32 %v4874, 16
        %v4880 = vmul.u32 %v4876, %v4878
        %v4881 = vmul.u32 %v4876, %v4879
        %v4882 = vmul.u32 %v4877, %v4878
        %v4883 = vmul.u32 %v4877, %v4879
        %v4884 = vshll.u32 %v4881, 16
        %v4885 = vshrl.u32 %v4881, 16
        %v4886 = vshll.u32 %v4882, 16
        %v4887 = vshrl.u32 %v4882, 16
        %vm4888 = vc.u32 %v4880, %v4884
        %v4889 = vsel %vm4888, 1, 0
        %v4890 = vadd.s32 %v4880, %v4884
        %v4891 = vadd.s32 %v4883, %v4889
        %vm4892 = vc.u32 %v4890, %v4886
        %v4893 = vsel %vm4892, 1, 0
        %v4894 = vadd.s32 %v4890, %v4886
        %v4895 = vadd.s32 %v4891, %v4893
        %v4896 = vadd.s32 %v4895, %v4885
        %v4897 = vadd.s32 %v4896, %v4887
        %v4898 = vand.u32 %v4875, 65535
        %v4899 = vshrl.u32 %v4875, 16
        %v4900 = vand.u32 %v4870, 65535
        %v4901 = vshrl.u32 %v4870, 16
        %v4902 = vmul.u32 %v4898, %v4900
        %v4903 = vmul.u32 %v4898, %v4901
        %v4904 = vmul.u32 %v4899, %v4900
        %v4905 = vmul.u32 %v4899, %v4901
        %v4906 = vshll.u32 %v4903, 16
        %v4907 = vshrl.u32 %v4903, 16
        %v4908 = vshll.u32 %v4904, 16
        %v4909 = vshrl.u32 %v4904, 16
        %vm4910 = vc.u32 %v4902, %v4906
        %v4911 = vsel %vm4910, 1, 0
        %v4912 = vadd.s32 %v4902, %v4906
        %v4913 = vadd.s32 %v4905, %v4911
        %vm4914 = vc.u32 %v4912, %v4908
        %v4915 = vsel %vm4914, 1, 0
        %v4916 = vadd.s32 %v4912, %v4908
        %v4917 = vadd.s32 %v4913, %v4915
        %v4918 = vadd.s32 %v4917, %v4907
        %v4919 = vadd.s32 %v4918, %v4909
        %v4920 = vmul.u32 %v4875, %v4866
        %v4921 = vadd.s32 %v4897, %v4916
        %vm4922 = vc.u32 %v4897, %v4916
        %v4923 = vadd.s32 %v4919, 1
        %v4924 = vsel %vm4922, %v4923, %v4919
        %v4925 = vadd.s32 %v4920, %v4924
        %v4926 = vadd.s32 %v4925, 536870912
        %v4927 = vshrl.u32 %v4926, 30
        %v4928 = vshll.u32 %v4927, 30
        %v4929 = vsub.s32 %v4925, %v4928
        %vm4930 = vcmp.lt.s32.totalorder %v4929, 0
        %v4931 = vsub.s32 0, %v4929
        %v4932 = vsel %vm4930, %v4931, %v4929
        %v4933 = vclz %v4932
        %v4934 = vsub.s32 %v4933, 2
        %vm4935 = vcmp.gt.s32.totalorder 0, %v4934
        %v4936 = vsel %vm4935, 0, %v4934
        %v4937 = vsub.s32 32, %v4936
        %v4938 = vshll.u32 %v4929, %v4936
        %v4939 = vshrl.u32 %v4921, %v4937
        %v4940 = vor.u32 %v4938, %v4939
        %v4941 = vsub.s32 4294967266, %v4936
        %v4942 = vadd.s32 %v4941, 127
        %v4943 = vshll.u32 %v4942, 23
        %v4944 = vor.u32 4788187, %v4943
        %v4945 = vand.u32 2147483647, %v4944
        %v4947 = vcvt.s32.f32 %v4940
        %v4948 = vmul.f32 %v4947, %v4945
        %v4949 = vxor.u32 %v4948, 2147483648
        %v4950 = vsel %vm4829, %v4949, %v4948
        %v4951 = vsub.s32 4, %v4927
        %v4952 = vsel %vm4829, %v4951, %v4927
        %v4953 = vsel %vm4828, %v2809, %v4950
        %v4954 = vsel %vm4828, 0, %v4952
        %v4955 = vmul.f32 %v4953, %v4953
        %v4956 = vmul.f32 %v4955, -0.001358992
        %v4957 = vadd.f32 %v4956, 0.041655596
        %v4958 = vmul.f32 %v4955, %v4957
        %v4959 = vadd.f32 %v4958, -0.4999988
        %v4960 = vmul.f32 %v4955, %v4959
        %v4961 = vadd.f32 1.0, %v4960
        %v4962 = vmul.f32 %v4953, %v4953
        %v4963 = vmul.f32 %v4962, -0.00019511016
        %v4964 = vadd.f32 %v4963, 0.008332121
        %v4965 = vmul.f32 %v4962, %v4964
        %v4966 = vadd.f32 %v4965, -0.16666654
        %v4967 = vmul.f32 %v4962, %v4966
        %v4968 = vadd.f32 %v4967, 1.0
        %v4969 = vmul.f32 %v4968, %v4953
        %vm4970 = vweird.f32 %v2809
        %v4971 = vadd.s32 %v4954, 3
        %v4972 = vand.u32 %v4971, 3
        %vm4973 = vcmp.lt.s32.totalorder %v4972, 2
        %vm4974 = vcmp.eq.s32.totalorder %v4972, 0
        %v4975 = vxor.u32 %v4969, 2147483648
        %v4976 = vsel %vm4974, %v4961, %v4975
        %vm4977 = vcmp.eq.s32.totalorder %v4972, 2
        %v4978 = vxor.u32 %v4961, 2147483648
        %v4979 = vsel %vm4977, %v4978, %v4969
        %v4980 = vsel %vm4973, %v4976, %v4979
        %v4981 = vsel %vm4970, nan, %v4980
        %v4982 = vand.u32 2147483647, %v2810
        %vm4983 = vcmp.le.f32.partialorder %v4982, 0.7853982
        %vm4984 = vcmp.lt.s32.totalorder %v2810, 0
        %v4985 = vand.u32 %v2810, 2139095040
        %v4986 = vshrl.u32 %v4985, 23
        %v4987 = vsub.s32 %v4986, 127
        %v4988 = vand.u32 2147483647, %v2810
        %v4989 = vand.u32 %v4988, 8388607
        %v4990 = vor.u32 %v4989, 8388608
        %v4991 = vsub.s32 0, %v4990
        %v4992 = vadd.s32 %v4987, 1
        %vm4993 = vcmp.gt.s32.totalorder %v4992, 0
        %v4994 = vsel %vm4993, %v4992, 0
        %v4995 = vshrl.u32 %v4994, 5
        %v4996 = vand.u32 %v4994, 31
        %v4997 = vsub.s32 32, %v4996
        %v4998 = vshrl.u32 683565275, %v4997
        %v4999 = vshll.u32 683565275, %v4996
        %v5000 = vshrl.u32 2475754826, %v4997
        %v5001 = vor.u32 %v4999, %v5000
        %v5002 = vshll.u32 2475754826, %v4996
        %v5003 = vshrl.u32 2131351028, %v4997
        %v5004 = vor.u32 %v5002, %v5003
        %v5005 = vshll.u32 2131351028, %v4996
        %v5006 = vshrl.u32 2102212464, %v4997
        %v5007 = vor.u32 %v5005, %v5006
        %v5008 = vshll.u32 2102212464, %v4996
        %v5009 = vshrl.u32 920167782, %v4997
        %v5010 = vor.u32 %v5008, %v5009
        %v5011 = vshll.u32 920167782, %v4996
        %v5012 = vshrl.u32 1326507024, %v4997
        %v5013 = vor.u32 %v5011, %v5012
        %vm5014 = vcmp.lt.s32.totalorder %v4995, 1
        %vm5015 = vcmp.lt.s32.totalorder %v4995, 2
        %vm5016 = vcmp.lt.s32.totalorder %v4995, 3
        %vm5017 = vcmp.lt.s32.totalorder %v4995, 4
        %v5018 = vsel %vm5014, %v4998, %v5001
        %v5019 = vsel %vm5017, %v5007, 2102212464
        %v5020 = vsel %vm5016, %v5004, %v5019
        %v5021 = vsel %vm5015, %v5018, %v5020
        %v5022 = vsel %vm5014, %v5001, %v5004
        %v5023 = vsel %vm5017, %v5010, 920167782
        %v5024 = vsel %vm5016, %v5007, %v5023
        %v5025 = vsel %vm5015, %v5022, %v5024
        %v5026 = vsel %vm5014, %v5004, %v5007
        %v5027 = vsel %vm5017, %v5013, 1326507024
        %v5028 = vsel %vm5016, %v5010, %v5027
        %v5029 = vsel %vm5015, %v5026, %v5028
        %v5030 = vshll.u32 %v4990, 8
        %v5031 = vand.u32 %v5030, 65535
        %v5032 = vshrl.u32 %v5030, 16
        %v5033 = vand.u32 %v5029, 65535
        %v5034 = vshrl.u32 %v5029, 16
        %v5035 = vmul.u32 %v5031, %v5033
        %v5036 = vmul.u32 %v5031, %v5034
        %v5037 = vmul.u32 %v5032, %v5033
        %v5038 = vmul.u32 %v5032, %v5034
        %v5039 = vshll.u32 %v5036, 16
        %v5040 = vshrl.u32 %v5036, 16
        %v5041 = vshll.u32 %v5037, 16
        %v5042 = vshrl.u32 %v5037, 16
        %vm5043 = vc.u32 %v5035, %v5039
        %v5044 = vsel %vm5043, 1, 0
        %v5045 = vadd.s32 %v5035, %v5039
        %v5046 = vadd.s32 %v5038, %v5044
        %vm5047 = vc.u32 %v5045, %v5041
        %v5048 = vsel %vm5047, 1, 0
        %v5049 = vadd.s32 %v5045, %v5041
        %v5050 = vadd.s32 %v5046, %v5048
        %v5051 = vadd.s32 %v5050, %v5040
        %v5052 = vadd.s32 %v5051, %v5042
        %v5053 = vand.u32 %v5030, 65535
        %v5054 = vshrl.u32 %v5030, 16
        %v5055 = vand.u32 %v5025, 65535
        %v5056 = vshrl.u32 %v5025, 16
        %v5057 = vmul.u32 %v5053, %v5055
        %v5058 = vmul.u32 %v5053, %v5056
        %v5059 = vmul.u32 %v5054, %v5055
        %v5060 = vmul.u32 %v5054, %v5056
        %v5061 = vshll.u32 %v5058, 16
        %v5062 = vshrl.u32 %v5058, 16
        %v5063 = vshll.u32 %v5059, 16
        %v5064 = vshrl.u32 %v5059, 16
        %vm5065 = vc.u32 %v5057, %v5061
        %v5066 = vsel %vm5065, 1, 0
        %v5067 = vadd.s32 %v5057, %v5061
        %v5068 = vadd.s32 %v5060, %v5066
        %vm5069 = vc.u32 %v5067, %v5063
        %v5070 = vsel %vm5069, 1, 0
        %v5071 = vadd.s32 %v5067, %v5063
        %v5072 = vadd.s32 %v5068, %v5070
        %v5073 = vadd.s32 %v5072, %v5062
        %v5074 = vadd.s32 %v5073, %v5064
        %v5075 = vmul.u32 %v5030, %v5021
        %v5076 = vadd.s32 %v5052, %v5071
        %vm5077 = vc.u32 %v5052, %v5071
        %v5078 = vadd.s32 %v5074, 1
        %v5079 = vsel %vm5077, %v5078, %v5074
        %v5080 = vadd.s32 %v5075, %v5079
        %v5081 = vadd.s32 %v5080, 536870912
        %v5082 = vshrl.u32 %v5081, 30
        %v5083 = vshll.u32 %v5082, 30
        %v5084 = vsub.s32 %v5080, %v5083
        %vm5085 = vcmp.lt.s32.totalorder %v5084, 0
        %v5086 = vsub.s32 0, %v5084
        %v5087 = vsel %vm5085, %v5086, %v5084
        %v5088 = vclz %v5087
        %v5089 = vsub.s32 %v5088, 2
        %vm5090 = vcmp.gt.s32.totalorder 0, %v5089
        %v5091 = vsel %vm5090, 0, %v5089
        %v5092 = vsub.s32 32, %v5091
        %v5093 = vshll.u32 %v5084, %v5091
        %v5094 = vshrl.u32 %v5076, %v5092
        %v5095 = vor.u32 %v5093, %v5094
        %v5096 = vsub.s32 4294967266, %v5091
        %v5097 = vadd.s32 %v5096, 127
        %v5098 = vshll.u32 %v5097, 23
        %v5099 = vor.u32 4788187, %v5098
        %v5100 = vand.u32 2147483647, %v5099
        %v5102 = vcvt.s32.f32 %v5095
        %v5103 = vmul.f32 %v5102, %v5100
        %v5104 = vxor.u32 %v5103, 2147483648
        %v5105 = vsel %vm4984, %v5104, %v5103
        %v5106 = vsub.s32 4, %v5082
        %v5107 = vsel %vm4984, %v5106, %v5082
        %v5108 = vsel %vm4983, %v2810, %v5105
        %v5109 = vsel %vm4983, 0, %v5107
        %v5110 = vmul.f32 %v5108, %v5108
        %v5111 = vmul.f32 %v5110, -0.001358992
        %v5112 = vadd.f32 %v5111, 0.041655596
        %v5113 = vmul.f32 %v5110, %v5112
        %v5114 = vadd.f32 %v5113, -0.4999988
        %v5115 = vmul.f32 %v5110, %v5114
        %v5116 = vadd.f32 1.0, %v5115
        %v5117 = vmul.f32 %v5108, %v5108
        %v5118 = vmul.f32 %v5117, -0.00019511016
        %v5119 = vadd.f32 %v5118, 0.008332121
        %v5120 = vmul.f32 %v5117, %v5119
        %v5121 = vadd.f32 %v5120, -0.16666654
        %v5122 = vmul.f32 %v5117, %v5121
        %v5123 = vadd.f32 %v5122, 1.0
        %v5124 = vmul.f32 %v5123, %v5108
        %vm5125 = vweird.f32 %v2810
        %v5126 = vadd.s32 %v5109, 3
        %v5127 = vand.u32 %v5126, 3
        %vm5128 = vcmp.lt.s32.totalorder %v5127, 2
        %vm5129 = vcmp.eq.s32.totalorder %v5127, 0
        %v5130 = vxor.u32 %v5124, 2147483648
        %v5131 = vsel %vm5129, %v5116, %v5130
        %vm5132 = vcmp.eq.s32.totalorder %v5127, 2
        %v5133 = vxor.u32 %v5116, 2147483648
        %v5134 = vsel %vm5132, %v5133, %v5124
        %v5135 = vsel %vm5128, %v5131, %v5134
        %v5136 = vsel %vm5125, nan, %v5135
        %v5137 = vand.u32 2147483647, %v2811
        %vm5138 = vcmp.le.f32.partialorder %v5137, 0.7853982
        %vm5139 = vcmp.lt.s32.totalorder %v2811, 0
        %v5140 = vand.u32 %v2811, 2139095040
        %v5141 = vshrl.u32 %v5140, 23
        %v5142 = vsub.s32 %v5141, 127
        %v5143 = vand.u32 2147483647, %v2811
        %v5144 = vand.u32 %v5143, 8388607
        %v5145 = vor.u32 %v5144, 8388608
        %v5146 = vsub.s32 0, %v5145
        %v5147 = vadd.s32 %v5142, 1
        %vm5148 = vcmp.gt.s32.totalorder %v5147, 0
        %v5149 = vsel %vm5148, %v5147, 0
        %v5150 = vshrl.u32 %v5149, 5
        %v5151 = vand.u32 %v5149, 31
        %v5152 = vsub.s32 32, %v5151
        %v5153 = vshrl.u32 683565275, %v5152
        %v5154 = vshll.u32 683565275, %v5151
        %v5155 = vshrl.u32 2475754826, %v5152
        %v5156 = vor.u32 %v5154, %v5155
        %v5157 = vshll.u32 2475754826, %v5151
        %v5158 = vshrl.u32 2131351028, %v5152
        %v5159 = vor.u32 %v5157, %v5158
        %v5160 = vshll.u32 2131351028, %v5151
        %v5161 = vshrl.u32 2102212464, %v5152
        %v5162 = vor.u32 %v5160, %v5161
        %v5163 = vshll.u32 2102212464, %v5151
        %v5164 = vshrl.u32 920167782, %v5152
        %v5165 = vor.u32 %v5163, %v5164
        %v5166 = vshll.u32 920167782, %v5151
        %v5167 = vshrl.u32 1326507024, %v5152
        %v5168 = vor.u32 %v5166, %v5167
        %vm5169 = vcmp.lt.s32.totalorder %v5150, 1
        %vm5170 = vcmp.lt.s32.totalorder %v5150, 2
        %vm5171 = vcmp.lt.s32.totalorder %v5150, 3
        %vm5172 = vcmp.lt.s32.totalorder %v5150, 4
        %v5173 = vsel %vm5169, %v5153, %v5156
        %v5174 = vsel %vm5172, %v5162, 2102212464
        %v5175 = vsel %vm5171, %v5159, %v5174
        %v5176 = vsel %vm5170, %v5173, %v5175
        %v5177 = vsel %vm5169, %v5156, %v5159
        %v5178 = vsel %vm5172, %v5165, 920167782
        %v5179 = vsel %vm5171, %v5162, %v5178
        %v5180 = vsel %vm5170, %v5177, %v5179
        %v5181 = vsel %vm5169, %v5159, %v5162
        %v5182 = vsel %vm5172, %v5168, 1326507024
        %v5183 = vsel %vm5171, %v5165, %v5182
        %v5184 = vsel %vm5170, %v5181, %v5183
        %v5185 = vshll.u32 %v5145, 8
        %v5186 = vand.u32 %v5185, 65535
        %v5187 = vshrl.u32 %v5185, 16
        %v5188 = vand.u32 %v5184, 65535
        %v5189 = vshrl.u32 %v5184, 16
        %v5190 = vmul.u32 %v5186, %v5188
        %v5191 = vmul.u32 %v5186, %v5189
        %v5192 = vmul.u32 %v5187, %v5188
        %v5193 = vmul.u32 %v5187, %v5189
        %v5194 = vshll.u32 %v5191, 16
        %v5195 = vshrl.u32 %v5191, 16
        %v5196 = vshll.u32 %v5192, 16
        %v5197 = vshrl.u32 %v5192, 16
        %vm5198 = vc.u32 %v5190, %v5194
        %v5199 = vsel %vm5198, 1, 0
        %v5200 = vadd.s32 %v5190, %v5194
        %v5201 = vadd.s32 %v5193, %v5199
        %vm5202 = vc.u32 %v5200, %v5196
        %v5203 = vsel %vm5202, 1, 0
        %v5204 = vadd.s32 %v5200, %v5196
        %v5205 = vadd.s32 %v5201, %v5203
        %v5206 = vadd.s32 %v5205, %v5195
        %v5207 = vadd.s32 %v5206, %v5197
        %v5208 = vand.u32 %v5185, 65535
        %v5209 = vshrl.u32 %v5185, 16
        %v5210 = vand.u32 %v5180, 65535
        %v5211 = vshrl.u32 %v5180, 16
        %v5212 = vmul.u32 %v5208, %v5210
        %v5213 = vmul.u32 %v5208, %v5211
        %v5214 = vmul.u32 %v5209, %v5210
        %v5215 = vmul.u32 %v5209, %v5211
        %v5216 = vshll.u32 %v5213, 16
        %v5217 = vshrl.u32 %v5213, 16
        %v5218 = vshll.u32 %v5214, 16
        %v5219 = vshrl.u32 %v5214, 16
        %vm5220 = vc.u32 %v5212, %v5216
        %v5221 = vsel %vm5220, 1, 0
        %v5222 = vadd.s32 %v5212, %v5216
        %v5223 = vadd.s32 %v5215, %v5221
        %vm5224 = vc.u32 %v5222, %v5218
        %v5225 = vsel %vm5224, 1, 0
        %v5226 = vadd.s32 %v5222, %v5218
        %v5227 = vadd.s32 %v5223, %v5225
        %v5228 = vadd.s32 %v5227, %v5217
        %v5229 = vadd.s32 %v5228, %v5219
        %v5230 = vmul.u32 %v5185, %v5176
        %v5231 = vadd.s32 %v5207, %v5226
        %vm5232 = vc.u32 %v5207, %v5226
        %v5233 = vadd.s32 %v5229, 1
        %v5234 = vsel %vm5232, %v5233, %v5229
        %v5235 = vadd.s32 %v5230, %v5234
        %v5236 = vadd.s32 %v5235, 536870912
        %v5237 = vshrl.u32 %v5236, 30
        %v5238 = vshll.u32 %v5237, 30
        %v5239 = vsub.s32 %v5235, %v5238
        %vm5240 = vcmp.lt.s32.totalorder %v5239, 0
        %v5241 = vsub.s32 0, %v5239
        %v5242 = vsel %vm5240, %v5241, %v5239
        %v5243 = vclz %v5242
        %v5244 = vsub.s32 %v5243, 2
        %vm5245 = vcmp.gt.s32.totalorder 0, %v5244
        %v5246 = vsel %vm5245, 0, %v5244
        %v5247 = vsub.s32 32, %v5246
        %v5248 = vshll.u32 %v5239, %v5246
        %v5249 = vshrl.u32 %v5231, %v5247
        %v5250 = vor.u32 %v5248, %v5249
        %v5251 = vsub.s32 4294967266, %v5246
        %v5252 = vadd.s32 %v5251, 127
        %v5253 = vshll.u32 %v5252, 23
        %v5254 = vor.u32 4788187, %v5253
        %v5255 = vand.u32 2147483647, %v5254
        %v5257 = vcvt.s32.f32 %v5250
        %v5258 = vmul.f32 %v5257, %v5255
        %v5259 = vxor.u32 %v5258, 2147483648
        %v5260 = vsel %vm5139, %v5259, %v5258
        %v5261 = vsub.s32 4, %v5237
        %v5262 = vsel %vm5139, %v5261, %v5237
        %v5263 = vsel %vm5138, %v2811, %v5260
        %v5264 = vsel %vm5138, 0, %v5262
        %v5265 = vmul.f32 %v5263, %v5263
        %v5266 = vmul.f32 %v5265, -0.001358992
        %v5267 = vadd.f32 %v5266, 0.041655596
        %v5268 = vmul.f32 %v5265, %v5267
        %v5269 = vadd.f32 %v5268, -0.4999988
        %v5270 = vmul.f32 %v5265, %v5269
        %v5271 = vadd.f32 1.0, %v5270
        %v5272 = vmul.f32 %v5263, %v5263
        %v5273 = vmul.f32 %v5272, -0.00019511016
        %v5274 = vadd.f32 %v5273, 0.008332121
        %v5275 = vmul.f32 %v5272, %v5274
        %v5276 = vadd.f32 %v5275, -0.16666654
        %v5277 = vmul.f32 %v5272, %v5276
        %v5278 = vadd.f32 %v5277, 1.0
        %v5279 = vmul.f32 %v5278, %v5263
        %vm5280 = vweird.f32 %v2811
        %v5281 = vadd.s32 %v5264, 3
        %v5282 = vand.u32 %v5281, 3
        %vm5283 = vcmp.lt.s32.totalorder %v5282, 2
        %vm5284 = vcmp.eq.s32.totalorder %v5282, 0
        %v5285 = vxor.u32 %v5279, 2147483648
        %v5286 = vsel %vm5284, %v5271, %v5285
        %vm5287 = vcmp.eq.s32.totalorder %v5282, 2
        %v5288 = vxor.u32 %v5271, 2147483648
        %v5289 = vsel %vm5287, %v5288, %v5279
        %v5290 = vsel %vm5283, %v5286, %v5289
        %v5291 = vsel %vm5280, nan, %v5290
        %5292 = vst [vmem:[%s151 + $0x80] sm:$0xff] %v2966
        %5293 = vst [vmem:[%s151 + $0x88] sm:$0xff] %v3121
        %5294 = vst [vmem:[%s151 + $0x90] sm:$0xff] %v3276
        %5295 = vst [vmem:[%s151 + $0x98] sm:$0xff] %v3431
        %5296 = vst [vmem:[%s151 + $0xa0] sm:$0xff] %v3586
        %5297 = vst [vmem:[%s151 + $0xa8] sm:$0xff] %v3741
        %5298 = vst [vmem:[%s151 + $0xb0] sm:$0xff] %v3896
        %5299 = vst [vmem:[%s151 + $0xb8] sm:$0xff] %v4051
        %5300 = vst [vmem:[%s151 + $0xc0] sm:$0xff] %v4206
        %5301 = vst [vmem:[%s151 + $0xc8] sm:$0xff] %v4361
        %5302 = vst [vmem:[%s151 + $0xd0] sm:$0xff] %v4516
        %5303 = vst [vmem:[%s151 + $0xd8] sm:$0xff] %v4671
        %5304 = vst [vmem:[%s151 + $0xe0] sm:$0xff] %v4826
        %5305 = vst [vmem:[%s151 + $0xe8] sm:$0xff] %v4981
        %5306 = vst [vmem:[%s151 + $0xf0] sm:$0xff] %v5136
        %5307 = vst [vmem:[%s151 + $0xf8] sm:$0xff] %v5291
        %s5308 = sand.u32 %s85, 1
        %s5309 = scalar_lea.sflag [#allocation3], %s5308
        %s5310 = sand.u32 %s85, 1
        %s5311 = smul.addr %s5310, 256
        %s5312 = scalar_lea.vmem [#allocation2], %s5311
        // Predicated region
        $region29: #{tpu_custom_call.1} parent=27 // pred_check
          %p5313 = pneg %p95
        $region30: #{tpu_custom_call.1} parent=27 // pred_check_branch
          %5315 = sbr.rel (%p5313) target = $region32
        $region31: #{tpu_custom_call.1} parent=27 // pred_region
          %s5316 = smul.u32 2, %s21
          %5318 = vsyncadd %s5309, 0
          %s5319 = smul.addr %s20, 32
          %s5320 = sadd.s32 %s5316, %s5319
          %s5321 = smul.addr %s5320, 8
          %s5322 = scalar_lea.hbm %s2, %s5321
          %s5323 = sshll.u32 %s5312, 4
          %s5324 = int_to_ptr.vmem [resolvable:$true] %s5323
          %s5325 = sshll.u32 %s5322, 4
          %s5326 = int_to_ptr.hbm [resolvable:$true] %s5325
          %5331 = dma.vmem_to_hbm [thread:$0]  %s5324, 4096, %s5326, %s5309, 256, 256, 16
        $region32: #{tpu_custom_call.1} parent=27 // pred_fallthru
          _
      $region28: #{tpu_custom_call.1} parent=5 // pred_fallthru
        _
      %p5332 = scmp.le.s32.totalorder 2, %s11
      // Predicated region
      $region33: #{tpu_custom_call.1} parent=5 // pred_check
        %p5333 = pneg %p5332
      $region34: #{tpu_custom_call.1} parent=5 // pred_check_branch
        %5335 = sbr.rel (%p5333) target = $region36
      $region35: #{tpu_custom_call.1} parent=5 // pred_region
        %s5336 = ssub.s32 %s11, 2
        // Predicated region
        $region37: #{tpu_custom_call.1} parent=35 // pred_check
          %p5337 = pneg %p101
        $region38: #{tpu_custom_call.1} parent=35 // pred_check_branch
          %5339 = sbr.rel (%p5337) target = $region40
        $region39: #{tpu_custom_call.1} parent=35 // pred_region
          %s5340 = sand.u32 %s86, 1
          %s5341 = scalar_lea.sflag [#allocation3], %s5340
          %s5342 = sand.u32 %s86, 1
          %s5343 = smul.addr %s5342, 256
          %s5344 = scalar_lea.vmem [#allocation2], %s5343
          %5346 = dma.done %s5341, 4096
        $region40: #{tpu_custom_call.1} parent=35 // pred_fallthru
          _
      $region36: #{tpu_custom_call.1} parent=5 // pred_fallthru
        _
    $region6: #{tpu_custom_call.1} parent=1 // loop_footer
      %s15 = sadd.s32 1, %s11
    $region7: #{tpu_custom_call.1} parent=1 // loop_footer_branch
      %10 = sbr.rel target = $region3
    $region8: #{tpu_custom_call.1} parent=1 // loop_exit
      _
    %5347 = vsyncpa [#allocation3], 1
    %s5348 = scalar_lea.sflag [#allocation3], 1
    %5349 = vsyncpa %s5348, 1

</llo_original>
